<compile_context>
chip_gen: v7x
topology: tpu7x:2x2x1
jax: 0.10.0
libtpu: 0.0.40
codegen_flags: <defaults>
</compile_context>

<pallas_src>
import functools

import jax
import jax.numpy as jnp
from jax import lax
from jax.experimental import pallas as pl
from jax.experimental.pallas import tpu as pltpu


# ----------------------------------------------------------------------------
# The single fused kernel (one image per grid step)
# ----------------------------------------------------------------------------
def _srunet_kernel(x_ref,
                   w_e1a, b_e1a, w_e1b, b_e1b,
                   w_e2a, b_e2a, w_e2b, b_e2b,
                   w_d1a, b_d1a, w_d1b, b_d1b,
                   w_hd, b_hd,
                   rsel_e, rsel_o, lsel_e, lsel_o, rexp, lexp,
                   o_ref,
                   f_x, f_t1, f_ue, f_d1, f_d2, h_p1, h_t2, h_e2,
                   *, H, H2, CU, CE):
    bf16 = jnp.bfloat16
    f32 = jnp.float32

    def band_conv(src_ref, rows, w_ref, b_ref, act):
        # 3x3 'same' conv as 3 band GEMMs (one per dy); horizontal padding is
        # encoded in the block-tridiagonal weights, vertical padding by the
        # zeroed halo rows of src_ref.
        n = w_ref.shape[-1]
        acc = jnp.zeros((rows, n), f32)
        for t in range(3):                               # dy = t - 1
            acc = acc + jnp.dot(src_ref[t:t + rows, :], w_ref[t],
                                preferred_element_type=f32)
        acc = acc + b_ref[...]
        if act == "relu":
            return jnp.maximum(acc, 0.0)
        return jnp.tanh(acc)

    # Zero the 1-row top/bottom halos of every dy-shifted buffer.
    for buf, rows in ((f_x, H), (f_t1, H), (f_ue, H), (f_d1, H), (f_d2, H),
                      (h_p1, H2), (h_t2, H2)):
        z = jnp.zeros((1, buf.shape[1]), buf.dtype)
        buf[0:1, :] = z
        buf[rows + 1:rows + 2, :] = z

    # Stage the lane-packed input rows.
    f_x[1:H + 1, :] = x_ref[...].astype(bf16)

    # ---- encoder ------------------------------------------------------------
    f_t1[1:H + 1, :] = band_conv(f_x, H, w_e1a, b_e1a, "relu").astype(bf16)
    f_ue[1:H + 1, CU:CU + CE] = band_conv(f_t1, H, w_e1b, b_e1b,
                                          "relu").astype(bf16)

    # 2x2 max-pool: row-pair max via one-hot row selection, then pixel-pair max
    # via one-hot lane selection (exact; no quadratic gather matrices).
    e1 = f_ue[1:H + 1, CU:CU + CE]
    vmax = jnp.maximum(
        jnp.dot(rsel_e[...], e1, preferred_element_type=f32),
        jnp.dot(rsel_o[...], e1, preferred_element_type=f32)).astype(bf16)
    h_p1[1:H2 + 1, :] = jnp.maximum(
        jnp.dot(vmax, lsel_e[...], preferred_element_type=f32),
        jnp.dot(vmax, lsel_o[...], preferred_element_type=f32)).astype(bf16)

    h_t2[1:H2 + 1, :] = band_conv(h_p1, H2, w_e2a, b_e2a, "relu").astype(bf16)
    h_e2[...] = band_conv(h_t2, H2, w_e2b, b_e2b, "relu").astype(bf16)

    # ---- decoder ------------------------------------------------------------
    # Nearest 2x upsample: row-expand then pixel(lane)-expand (one-hot, exact),
    # written into the u1 lanes of the shared [u1 | e1] buffer.
    up = jnp.dot(rexp[...], h_e2[...], preferred_element_type=f32).astype(bf16)
    f_ue[1:H + 1, 0:CU] = jnp.dot(up, lexp[...],
                                  preferred_element_type=f32).astype(bf16)

    # conv over concat(u1, e1): f_ue already holds [u1 | e1] lane-packed, so the
    # skip concat is a single merged band GEMM per dy (K = CU + CE).
    f_d1[1:H + 1, :] = band_conv(f_ue, H, w_d1a, b_d1a, "relu").astype(bf16)
    f_d2[1:H + 1, :] = band_conv(f_d1, H, w_d1b, b_d1b, "relu").astype(bf16)

    # ---- segmentation head + tanh: lane-dense (H, W*Cout) f32 store ---------
    o_ref[...] = band_conv(f_d2, H, w_hd, b_hd, "tanh")


# ----------------------------------------------------------------------------
# Host-side layout prep (band weights, selection constants); no compute here.
# ----------------------------------------------------------------------------
def _band_mats(w_oihw, width, cin_pad, cout_pad):
    """(Cout,Cin,3,3) conv weights -> (3, width*cin_pad, width*cout_pad) bf16
    block-tridiagonal band matrices (one per dy) for the lane-packed row GEMM."""
    co, ci, _, _ = w_oihw.shape
    w = jnp.pad(w_oihw.astype(jnp.float32),
                ((0, cout_pad - co), (0, cin_pad - ci), (0, 0), (0, 0)))
    taps = jnp.transpose(w, (2, 3, 1, 0))                # (3, 3, cin_p, cout_p)
    mats = []
    for t in range(3):                                   # dy = t - 1
        m = jnp.zeros((width * cin_pad, width * cout_pad), jnp.float32)
        for dx in (-1, 0, 1):
            # input pixel v = w + dx  ->  ones at (v, w), i.e. eye with k = -dx;
            # out-of-range pixels drop out, which encodes horizontal zero-pad.
            m = m + jnp.kron(jnp.eye(width, k=-dx, dtype=jnp.float32),
                             taps[t, dx + 1])
        mats.append(m)
    return jnp.stack(mats).astype(jnp.bfloat16)


def _band_bias(b, width, cout_pad):
    bp = jnp.pad(b.astype(jnp.float32), (0, cout_pad - b.shape[0]))
    return jnp.tile(bp, width).reshape(1, width * cout_pad)


def _pool_row_sel(h_img):
    i = jnp.arange(h_img // 2)[:, None]
    j = jnp.arange(h_img)[None, :]
    return ((j == 2 * i).astype(jnp.bfloat16),
            (j == 2 * i + 1).astype(jnp.bfloat16))


def _pool_lane_sel(w_img, c):
    w = jnp.arange(w_img)[:, None]
    w2 = jnp.arange(w_img // 2)[None, :]
    eye_c = jnp.eye(c, dtype=jnp.float32)
    pe = (w == 2 * w2).astype(jnp.float32)
    po = (w == 2 * w2 + 1).astype(jnp.float32)
    return (jnp.kron(pe, eye_c).astype(jnp.bfloat16),
            jnp.kron(po, eye_c).astype(jnp.bfloat16))


def _up_row_expand(h_img):
    h = jnp.arange(h_img)[:, None]
    h2 = jnp.arange(h_img // 2)[None, :]
    return (h2 == h // 2).astype(jnp.bfloat16)


def _up_lane_expand(w_img, c):
    w2 = jnp.arange(w_img // 2)[:, None]
    w = jnp.arange(w_img)[None, :]
    q = (w // 2 == w2).astype(jnp.float32)
    return jnp.kron(q, jnp.eye(c, dtype=jnp.float32)).astype(jnp.bfloat16)


def srunet_forward(params, x_nchw):
    B, cin, H, W = x_nchw.shape
    assert H % 2 == 0 and W % 2 == 0
    base = params["enc1a"][0].shape[0]
    oc = params["head"][0].shape[0]
    cp_in, cp_out = max(cin, 8), max(oc, 8)
    H2, W2 = H // 2, W // 2
    CU, CE = W * 2 * base, W * base          # u1 / e1 lane widths of f_ue

    # NCHW -> per-image lane-packed rows (B*H, W*cp_in), bf16 at the boundary.
    xr = jnp.transpose(x_nchw, (0, 2, 3, 1))
    xr = jnp.pad(xr, ((0, 0), (0, 0), (0, 0), (0, cp_in - cin)))
    x_packed = xr.reshape(B * H, W * cp_in).astype(jnp.bfloat16)

    w_e1a = _band_mats(params["enc1a"][0], W, cp_in, base)
    b_e1a = _band_bias(params["enc1a"][1], W, base)
    w_e1b = _band_mats(params["enc1b"][0], W, base, base)
    b_e1b = _band_bias(params["enc1b"][1], W, base)
    w_e2a = _band_mats(params["enc2a"][0], W2, base, 2 * base)
    b_e2a = _band_bias(params["enc2a"][1], W2, 2 * base)
    w_e2b = _band_mats(params["enc2b"][0], W2, 2 * base, 2 * base)
    b_e2b = _band_bias(params["enc2b"][1], W2, 2 * base)
    wd, bd = params["dec1a"]                               # input = [u1 | e1]
    w_d1a = jnp.concatenate(
        [_band_mats(wd[:, :2 * base], W, 2 * base, base),
         _band_mats(wd[:, 2 * base:], W, base, base)], axis=1)  # (3, CU+CE, CE)
    b_d1a = _band_bias(bd, W, base)
    w_d1b = _band_mats(params["dec1b"][0], W, base, base)
    b_d1b = _band_bias(params["dec1b"][1], W, base)
    w_hd = _band_mats(params["head"][0], W, base, cp_out)
    b_hd = _band_bias(params["head"][1], W, cp_out)

    rsel_e, rsel_o = _pool_row_sel(H)
    lsel_e, lsel_o = _pool_lane_sel(W, base)
    rexp = _up_row_expand(H)
    lexp = _up_lane_expand(W, 2 * base)

    operands = (x_packed,
                w_e1a, b_e1a, w_e1b, b_e1b,
                w_e2a, b_e2a, w_e2b, b_e2b,
                w_d1a, b_d1a, w_d1b, b_d1b,
                w_hd, b_hd,
                rsel_e, rsel_o, lsel_e, lsel_o, rexp, lexp)

    def bcast(a):                                          # same block every step
        nd = a.ndim
        return pl.BlockSpec(a.shape, lambda b, _nd=nd: (0,) * _nd)

    in_specs = ([pl.BlockSpec((H, W * cp_in), lambda b: (b, 0))]
                + [bcast(a) for a in operands[1:]])

    out = pl.pallas_call(
        functools.partial(_srunet_kernel, H=H, H2=H2, CU=CU, CE=CE),
        grid=(B,),
        out_shape=jax.ShapeDtypeStruct((B * H, W * cp_out), jnp.float32),
        in_specs=in_specs,
        out_specs=pl.BlockSpec((H, W * cp_out), lambda b: (b, 0)),
        scratch_shapes=[
            pltpu.VMEM((H + 2, W * cp_in), jnp.bfloat16),        # f_x
            pltpu.VMEM((H + 2, CE), jnp.bfloat16),               # f_t1
            pltpu.VMEM((H + 2, CU + CE), jnp.bfloat16),          # f_ue [u1|e1]
            pltpu.VMEM((H + 2, CE), jnp.bfloat16),               # f_d1
            pltpu.VMEM((H + 2, CE), jnp.bfloat16),               # f_d2
            pltpu.VMEM((H2 + 2, W2 * base), jnp.bfloat16),       # h_p1
            pltpu.VMEM((H2 + 2, W2 * 2 * base), jnp.bfloat16),   # h_t2
            pltpu.VMEM((H2, W2 * 2 * base), jnp.bfloat16),       # h_e2
        ],
        compiler_params=pltpu.CompilerParams(
            dimension_semantics=("parallel",),
            vmem_limit_bytes=32 * 1024 * 1024),
    )(*operands)

    y = out.reshape(B, H, W, cp_out)[..., :oc]
    return jnp.transpose(y, (0, 3, 1, 2))                  # NHWC -> NCHW


# ----------------------------------------------------------------------------
# Deterministic parameter init + pure-JAX reference (for a sanity check)
# ----------------------------------------------------------------------------
def _init_conv(key, cout, cin):
    k1, k2 = jax.random.split(key)
    fan_in = cin * 9
    w = jax.random.normal(k1, (cout, cin, 3, 3), jnp.float32) / jnp.sqrt(fan_in)
    b = 0.01 * jax.random.normal(k2, (cout,), jnp.float32)
    return w, b


def init_params(key, in_channels=1, out_channels=1, base=8):
    ks = jax.random.split(key, 7)
    return {
        "enc1a": _init_conv(ks[0], base, in_channels),
        "enc1b": _init_conv(ks[1], base, base),
        "enc2a": _init_conv(ks[2], 2 * base, base),
        "enc2b": _init_conv(ks[3], 2 * base, 2 * base),
        "dec1a": _init_conv(ks[4], base, 3 * base),   # concat(2*base, base)
        "dec1b": _init_conv(ks[5], base, base),
        "head":  _init_conv(ks[6], out_channels, base),
    }


def _ref_forward(params, x):
    def conv(z, w, b, act):
        y = lax.conv_general_dilated(z, w, (1, 1), "SAME",
                                     dimension_numbers=("NCHW", "OIHW", "NCHW"))
        y = y + b[None, :, None, None]
        if act == "relu":
            y = jnp.maximum(y, 0.0)
        elif act == "tanh":
            y = jnp.tanh(y)
        return y

    e1 = conv(x, *params["enc1a"], "relu")
    e1 = conv(e1, *params["enc1b"], "relu")
    p1 = lax.reduce_window(e1, -jnp.inf, lax.max, (1, 1, 2, 2), (1, 1, 2, 2),
                           "VALID")
    e2 = conv(p1, *params["enc2a"], "relu")
    e2 = conv(e2, *params["enc2b"], "relu")
    u1 = jnp.repeat(jnp.repeat(e2, 2, axis=2), 2, axis=3)
    d1 = jnp.concatenate([u1, e1], axis=1)
    d1 = conv(d1, *params["dec1a"], "relu")
    d1 = conv(d1, *params["dec1b"], "relu")
    return conv(d1, *params["head"], "tanh")


if __name__ == "__main__":
    key = jax.random.PRNGKey(0)
    pkey, xkey = jax.random.split(key)

    image_size, in_channels, out_channels = 16, 1, 1
    batch = 2

    params = init_params(pkey, in_channels, out_channels, base=8)
    x = jax.random.normal(xkey, (batch, in_channels, image_size, image_size),
                          jnp.float32)

    out = jax.jit(srunet_forward)(params, x)
    out = jax.block_until_ready(out)

    assert out.shape == (batch, out_channels, image_size, image_size)
    assert bool(jnp.all(jnp.abs(out) <= 1.0))             # tanh range check

    ref = _ref_forward(params, x)
    max_err = float(jnp.max(jnp.abs(out - ref)))
    assert max_err < 0.15, f"kernel/reference mismatch: {max_err}"

    print("KERNEL_OK")
</pallas_src>

<mosaic_0001>
module attributes {stable_mosaic.version = 11 : i64} {
  func.func @_srunet_kernel(%arg0: i32, %arg1: memref<16x128xbf16, #tpu.memory_space<vmem>>, %arg2: memref<3x128x128xbf16, #tpu.memory_space<vmem>>, %arg3: memref<1x128xf32, #tpu.memory_space<vmem>>, %arg4: memref<3x128x128xbf16, #tpu.memory_space<vmem>>, %arg5: memref<1x128xf32, #tpu.memory_space<vmem>>, %arg6: memref<3x64x128xbf16, #tpu.memory_space<vmem>>, %arg7: memref<1x128xf32, #tpu.memory_space<vmem>>, %arg8: memref<3x128x128xbf16, #tpu.memory_space<vmem>>, %arg9: memref<1x128xf32, #tpu.memory_space<vmem>>, %arg10: memref<3x384x128xbf16, #tpu.memory_space<vmem>>, %arg11: memref<1x128xf32, #tpu.memory_space<vmem>>, %arg12: memref<3x128x128xbf16, #tpu.memory_space<vmem>>, %arg13: memref<1x128xf32, #tpu.memory_space<vmem>>, %arg14: memref<3x128x128xbf16, #tpu.memory_space<vmem>>, %arg15: memref<1x128xf32, #tpu.memory_space<vmem>>, %arg16: memref<8x16xbf16, #tpu.memory_space<vmem>>, %arg17: memref<8x16xbf16, #tpu.memory_space<vmem>>, %arg18: memref<128x64xbf16, #tpu.memory_space<vmem>>, %arg19: memref<128x64xbf16, #tpu.memory_space<vmem>>, %arg20: memref<16x8xbf16, #tpu.memory_space<vmem>>, %arg21: memref<128x256xbf16, #tpu.memory_space<vmem>>, %arg22: memref<16x128xf32, #tpu.memory_space<vmem>>, %arg23: memref<18x128xbf16, #tpu.memory_space<vmem>>, %arg24: memref<18x128xbf16, #tpu.memory_space<vmem>>, %arg25: memref<18x384xbf16, #tpu.memory_space<vmem>>, %arg26: memref<18x128xbf16, #tpu.memory_space<vmem>>, %arg27: memref<18x128xbf16, #tpu.memory_space<vmem>>, %arg28: memref<10x64xbf16, #tpu.memory_space<vmem>>, %arg29: memref<10x128xbf16, #tpu.memory_space<vmem>>, %arg30: memref<8x128xbf16, #tpu.memory_space<vmem>>) attributes {dimension_semantics = [#tpu.dimension_semantics<parallel>], iteration_bounds = array<i64: 2>, scalar_prefetch = 0 : i64, scratch_operands = 8 : i64, tpu.core_type = #tpu.core_type<tc>, window_params = [{transform_indices = @transform_0, window_bounds = array<i64: 16, 128>}, {pipeline_mode = #tpu.pipeline_mode<synchronous>, transform_indices = @transform_1, window_bounds = array<i64: 3, 128, 128>}, {pipeline_mode = #tpu.pipeline_mode<synchronous>, transform_indices = @transform_2, window_bounds = array<i64: 1, 128>}, {pipeline_mode = #tpu.pipeline_mode<synchronous>, transform_indices = @transform_3, window_bounds = array<i64: 3, 128, 128>}, {pipeline_mode = #tpu.pipeline_mode<synchronous>, transform_indices = @transform_4, window_bounds = array<i64: 1, 128>}, {pipeline_mode = #tpu.pipeline_mode<synchronous>, transform_indices = @transform_5, window_bounds = array<i64: 3, 64, 128>}, {pipeline_mode = #tpu.pipeline_mode<synchronous>, transform_indices = @transform_6, window_bounds = array<i64: 1, 128>}, {pipeline_mode = #tpu.pipeline_mode<synchronous>, transform_indices = @transform_7, window_bounds = array<i64: 3, 128, 128>}, {pipeline_mode = #tpu.pipeline_mode<synchronous>, transform_indices = @transform_8, window_bounds = array<i64: 1, 128>}, {pipeline_mode = #tpu.pipeline_mode<synchronous>, transform_indices = @transform_9, window_bounds = array<i64: 3, 384, 128>}, {pipeline_mode = #tpu.pipeline_mode<synchronous>, transform_indices = @transform_10, window_bounds = array<i64: 1, 128>}, {pipeline_mode = #tpu.pipeline_mode<synchronous>, transform_indices = @transform_11, window_bounds = array<i64: 3, 128, 128>}, {pipeline_mode = #tpu.pipeline_mode<synchronous>, transform_indices = @transform_12, window_bounds = array<i64: 1, 128>}, {pipeline_mode = #tpu.pipeline_mode<synchronous>, transform_indices = @transform_13, window_bounds = array<i64: 3, 128, 128>}, {pipeline_mode = #tpu.pipeline_mode<synchronous>, transform_indices = @transform_14, window_bounds = array<i64: 1, 128>}, {pipeline_mode = #tpu.pipeline_mode<synchronous>, transform_indices = @transform_15, window_bounds = array<i64: 8, 16>}, {pipeline_mode = #tpu.pipeline_mode<synchronous>, transform_indices = @transform_16, window_bounds = array<i64: 8, 16>}, {pipeline_mode = #tpu.pipeline_mode<synchronous>, transform_indices = @transform_17, window_bounds = array<i64: 128, 64>}, {pipeline_mode = #tpu.pipeline_mode<synchronous>, transform_indices = @transform_18, window_bounds = array<i64: 128, 64>}, {pipeline_mode = #tpu.pipeline_mode<synchronous>, transform_indices = @transform_19, window_bounds = array<i64: 16, 8>}, {pipeline_mode = #tpu.pipeline_mode<synchronous>, transform_indices = @transform_20, window_bounds = array<i64: 128, 256>}, {transform_indices = @transform_21, window_bounds = array<i64: 16, 128>}]} {
    %cst = arith.constant 0.000000e+00 : bf16
    %0 = vector.broadcast %cst : bf16 to vector<1x128xbf16>
    %c0 = arith.constant 0 : index
    %c0_0 = arith.constant 0 : index
    %1 = vector.load %arg23[%c0, %c0_0] : memref<18x128xbf16, #tpu.memory_space<vmem>>, vector<1x128xbf16>
    tpu.vector_store %arg23[%c0, %c0_0], %0 {strides = array<i32>} : memref<18x128xbf16, #tpu.memory_space<vmem>>, vector<1x128xbf16>,
    %c17 = arith.constant 17 : index
    %c0_1 = arith.constant 0 : index
    %2 = vector.load %arg23[%c17, %c0_1] : memref<18x128xbf16, #tpu.memory_space<vmem>>, vector<1x128xbf16>
    tpu.vector_store %arg23[%c17, %c0_1], %0 {strides = array<i32>} : memref<18x128xbf16, #tpu.memory_space<vmem>>, vector<1x128xbf16>,
    %cst_2 = arith.constant 0.000000e+00 : bf16
    %3 = vector.broadcast %cst_2 : bf16 to vector<1x128xbf16>
    %c0_3 = arith.constant 0 : index
    %c0_4 = arith.constant 0 : index
    %4 = vector.load %arg24[%c0_3, %c0_4] : memref<18x128xbf16, #tpu.memory_space<vmem>>, vector<1x128xbf16>
    tpu.vector_store %arg24[%c0_3, %c0_4], %3 {strides = array<i32>} : memref<18x128xbf16, #tpu.memory_space<vmem>>, vector<1x128xbf16>,
    %c17_5 = arith.constant 17 : index
    %c0_6 = arith.constant 0 : index
    %5 = vector.load %arg24[%c17_5, %c0_6] : memref<18x128xbf16, #tpu.memory_space<vmem>>, vector<1x128xbf16>
    tpu.vector_store %arg24[%c17_5, %c0_6], %3 {strides = array<i32>} : memref<18x128xbf16, #tpu.memory_space<vmem>>, vector<1x128xbf16>,
    %cst_7 = arith.constant 0.000000e+00 : bf16
    %6 = vector.broadcast %cst_7 : bf16 to vector<1x384xbf16>
    %c0_8 = arith.constant 0 : index
    %c0_9 = arith.constant 0 : index
    %7 = vector.load %arg25[%c0_8, %c0_9] : memref<18x384xbf16, #tpu.memory_space<vmem>>, vector<1x384xbf16>
    tpu.vector_store %arg25[%c0_8, %c0_9], %6 {strides = array<i32>} : memref<18x384xbf16, #tpu.memory_space<vmem>>, vector<1x384xbf16>,
    %c17_10 = arith.constant 17 : index
    %c0_11 = arith.constant 0 : index
    %8 = vector.load %arg25[%c17_10, %c0_11] : memref<18x384xbf16, #tpu.memory_space<vmem>>, vector<1x384xbf16>
    tpu.vector_store %arg25[%c17_10, %c0_11], %6 {strides = array<i32>} : memref<18x384xbf16, #tpu.memory_space<vmem>>, vector<1x384xbf16>,
    %cst_12 = arith.constant 0.000000e+00 : bf16
    %9 = vector.broadcast %cst_12 : bf16 to vector<1x128xbf16>
    %c0_13 = arith.constant 0 : index
    %c0_14 = arith.constant 0 : index
    %10 = vector.load %arg26[%c0_13, %c0_14] : memref<18x128xbf16, #tpu.memory_space<vmem>>, vector<1x128xbf16>
    tpu.vector_store %arg26[%c0_13, %c0_14], %9 {strides = array<i32>} : memref<18x128xbf16, #tpu.memory_space<vmem>>, vector<1x128xbf16>,
    %c17_15 = arith.constant 17 : index
    %c0_16 = arith.constant 0 : index
    %11 = vector.load %arg26[%c17_15, %c0_16] : memref<18x128xbf16, #tpu.memory_space<vmem>>, vector<1x128xbf16>
    tpu.vector_store %arg26[%c17_15, %c0_16], %9 {strides = array<i32>} : memref<18x128xbf16, #tpu.memory_space<vmem>>, vector<1x128xbf16>,
    %cst_17 = arith.constant 0.000000e+00 : bf16
    %12 = vector.broadcast %cst_17 : bf16 to vector<1x128xbf16>
    %c0_18 = arith.constant 0 : index
    %c0_19 = arith.constant 0 : index
    %13 = vector.load %arg27[%c0_18, %c0_19] : memref<18x128xbf16, #tpu.memory_space<vmem>>, vector<1x128xbf16>
    tpu.vector_store %arg27[%c0_18, %c0_19], %12 {strides = array<i32>} : memref<18x128xbf16, #tpu.memory_space<vmem>>, vector<1x128xbf16>,
    %c17_20 = arith.constant 17 : index
    %c0_21 = arith.constant 0 : index
    %14 = vector.load %arg27[%c17_20, %c0_21] : memref<18x128xbf16, #tpu.memory_space<vmem>>, vector<1x128xbf16>
    tpu.vector_store %arg27[%c17_20, %c0_21], %12 {strides = array<i32>} : memref<18x128xbf16, #tpu.memory_space<vmem>>, vector<1x128xbf16>,
    %cst_22 = arith.constant 0.000000e+00 : bf16
    %15 = vector.broadcast %cst_22 : bf16 to vector<1x64xbf16>
    %c0_23 = arith.constant 0 : index
    %c0_24 = arith.constant 0 : index
    %16 = vector.load %arg28[%c0_23, %c0_24] : memref<10x64xbf16, #tpu.memory_space<vmem>>, vector<1x64xbf16>
    tpu.vector_store %arg28[%c0_23, %c0_24], %15 {strides = array<i32>} : memref<10x64xbf16, #tpu.memory_space<vmem>>, vector<1x64xbf16>,
    %c9 = arith.constant 9 : index
    %c0_25 = arith.constant 0 : index
    %17 = vector.load %arg28[%c9, %c0_25] : memref<10x64xbf16, #tpu.memory_space<vmem>>, vector<1x64xbf16>
    tpu.vector_store %arg28[%c9, %c0_25], %15 {strides = array<i32>} : memref<10x64xbf16, #tpu.memory_space<vmem>>, vector<1x64xbf16>,
    %cst_26 = arith.constant 0.000000e+00 : bf16
    %18 = vector.broadcast %cst_26 : bf16 to vector<1x128xbf16>
    %c0_27 = arith.constant 0 : index
    %c0_28 = arith.constant 0 : index
    %19 = vector.load %arg29[%c0_27, %c0_28] : memref<10x128xbf16, #tpu.memory_space<vmem>>, vector<1x128xbf16>
    tpu.vector_store %arg29[%c0_27, %c0_28], %18 {strides = array<i32>} : memref<10x128xbf16, #tpu.memory_space<vmem>>, vector<1x128xbf16>,
    %c9_29 = arith.constant 9 : index
    %c0_30 = arith.constant 0 : index
    %20 = vector.load %arg29[%c9_29, %c0_30] : memref<10x128xbf16, #tpu.memory_space<vmem>>, vector<1x128xbf16>
    tpu.vector_store %arg29[%c9_29, %c0_30], %18 {strides = array<i32>} : memref<10x128xbf16, #tpu.memory_space<vmem>>, vector<1x128xbf16>,
    %c0_31 = arith.constant 0 : index
    %c0_32 = arith.constant 0 : index
    %21 = vector.load %arg1[%c0_31, %c0_32] : memref<16x128xbf16, #tpu.memory_space<vmem>>, vector<16x128xbf16>
    %c1 = arith.constant 1 : index
    %c0_33 = arith.constant 0 : index
    %22 = vector.load %arg23[%c1, %c0_33] : memref<18x128xbf16, #tpu.memory_space<vmem>>, vector<16x128xbf16>
    tpu.vector_store %arg23[%c1, %c0_33], %21 {strides = array<i32>} : memref<18x128xbf16, #tpu.memory_space<vmem>>, vector<16x128xbf16>,
    %cst_34 = arith.constant 0.000000e+00 : f32
    %23 = vector.broadcast %cst_34 : f32 to vector<16x128xf32>
    %c0_35 = arith.constant 0 : index
    %c0_36 = arith.constant 0 : index
    %24 = vector.load %arg23[%c0_35, %c0_36] : memref<18x128xbf16, #tpu.memory_space<vmem>>, vector<16x128xbf16>
    %c0_37 = arith.constant 0 : index
    %c0_38 = arith.constant 0 : index
    %c0_39 = arith.constant 0 : index
    %25 = vector.load %arg2[%c0_37, %c0_38, %c0_39] : memref<3x128x128xbf16, #tpu.memory_space<vmem>>, vector<1x128x128xbf16>
    %26 = vector.shape_cast %25 : vector<1x128x128xbf16> to vector<128x128xbf16>
    %cst_40 = arith.constant dense<0.000000e+00> : vector<16x128xf32>
    %27 = tpu.matmul %24, %26, %cst_40 {dimension_numbers = #tpu.dot_dimension_numbers<[1], [0], [0], [1], [0, 0, 1, 1], [], []>} : vector<16x128xbf16>, vector<128x128xbf16>, vector<16x128xf32> -> vector<16x128xf32>
    %28 = arith.addf %23, %27 : vector<16x128xf32>
    %c1_41 = arith.constant 1 : index
    %c0_42 = arith.constant 0 : index
    %29 = vector.load %arg23[%c1_41, %c0_42] : memref<18x128xbf16, #tpu.memory_space<vmem>>, vector<16x128xbf16>
    %c1_43 = arith.constant 1 : index
    %c0_44 = arith.constant 0 : index
    %c0_45 = arith.constant 0 : index
    %30 = vector.load %arg2[%c1_43, %c0_44, %c0_45] : memref<3x128x128xbf16, #tpu.memory_space<vmem>>, vector<1x128x128xbf16>
    %31 = vector.shape_cast %30 : vector<1x128x128xbf16> to vector<128x128xbf16>
    %cst_46 = arith.constant dense<0.000000e+00> : vector<16x128xf32>
    %32 = tpu.matmul %29, %31, %cst_46 {dimension_numbers = #tpu.dot_dimension_numbers<[1], [0], [0], [1], [0, 0, 1, 1], [], []>} : vector<16x128xbf16>, vector<128x128xbf16>, vector<16x128xf32> -> vector<16x128xf32>
    %33 = arith.addf %28, %32 : vector<16x128xf32>
    %c2 = arith.constant 2 : index
    %c0_47 = arith.constant 0 : index
    %34 = vector.load %arg23[%c2, %c0_47] : memref<18x128xbf16, #tpu.memory_space<vmem>>, vector<16x128xbf16>
    %c2_48 = arith.constant 2 : index
    %c0_49 = arith.constant 0 : index
    %c0_50 = arith.constant 0 : index
    %35 = vector.load %arg2[%c2_48, %c0_49, %c0_50] : memref<3x128x128xbf16, #tpu.memory_space<vmem>>, vector<1x128x128xbf16>
    %36 = vector.shape_cast %35 : vector<1x128x128xbf16> to vector<128x128xbf16>
    %cst_51 = arith.constant dense<0.000000e+00> : vector<16x128xf32>
    %37 = tpu.matmul %34, %36, %cst_51 {dimension_numbers = #tpu.dot_dimension_numbers<[1], [0], [0], [1], [0, 0, 1, 1], [], []>} : vector<16x128xbf16>, vector<128x128xbf16>, vector<16x128xf32> -> vector<16x128xf32>
    %38 = arith.addf %33, %37 : vector<16x128xf32>
    %c0_52 = arith.constant 0 : index
    %c0_53 = arith.constant 0 : index
    %39 = vector.load %arg3[%c0_52, %c0_53] : memref<1x128xf32, #tpu.memory_space<vmem>>, vector<1x128xf32>
    %40 = vector.broadcast %39 : vector<1x128xf32> to vector<16x128xf32>
    %41 = arith.addf %38, %40 : vector<16x128xf32>
    %cst_54 = arith.constant 0.000000e+00 : f32
    %42 = vector.broadcast %cst_54 : f32 to vector<16x128xf32>
    %43 = arith.maximumf %41, %42 : vector<16x128xf32>
    %44 = arith.truncf %43 : vector<16x128xf32> to vector<16x128xbf16>
    %c1_55 = arith.constant 1 : index
    %c0_56 = arith.constant 0 : index
    %45 = vector.load %arg24[%c1_55, %c0_56] : memref<18x128xbf16, #tpu.memory_space<vmem>>, vector<16x128xbf16>
    tpu.vector_store %arg24[%c1_55, %c0_56], %44 {strides = array<i32>} : memref<18x128xbf16, #tpu.memory_space<vmem>>, vector<16x128xbf16>,
    %cst_57 = arith.constant 0.000000e+00 : f32
    %46 = vector.broadcast %cst_57 : f32 to vector<16x128xf32>
    %c0_58 = arith.constant 0 : index
    %c0_59 = arith.constant 0 : index
    %47 = vector.load %arg24[%c0_58, %c0_59] : memref<18x128xbf16, #tpu.memory_space<vmem>>, vector<16x128xbf16>
    %c0_60 = arith.constant 0 : index
    %c0_61 = arith.constant 0 : index
    %c0_62 = arith.constant 0 : index
    %48 = vector.load %arg4[%c0_60, %c0_61, %c0_62] : memref<3x128x128xbf16, #tpu.memory_space<vmem>>, vector<1x128x128xbf16>
    %49 = vector.shape_cast %48 : vector<1x128x128xbf16> to vector<128x128xbf16>
    %cst_63 = arith.constant dense<0.000000e+00> : vector<16x128xf32>
    %50 = tpu.matmul %47, %49, %cst_63 {dimension_numbers = #tpu.dot_dimension_numbers<[1], [0], [0], [1], [0, 0, 1, 1], [], []>} : vector<16x128xbf16>, vector<128x128xbf16>, vector<16x128xf32> -> vector<16x128xf32>
    %51 = arith.addf %46, %50 : vector<16x128xf32>
    %c1_64 = arith.constant 1 : index
    %c0_65 = arith.constant 0 : index
    %52 = vector.load %arg24[%c1_64, %c0_65] : memref<18x128xbf16, #tpu.memory_space<vmem>>, vector<16x128xbf16>
    %c1_66 = arith.constant 1 : index
    %c0_67 = arith.constant 0 : index
    %c0_68 = arith.constant 0 : index
    %53 = vector.load %arg4[%c1_66, %c0_67, %c0_68] : memref<3x128x128xbf16, #tpu.memory_space<vmem>>, vector<1x128x128xbf16>
    %54 = vector.shape_cast %53 : vector<1x128x128xbf16> to vector<128x128xbf16>
    %cst_69 = arith.constant dense<0.000000e+00> : vector<16x128xf32>
    %55 = tpu.matmul %52, %54, %cst_69 {dimension_numbers = #tpu.dot_dimension_numbers<[1], [0], [0], [1], [0, 0, 1, 1], [], []>} : vector<16x128xbf16>, vector<128x128xbf16>, vector<16x128xf32> -> vector<16x128xf32>
    %56 = arith.addf %51, %55 : vector<16x128xf32>
    %c2_70 = arith.constant 2 : index
    %c0_71 = arith.constant 0 : index
    %57 = vector.load %arg24[%c2_70, %c0_71] : memref<18x128xbf16, #tpu.memory_space<vmem>>, vector<16x128xbf16>
    %c2_72 = arith.constant 2 : index
    %c0_73 = arith.constant 0 : index
    %c0_74 = arith.constant 0 : index
    %58 = vector.load %arg4[%c2_72, %c0_73, %c0_74] : memref<3x128x128xbf16, #tpu.memory_space<vmem>>, vector<1x128x128xbf16>
    %59 = vector.shape_cast %58 : vector<1x128x128xbf16> to vector<128x128xbf16>
    %cst_75 = arith.constant dense<0.000000e+00> : vector<16x128xf32>
    %60 = tpu.matmul %57, %59, %cst_75 {dimension_numbers = #tpu.dot_dimension_numbers<[1], [0], [0], [1], [0, 0, 1, 1], [], []>} : vector<16x128xbf16>, vector<128x128xbf16>, vector<16x128xf32> -> vector<16x128xf32>
    %61 = arith.addf %56, %60 : vector<16x128xf32>
    %c0_76 = arith.constant 0 : index
    %c0_77 = arith.constant 0 : index
    %62 = vector.load %arg5[%c0_76, %c0_77] : memref<1x128xf32, #tpu.memory_space<vmem>>, vector<1x128xf32>
    %63 = vector.broadcast %62 : vector<1x128xf32> to vector<16x128xf32>
    %64 = arith.addf %61, %63 : vector<16x128xf32>
    %cst_78 = arith.constant 0.000000e+00 : f32
    %65 = vector.broadcast %cst_78 : f32 to vector<16x128xf32>
    %66 = arith.maximumf %64, %65 : vector<16x128xf32>
    %67 = arith.truncf %66 : vector<16x128xf32> to vector<16x128xbf16>
    %c1_79 = arith.constant 1 : index
    %c256 = arith.constant 256 : index
    %68 = vector.load %arg25[%c1_79, %c256] : memref<18x384xbf16, #tpu.memory_space<vmem>>, vector<16x128xbf16>
    tpu.vector_store %arg25[%c1_79, %c256], %67 {strides = array<i32>} : memref<18x384xbf16, #tpu.memory_space<vmem>>, vector<16x128xbf16>,
    %c1_80 = arith.constant 1 : index
    %c256_81 = arith.constant 256 : index
    %69 = vector.load %arg25[%c1_80, %c256_81] : memref<18x384xbf16, #tpu.memory_space<vmem>>, vector<16x128xbf16>
    %c0_82 = arith.constant 0 : index
    %c0_83 = arith.constant 0 : index
    %70 = vector.load %arg16[%c0_82, %c0_83] : memref<8x16xbf16, #tpu.memory_space<vmem>>, vector<8x16xbf16>
    %cst_84 = arith.constant dense<0.000000e+00> : vector<8x128xf32>
    %71 = tpu.matmul %70, %69, %cst_84 {dimension_numbers = #tpu.dot_dimension_numbers<[1], [0], [0], [1], [0, 0, 1, 1], [], []>} : vector<8x16xbf16>, vector<16x128xbf16>, vector<8x128xf32> -> vector<8x128xf32>
    %c0_85 = arith.constant 0 : index
    %c0_86 = arith.constant 0 : index
    %72 = vector.load %arg17[%c0_85, %c0_86] : memref<8x16xbf16, #tpu.memory_space<vmem>>, vector<8x16xbf16>
    %cst_87 = arith.constant dense<0.000000e+00> : vector<8x128xf32>
    %73 = tpu.matmul %72, %69, %cst_87 {dimension_numbers = #tpu.dot_dimension_numbers<[1], [0], [0], [1], [0, 0, 1, 1], [], []>} : vector<8x16xbf16>, vector<16x128xbf16>, vector<8x128xf32> -> vector<8x128xf32>
    %74 = arith.maximumf %71, %73 : vector<8x128xf32>
    %75 = arith.truncf %74 : vector<8x128xf32> to vector<8x128xbf16>
    %c0_88 = arith.constant 0 : index
    %c0_89 = arith.constant 0 : index
    %76 = vector.load %arg18[%c0_88, %c0_89] : memref<128x64xbf16, #tpu.memory_space<vmem>>, vector<128x64xbf16>
    %cst_90 = arith.constant dense<0.000000e+00> : vector<8x64xf32>
    %77 = tpu.matmul %75, %76, %cst_90 {dimension_numbers = #tpu.dot_dimension_numbers<[1], [0], [0], [1], [0, 0, 1, 1], [], []>} : vector<8x128xbf16>, vector<128x64xbf16>, vector<8x64xf32> -> vector<8x64xf32>
    %c0_91 = arith.constant 0 : index
    %c0_92 = arith.constant 0 : index
    %78 = vector.load %arg19[%c0_91, %c0_92] : memref<128x64xbf16, #tpu.memory_space<vmem>>, vector<128x64xbf16>
    %cst_93 = arith.constant dense<0.000000e+00> : vector<8x64xf32>
    %79 = tpu.matmul %75, %78, %cst_93 {dimension_numbers = #tpu.dot_dimension_numbers<[1], [0], [0], [1], [0, 0, 1, 1], [], []>} : vector<8x128xbf16>, vector<128x64xbf16>, vector<8x64xf32> -> vector<8x64xf32>
    %80 = arith.maximumf %77, %79 : vector<8x64xf32>
    %81 = arith.truncf %80 : vector<8x64xf32> to vector<8x64xbf16>
    %c1_94 = arith.constant 1 : index
    %c0_95 = arith.constant 0 : index
    %82 = vector.load %arg28[%c1_94, %c0_95] : memref<10x64xbf16, #tpu.memory_space<vmem>>, vector<8x64xbf16>
    tpu.vector_store %arg28[%c1_94, %c0_95], %81 {strides = array<i32>} : memref<10x64xbf16, #tpu.memory_space<vmem>>, vector<8x64xbf16>,
    %cst_96 = arith.constant 0.000000e+00 : f32
    %83 = vector.broadcast %cst_96 : f32 to vector<8x128xf32>
    %c0_97 = arith.constant 0 : index
    %c0_98 = arith.constant 0 : index
    %84 = vector.load %arg28[%c0_97, %c0_98] : memref<10x64xbf16, #tpu.memory_space<vmem>>, vector<8x64xbf16>
    %c0_99 = arith.constant 0 : index
    %c0_100 = arith.constant 0 : index
    %c0_101 = arith.constant 0 : index
    %85 = vector.load %arg6[%c0_99, %c0_100, %c0_101] : memref<3x64x128xbf16, #tpu.memory_space<vmem>>, vector<1x64x128xbf16>
    %86 = vector.shape_cast %85 : vector<1x64x128xbf16> to vector<64x128xbf16>
    %cst_102 = arith.constant dense<0.000000e+00> : vector<8x128xf32>
    %87 = tpu.matmul %84, %86, %cst_102 {dimension_numbers = #tpu.dot_dimension_numbers<[1], [0], [0], [1], [0, 0, 1, 1], [], []>} : vector<8x64xbf16>, vector<64x128xbf16>, vector<8x128xf32> -> vector<8x128xf32>
    %88 = arith.addf %83, %87 : vector<8x128xf32>
    %c1_103 = arith.constant 1 : index
    %c0_104 = arith.constant 0 : index
    %89 = vector.load %arg28[%c1_103, %c0_104] : memref<10x64xbf16, #tpu.memory_space<vmem>>, vector<8x64xbf16>
    %c1_105 = arith.constant 1 : index
    %c0_106 = arith.constant 0 : index
    %c0_107 = arith.constant 0 : index
    %90 = vector.load %arg6[%c1_105, %c0_106, %c0_107] : memref<3x64x128xbf16, #tpu.memory_space<vmem>>, vector<1x64x128xbf16>
    %91 = vector.shape_cast %90 : vector<1x64x128xbf16> to vector<64x128xbf16>
    %cst_108 = arith.constant dense<0.000000e+00> : vector<8x128xf32>
    %92 = tpu.matmul %89, %91, %cst_108 {dimension_numbers = #tpu.dot_dimension_numbers<[1], [0], [0], [1], [0, 0, 1, 1], [], []>} : vector<8x64xbf16>, vector<64x128xbf16>, vector<8x128xf32> -> vector<8x128xf32>
    %93 = arith.addf %88, %92 : vector<8x128xf32>
    %c2_109 = arith.constant 2 : index
    %c0_110 = arith.constant 0 : index
    %94 = vector.load %arg28[%c2_109, %c0_110] : memref<10x64xbf16, #tpu.memory_space<vmem>>, vector<8x64xbf16>
    %c2_111 = arith.constant 2 : index
    %c0_112 = arith.constant 0 : index
    %c0_113 = arith.constant 0 : index
    %95 = vector.load %arg6[%c2_111, %c0_112, %c0_113] : memref<3x64x128xbf16, #tpu.memory_space<vmem>>, vector<1x64x128xbf16>
    %96 = vector.shape_cast %95 : vector<1x64x128xbf16> to vector<64x128xbf16>
    %cst_114 = arith.constant dense<0.000000e+00> : vector<8x128xf32>
    %97 = tpu.matmul %94, %96, %cst_114 {dimension_numbers = #tpu.dot_dimension_numbers<[1], [0], [0], [1], [0, 0, 1, 1], [], []>} : vector<8x64xbf16>, vector<64x128xbf16>, vector<8x128xf32> -> vector<8x128xf32>
    %98 = arith.addf %93, %97 : vector<8x128xf32>
    %c0_115 = arith.constant 0 : index
    %c0_116 = arith.constant 0 : index
    %99 = vector.load %arg7[%c0_115, %c0_116] : memref<1x128xf32, #tpu.memory_space<vmem>>, vector<1x128xf32>
    %100 = vector.broadcast %99 : vector<1x128xf32> to vector<8x128xf32>
    %101 = arith.addf %98, %100 : vector<8x128xf32>
    %cst_117 = arith.constant 0.000000e+00 : f32
    %102 = vector.broadcast %cst_117 : f32 to vector<8x128xf32>
    %103 = arith.maximumf %101, %102 : vector<8x128xf32>
    %104 = arith.truncf %103 : vector<8x128xf32> to vector<8x128xbf16>
    %c1_118 = arith.constant 1 : index
    %c0_119 = arith.constant 0 : index
    %105 = vector.load %arg29[%c1_118, %c0_119] : memref<10x128xbf16, #tpu.memory_space<vmem>>, vector<8x128xbf16>
    tpu.vector_store %arg29[%c1_118, %c0_119], %104 {strides = array<i32>} : memref<10x128xbf16, #tpu.memory_space<vmem>>, vector<8x128xbf16>,
    %cst_120 = arith.constant 0.000000e+00 : f32
    %106 = vector.broadcast %cst_120 : f32 to vector<8x128xf32>
    %c0_121 = arith.constant 0 : index
    %c0_122 = arith.constant 0 : index
    %107 = vector.load %arg29[%c0_121, %c0_122] : memref<10x128xbf16, #tpu.memory_space<vmem>>, vector<8x128xbf16>
    %c0_123 = arith.constant 0 : index
    %c0_124 = arith.constant 0 : index
    %c0_125 = arith.constant 0 : index
    %108 = vector.load %arg8[%c0_123, %c0_124, %c0_125] : memref<3x128x128xbf16, #tpu.memory_space<vmem>>, vector<1x128x128xbf16>
    %109 = vector.shape_cast %108 : vector<1x128x128xbf16> to vector<128x128xbf16>
    %cst_126 = arith.constant dense<0.000000e+00> : vector<8x128xf32>
    %110 = tpu.matmul %107, %109, %cst_126 {dimension_numbers = #tpu.dot_dimension_numbers<[1], [0], [0], [1], [0, 0, 1, 1], [], []>} : vector<8x128xbf16>, vector<128x128xbf16>, vector<8x128xf32> -> vector<8x128xf32>
    %111 = arith.addf %106, %110 : vector<8x128xf32>
    %c1_127 = arith.constant 1 : index
    %c0_128 = arith.constant 0 : index
    %112 = vector.load %arg29[%c1_127, %c0_128] : memref<10x128xbf16, #tpu.memory_space<vmem>>, vector<8x128xbf16>
    %c1_129 = arith.constant 1 : index
    %c0_130 = arith.constant 0 : index
    %c0_131 = arith.constant 0 : index
    %113 = vector.load %arg8[%c1_129, %c0_130, %c0_131] : memref<3x128x128xbf16, #tpu.memory_space<vmem>>, vector<1x128x128xbf16>
    %114 = vector.shape_cast %113 : vector<1x128x128xbf16> to vector<128x128xbf16>
    %cst_132 = arith.constant dense<0.000000e+00> : vector<8x128xf32>
    %115 = tpu.matmul %112, %114, %cst_132 {dimension_numbers = #tpu.dot_dimension_numbers<[1], [0], [0], [1], [0, 0, 1, 1], [], []>} : vector<8x128xbf16>, vector<128x128xbf16>, vector<8x128xf32> -> vector<8x128xf32>
    %116 = arith.addf %111, %115 : vector<8x128xf32>
    %c2_133 = arith.constant 2 : index
    %c0_134 = arith.constant 0 : index
    %117 = vector.load %arg29[%c2_133, %c0_134] : memref<10x128xbf16, #tpu.memory_space<vmem>>, vector<8x128xbf16>
    %c2_135 = arith.constant 2 : index
    %c0_136 = arith.constant 0 : index
    %c0_137 = arith.constant 0 : index
    %118 = vector.load %arg8[%c2_135, %c0_136, %c0_137] : memref<3x128x128xbf16, #tpu.memory_space<vmem>>, vector<1x128x128xbf16>
    %119 = vector.shape_cast %118 : vector<1x128x128xbf16> to vector<128x128xbf16>
    %cst_138 = arith.constant dense<0.000000e+00> : vector<8x128xf32>
    %120 = tpu.matmul %117, %119, %cst_138 {dimension_numbers = #tpu.dot_dimension_numbers<[1], [0], [0], [1], [0, 0, 1, 1], [], []>} : vector<8x128xbf16>, vector<128x128xbf16>, vector<8x128xf32> -> vector<8x128xf32>
    %121 = arith.addf %116, %120 : vector<8x128xf32>
    %c0_139 = arith.constant 0 : index
    %c0_140 = arith.constant 0 : index
    %122 = vector.load %arg9[%c0_139, %c0_140] : memref<1x128xf32, #tpu.memory_space<vmem>>, vector<1x128xf32>
    %123 = vector.broadcast %122 : vector<1x128xf32> to vector<8x128xf32>
    %124 = arith.addf %121, %123 : vector<8x128xf32>
    %cst_141 = arith.constant 0.000000e+00 : f32
    %125 = vector.broadcast %cst_141 : f32 to vector<8x128xf32>
    %126 = arith.maximumf %124, %125 : vector<8x128xf32>
    %127 = arith.truncf %126 : vector<8x128xf32> to vector<8x128xbf16>
    %c0_142 = arith.constant 0 : index
    %c0_143 = arith.constant 0 : index
    %128 = vector.load %arg30[%c0_142, %c0_143] : memref<8x128xbf16, #tpu.memory_space<vmem>>, vector<8x128xbf16>
    tpu.vector_store %arg30[%c0_142, %c0_143], %127 {strides = array<i32>} : memref<8x128xbf16, #tpu.memory_space<vmem>>, vector<8x128xbf16>,
    %c0_144 = arith.constant 0 : index
    %c0_145 = arith.constant 0 : index
    %129 = vector.load %arg20[%c0_144, %c0_145] : memref<16x8xbf16, #tpu.memory_space<vmem>>, vector<16x8xbf16>
    %c0_146 = arith.constant 0 : index
    %c0_147 = arith.constant 0 : index
    %130 = vector.load %arg30[%c0_146, %c0_147] : memref<8x128xbf16, #tpu.memory_space<vmem>>, vector<8x128xbf16>
    %cst_148 = arith.constant dense<0.000000e+00> : vector<16x128xf32>
    %131 = tpu.matmul %129, %130, %cst_148 {dimension_numbers = #tpu.dot_dimension_numbers<[1], [0], [0], [1], [0, 0, 1, 1], [], []>} : vector<16x8xbf16>, vector<8x128xbf16>, vector<16x128xf32> -> vector<16x128xf32>
    %132 = arith.truncf %131 : vector<16x128xf32> to vector<16x128xbf16>
    %c0_149 = arith.constant 0 : index
    %c0_150 = arith.constant 0 : index
    %133 = vector.load %arg21[%c0_149, %c0_150] : memref<128x256xbf16, #tpu.memory_space<vmem>>, vector<128x256xbf16>
    %cst_151 = arith.constant dense<0.000000e+00> : vector<16x256xf32>
    %134 = tpu.matmul %132, %133, %cst_151 {dimension_numbers = #tpu.dot_dimension_numbers<[1], [0], [0], [1], [0, 0, 1, 1], [], []>} : vector<16x128xbf16>, vector<128x256xbf16>, vector<16x256xf32> -> vector<16x256xf32>
    %135 = arith.truncf %134 : vector<16x256xf32> to vector<16x256xbf16>
    %c1_152 = arith.constant 1 : index
    %c0_153 = arith.constant 0 : index
    %136 = vector.load %arg25[%c1_152, %c0_153] : memref<18x384xbf16, #tpu.memory_space<vmem>>, vector<16x256xbf16>
    tpu.vector_store %arg25[%c1_152, %c0_153], %135 {strides = array<i32>} : memref<18x384xbf16, #tpu.memory_space<vmem>>, vector<16x256xbf16>,
    %cst_154 = arith.constant 0.000000e+00 : f32
    %137 = vector.broadcast %cst_154 : f32 to vector<16x128xf32>
    %c0_155 = arith.constant 0 : index
    %c0_156 = arith.constant 0 : index
    %138 = vector.load %arg25[%c0_155, %c0_156] : memref<18x384xbf16, #tpu.memory_space<vmem>>, vector<16x384xbf16>
    %c0_157 = arith.constant 0 : index
    %c0_158 = arith.constant 0 : index
    %c0_159 = arith.constant 0 : index
    %139 = vector.load %arg10[%c0_157, %c0_158, %c0_159] : memref<3x384x128xbf16, #tpu.memory_space<vmem>>, vector<1x384x128xbf16>
    %140 = vector.shape_cast %139 : vector<1x384x128xbf16> to vector<384x128xbf16>
    %cst_160 = arith.constant dense<0.000000e+00> : vector<16x128xf32>
    %141 = tpu.matmul %138, %140, %cst_160 {dimension_numbers = #tpu.dot_dimension_numbers<[1], [0], [0], [1], [0, 0, 1, 1], [], []>} : vector<16x384xbf16>, vector<384x128xbf16>, vector<16x128xf32> -> vector<16x128xf32>
    %142 = arith.addf %137, %141 : vector<16x128xf32>
    %c1_161 = arith.constant 1 : index
    %c0_162 = arith.constant 0 : index
    %143 = vector.load %arg25[%c1_161, %c0_162] : memref<18x384xbf16, #tpu.memory_space<vmem>>, vector<16x384xbf16>
    %c1_163 = arith.constant 1 : index
    %c0_164 = arith.constant 0 : index
    %c0_165 = arith.constant 0 : index
    %144 = vector.load %arg10[%c1_163, %c0_164, %c0_165] : memref<3x384x128xbf16, #tpu.memory_space<vmem>>, vector<1x384x128xbf16>
    %145 = vector.shape_cast %144 : vector<1x384x128xbf16> to vector<384x128xbf16>
    %cst_166 = arith.constant dense<0.000000e+00> : vector<16x128xf32>
    %146 = tpu.matmul %143, %145, %cst_166 {dimension_numbers = #tpu.dot_dimension_numbers<[1], [0], [0], [1], [0, 0, 1, 1], [], []>} : vector<16x384xbf16>, vector<384x128xbf16>, vector<16x128xf32> -> vector<16x128xf32>
    %147 = arith.addf %142, %146 : vector<16x128xf32>
    %c2_167 = arith.constant 2 : index
    %c0_168 = arith.constant 0 : index
    %148 = vector.load %arg25[%c2_167, %c0_168] : memref<18x384xbf16, #tpu.memory_space<vmem>>, vector<16x384xbf16>
    %c2_169 = arith.constant 2 : index
    %c0_170 = arith.constant 0 : index
    %c0_171 = arith.constant 0 : index
    %149 = vector.load %arg10[%c2_169, %c0_170, %c0_171] : memref<3x384x128xbf16, #tpu.memory_space<vmem>>, vector<1x384x128xbf16>
    %150 = vector.shape_cast %149 : vector<1x384x128xbf16> to vector<384x128xbf16>
    %cst_172 = arith.constant dense<0.000000e+00> : vector<16x128xf32>
    %151 = tpu.matmul %148, %150, %cst_172 {dimension_numbers = #tpu.dot_dimension_numbers<[1], [0], [0], [1], [0, 0, 1, 1], [], []>} : vector<16x384xbf16>, vector<384x128xbf16>, vector<16x128xf32> -> vector<16x128xf32>
    %152 = arith.addf %147, %151 : vector<16x128xf32>
    %c0_173 = arith.constant 0 : index
    %c0_174 = arith.constant 0 : index
    %153 = vector.load %arg11[%c0_173, %c0_174] : memref<1x128xf32, #tpu.memory_space<vmem>>, vector<1x128xf32>
    %154 = vector.broadcast %153 : vector<1x128xf32> to vector<16x128xf32>
    %155 = arith.addf %152, %154 : vector<16x128xf32>
    %cst_175 = arith.constant 0.000000e+00 : f32
    %156 = vector.broadcast %cst_175 : f32 to vector<16x128xf32>
    %157 = arith.maximumf %155, %156 : vector<16x128xf32>
    %158 = arith.truncf %157 : vector<16x128xf32> to vector<16x128xbf16>
    %c1_176 = arith.constant 1 : index
    %c0_177 = arith.constant 0 : index
    %159 = vector.load %arg26[%c1_176, %c0_177] : memref<18x128xbf16, #tpu.memory_space<vmem>>, vector<16x128xbf16>
    tpu.vector_store %arg26[%c1_176, %c0_177], %158 {strides = array<i32>} : memref<18x128xbf16, #tpu.memory_space<vmem>>, vector<16x128xbf16>,
    %cst_178 = arith.constant 0.000000e+00 : f32
    %160 = vector.broadcast %cst_178 : f32 to vector<16x128xf32>
    %c0_179 = arith.constant 0 : index
    %c0_180 = arith.constant 0 : index
    %161 = vector.load %arg26[%c0_179, %c0_180] : memref<18x128xbf16, #tpu.memory_space<vmem>>, vector<16x128xbf16>
    %c0_181 = arith.constant 0 : index
    %c0_182 = arith.constant 0 : index
    %c0_183 = arith.constant 0 : index
    %162 = vector.load %arg12[%c0_181, %c0_182, %c0_183] : memref<3x128x128xbf16, #tpu.memory_space<vmem>>, vector<1x128x128xbf16>
    %163 = vector.shape_cast %162 : vector<1x128x128xbf16> to vector<128x128xbf16>
    %cst_184 = arith.constant dense<0.000000e+00> : vector<16x128xf32>
    %164 = tpu.matmul %161, %163, %cst_184 {dimension_numbers = #tpu.dot_dimension_numbers<[1], [0], [0], [1], [0, 0, 1, 1], [], []>} : vector<16x128xbf16>, vector<128x128xbf16>, vector<16x128xf32> -> vector<16x128xf32>
    %165 = arith.addf %160, %164 : vector<16x128xf32>
    %c1_185 = arith.constant 1 : index
    %c0_186 = arith.constant 0 : index
    %166 = vector.load %arg26[%c1_185, %c0_186] : memref<18x128xbf16, #tpu.memory_space<vmem>>, vector<16x128xbf16>
    %c1_187 = arith.constant 1 : index
    %c0_188 = arith.constant 0 : index
    %c0_189 = arith.constant 0 : index
    %167 = vector.load %arg12[%c1_187, %c0_188, %c0_189] : memref<3x128x128xbf16, #tpu.memory_space<vmem>>, vector<1x128x128xbf16>
    %168 = vector.shape_cast %167 : vector<1x128x128xbf16> to vector<128x128xbf16>
    %cst_190 = arith.constant dense<0.000000e+00> : vector<16x128xf32>
    %169 = tpu.matmul %166, %168, %cst_190 {dimension_numbers = #tpu.dot_dimension_numbers<[1], [0], [0], [1], [0, 0, 1, 1], [], []>} : vector<16x128xbf16>, vector<128x128xbf16>, vector<16x128xf32> -> vector<16x128xf32>
    %170 = arith.addf %165, %169 : vector<16x128xf32>
    %c2_191 = arith.constant 2 : index
    %c0_192 = arith.constant 0 : index
    %171 = vector.load %arg26[%c2_191, %c0_192] : memref<18x128xbf16, #tpu.memory_space<vmem>>, vector<16x128xbf16>
    %c2_193 = arith.constant 2 : index
    %c0_194 = arith.constant 0 : index
    %c0_195 = arith.constant 0 : index
    %172 = vector.load %arg12[%c2_193, %c0_194, %c0_195] : memref<3x128x128xbf16, #tpu.memory_space<vmem>>, vector<1x128x128xbf16>
    %173 = vector.shape_cast %172 : vector<1x128x128xbf16> to vector<128x128xbf16>
    %cst_196 = arith.constant dense<0.000000e+00> : vector<16x128xf32>
    %174 = tpu.matmul %171, %173, %cst_196 {dimension_numbers = #tpu.dot_dimension_numbers<[1], [0], [0], [1], [0, 0, 1, 1], [], []>} : vector<16x128xbf16>, vector<128x128xbf16>, vector<16x128xf32> -> vector<16x128xf32>
    %175 = arith.addf %170, %174 : vector<16x128xf32>
    %c0_197 = arith.constant 0 : index
    %c0_198 = arith.constant 0 : index
    %176 = vector.load %arg13[%c0_197, %c0_198] : memref<1x128xf32, #tpu.memory_space<vmem>>, vector<1x128xf32>
    %177 = vector.broadcast %176 : vector<1x128xf32> to vector<16x128xf32>
    %178 = arith.addf %175, %177 : vector<16x128xf32>
    %cst_199 = arith.constant 0.000000e+00 : f32
    %179 = vector.broadcast %cst_199 : f32 to vector<16x128xf32>
    %180 = arith.maximumf %178, %179 : vector<16x128xf32>
    %181 = arith.truncf %180 : vector<16x128xf32> to vector<16x128xbf16>
    %c1_200 = arith.constant 1 : index
    %c0_201 = arith.constant 0 : index
    %182 = vector.load %arg27[%c1_200, %c0_201] : memref<18x128xbf16, #tpu.memory_space<vmem>>, vector<16x128xbf16>
    tpu.vector_store %arg27[%c1_200, %c0_201], %181 {strides = array<i32>} : memref<18x128xbf16, #tpu.memory_space<vmem>>, vector<16x128xbf16>,
    %cst_202 = arith.constant 0.000000e+00 : f32
    %183 = vector.broadcast %cst_202 : f32 to vector<16x128xf32>
    %c0_203 = arith.constant 0 : index
    %c0_204 = arith.constant 0 : index
    %184 = vector.load %arg27[%c0_203, %c0_204] : memref<18x128xbf16, #tpu.memory_space<vmem>>, vector<16x128xbf16>
    %c0_205 = arith.constant 0 : index
    %c0_206 = arith.constant 0 : index
    %c0_207 = arith.constant 0 : index
    %185 = vector.load %arg14[%c0_205, %c0_206, %c0_207] : memref<3x128x128xbf16, #tpu.memory_space<vmem>>, vector<1x128x128xbf16>
    %186 = vector.shape_cast %185 : vector<1x128x128xbf16> to vector<128x128xbf16>
    %cst_208 = arith.constant dense<0.000000e+00> : vector<16x128xf32>
    %187 = tpu.matmul %184, %186, %cst_208 {dimension_numbers = #tpu.dot_dimension_numbers<[1], [0], [0], [1], [0, 0, 1, 1], [], []>} : vector<16x128xbf16>, vector<128x128xbf16>, vector<16x128xf32> -> vector<16x128xf32>
    %188 = arith.addf %183, %187 : vector<16x128xf32>
    %c1_209 = arith.constant 1 : index
    %c0_210 = arith.constant 0 : index
    %189 = vector.load %arg27[%c1_209, %c0_210] : memref<18x128xbf16, #tpu.memory_space<vmem>>, vector<16x128xbf16>
    %c1_211 = arith.constant 1 : index
    %c0_212 = arith.constant 0 : index
    %c0_213 = arith.constant 0 : index
    %190 = vector.load %arg14[%c1_211, %c0_212, %c0_213] : memref<3x128x128xbf16, #tpu.memory_space<vmem>>, vector<1x128x128xbf16>
    %191 = vector.shape_cast %190 : vector<1x128x128xbf16> to vector<128x128xbf16>
    %cst_214 = arith.constant dense<0.000000e+00> : vector<16x128xf32>
    %192 = tpu.matmul %189, %191, %cst_214 {dimension_numbers = #tpu.dot_dimension_numbers<[1], [0], [0], [1], [0, 0, 1, 1], [], []>} : vector<16x128xbf16>, vector<128x128xbf16>, vector<16x128xf32> -> vector<16x128xf32>
    %193 = arith.addf %188, %192 : vector<16x128xf32>
    %c2_215 = arith.constant 2 : index
    %c0_216 = arith.constant 0 : index
    %194 = vector.load %arg27[%c2_215, %c0_216] : memref<18x128xbf16, #tpu.memory_space<vmem>>, vector<16x128xbf16>
    %c2_217 = arith.constant 2 : index
    %c0_218 = arith.constant 0 : index
    %c0_219 = arith.constant 0 : index
    %195 = vector.load %arg14[%c2_217, %c0_218, %c0_219] : memref<3x128x128xbf16, #tpu.memory_space<vmem>>, vector<1x128x128xbf16>
    %196 = vector.shape_cast %195 : vector<1x128x128xbf16> to vector<128x128xbf16>
    %cst_220 = arith.constant dense<0.000000e+00> : vector<16x128xf32>
    %197 = tpu.matmul %194, %196, %cst_220 {dimension_numbers = #tpu.dot_dimension_numbers<[1], [0], [0], [1], [0, 0, 1, 1], [], []>} : vector<16x128xbf16>, vector<128x128xbf16>, vector<16x128xf32> -> vector<16x128xf32>
    %198 = arith.addf %193, %197 : vector<16x128xf32>
    %c0_221 = arith.constant 0 : index
    %c0_222 = arith.constant 0 : index
    %199 = vector.load %arg15[%c0_221, %c0_222] : memref<1x128xf32, #tpu.memory_space<vmem>>, vector<1x128xf32>
    %200 = vector.broadcast %199 : vector<1x128xf32> to vector<16x128xf32>
    %201 = arith.addf %198, %200 : vector<16x128xf32>
    %202 = math.tanh %201 : vector<16x128xf32>
    %c0_223 = arith.constant 0 : index
    %c0_224 = arith.constant 0 : index
    %203 = vector.load %arg22[%c0_223, %c0_224] : memref<16x128xf32, #tpu.memory_space<vmem>>, vector<16x128xf32>
    tpu.vector_store %arg22[%c0_223, %c0_224], %202 {strides = array<i32>} : memref<16x128xf32, #tpu.memory_space<vmem>>, vector<16x128xf32>,
    return
  }
  func.func @transform_0(%arg0: i32) -> (i32, i32) {
    %c0_i32 = arith.constant 0 : i32
    %c0_i32_0 = arith.constant 0 : i32
    return %arg0, %c0_i32 : i32, i32
  }
  func.func @transform_1(%arg0: i32) -> (i32, i32, i32) {
    %c0_i32 = arith.constant 0 : i32
    %c0_i32_0 = arith.constant 0 : i32
    %c0_i32_1 = arith.constant 0 : i32
    %c0_i32_2 = arith.constant 0 : i32
    return %c0_i32, %c0_i32_0, %c0_i32_1 : i32, i32, i32
  }
  func.func @transform_2(%arg0: i32) -> (i32, i32) {
    %c0_i32 = arith.constant 0 : i32
    %c0_i32_0 = arith.constant 0 : i32
    %c0_i32_1 = arith.constant 0 : i32
    return %c0_i32, %c0_i32_0 : i32, i32
  }
  func.func @transform_3(%arg0: i32) -> (i32, i32, i32) {
    %c0_i32 = arith.constant 0 : i32
    %c0_i32_0 = arith.constant 0 : i32
    %c0_i32_1 = arith.constant 0 : i32
    %c0_i32_2 = arith.constant 0 : i32
    return %c0_i32, %c0_i32_0, %c0_i32_1 : i32, i32, i32
  }
  func.func @transform_4(%arg0: i32) -> (i32, i32) {
    %c0_i32 = arith.constant 0 : i32
    %c0_i32_0 = arith.constant 0 : i32
    %c0_i32_1 = arith.constant 0 : i32
    return %c0_i32, %c0_i32_0 : i32, i32
  }
  func.func @transform_5(%arg0: i32) -> (i32, i32, i32) {
    %c0_i32 = arith.constant 0 : i32
    %c0_i32_0 = arith.constant 0 : i32
    %c0_i32_1 = arith.constant 0 : i32
    %c0_i32_2 = arith.constant 0 : i32
    return %c0_i32, %c0_i32_0, %c0_i32_1 : i32, i32, i32
  }
  func.func @transform_6(%arg0: i32) -> (i32, i32) {
    %c0_i32 = arith.constant 0 : i32
    %c0_i32_0 = arith.constant 0 : i32
    %c0_i32_1 = arith.constant 0 : i32
    return %c0_i32, %c0_i32_0 : i32, i32
  }
  func.func @transform_7(%arg0: i32) -> (i32, i32, i32) {
    %c0_i32 = arith.constant 0 : i32
    %c0_i32_0 = arith.constant 0 : i32
    %c0_i32_1 = arith.constant 0 : i32
    %c0_i32_2 = arith.constant 0 : i32
    return %c0_i32, %c0_i32_0, %c0_i32_1 : i32, i32, i32
  }
  func.func @transform_8(%arg0: i32) -> (i32, i32) {
    %c0_i32 = arith.constant 0 : i32
    %c0_i32_0 = arith.constant 0 : i32
    %c0_i32_1 = arith.constant 0 : i32
    return %c0_i32, %c0_i32_0 : i32, i32
  }
  func.func @transform_9(%arg0: i32) -> (i32, i32, i32) {
    %c0_i32 = arith.constant 0 : i32
    %c0_i32_0 = arith.constant 0 : i32
    %c0_i32_1 = arith.constant 0 : i32
    %c0_i32_2 = arith.constant 0 : i32
    return %c0_i32, %c0_i32_0, %c0_i32_1 : i32, i32, i32
  }
  func.func @transform_10(%arg0: i32) -> (i32, i32) {
    %c0_i32 = arith.constant 0 : i32
    %c0_i32_0 = arith.constant 0 : i32
    %c0_i32_1 = arith.constant 0 : i32
    return %c0_i32, %c0_i32_0 : i32, i32
  }
  func.func @transform_11(%arg0: i32) -> (i32, i32, i32) {
    %c0_i32 = arith.constant 0 : i32
    %c0_i32_0 = arith.constant 0 : i32
    %c0_i32_1 = arith.constant 0 : i32
    %c0_i32_2 = arith.constant 0 : i32
    return %c0_i32, %c0_i32_0, %c0_i32_1 : i32, i32, i32
  }
  func.func @transform_12(%arg0: i32) -> (i32, i32) {
    %c0_i32 = arith.constant 0 : i32
    %c0_i32_0 = arith.constant 0 : i32
    %c0_i32_1 = arith.constant 0 : i32
    return %c0_i32, %c0_i32_0 : i32, i32
  }
  func.func @transform_13(%arg0: i32) -> (i32, i32, i32) {
    %c0_i32 = arith.constant 0 : i32
    %c0_i32_0 = arith.constant 0 : i32
    %c0_i32_1 = arith.constant 0 : i32
    %c0_i32_2 = arith.constant 0 : i32
    return %c0_i32, %c0_i32_0, %c0_i32_1 : i32, i32, i32
  }
  func.func @transform_14(%arg0: i32) -> (i32, i32) {
    %c0_i32 = arith.constant 0 : i32
    %c0_i32_0 = arith.constant 0 : i32
    %c0_i32_1 = arith.constant 0 : i32
    return %c0_i32, %c0_i32_0 : i32, i32
  }
  func.func @transform_15(%arg0: i32) -> (i32, i32) {
    %c0_i32 = arith.constant 0 : i32
    %c0_i32_0 = arith.constant 0 : i32
    %c0_i32_1 = arith.constant 0 : i32
    return %c0_i32, %c0_i32_0 : i32, i32
  }
  func.func @transform_16(%arg0: i32) -> (i32, i32) {
    %c0_i32 = arith.constant 0 : i32
    %c0_i32_0 = arith.constant 0 : i32
    %c0_i32_1 = arith.constant 0 : i32
    return %c0_i32, %c0_i32_0 : i32, i32
  }
  func.func @transform_17(%arg0: i32) -> (i32, i32) {
    %c0_i32 = arith.constant 0 : i32
    %c0_i32_0 = arith.constant 0 : i32
    %c0_i32_1 = arith.constant 0 : i32
    return %c0_i32, %c0_i32_0 : i32, i32
  }
  func.func @transform_18(%arg0: i32) -> (i32, i32) {
    %c0_i32 = arith.constant 0 : i32
    %c0_i32_0 = arith.constant 0 : i32
    %c0_i32_1 = arith.constant 0 : i32
    return %c0_i32, %c0_i32_0 : i32, i32
  }
  func.func @transform_19(%arg0: i32) -> (i32, i32) {
    %c0_i32 = arith.constant 0 : i32
    %c0_i32_0 = arith.constant 0 : i32
    %c0_i32_1 = arith.constant 0 : i32
    return %c0_i32, %c0_i32_0 : i32, i32
  }
  func.func @transform_20(%arg0: i32) -> (i32, i32) {
    %c0_i32 = arith.constant 0 : i32
    %c0_i32_0 = arith.constant 0 : i32
    %c0_i32_1 = arith.constant 0 : i32
    return %c0_i32, %c0_i32_0 : i32, i32
  }
  func.func @transform_21(%arg0: i32) -> (i32, i32) {
    %c0_i32 = arith.constant 0 : i32
    %c0_i32_0 = arith.constant 0 : i32
    return %arg0, %c0_i32 : i32, i32
  }
}

</mosaic_0001>

<llo_original>
// kernel: tile.48
$region0: #{tile.48}
  #allocation0 [shape = 's32[1]{0}', space=sflag, size = 0x4, scoped, tag = 'scoped memory for tile.48']
  %s0 = inlined_call_operand.vmem [shape: f32[16], index: 0, kind: input, shape index: {}]
  %s1 = inlined_call_operand.vmem [shape: f32[8,16], index: 1, kind: output, shape index: {}]
  // Predicated region
  $region2: #{tile.48} parent=0 // pred_check
    _
  $region3: #{tile.48} parent=0 // pred_check_branch
    %3 = sbr.rel (0) target = $region5
  $region4: #{tile.48} parent=0 // pred_region
    _
  $region5: #{tile.48} parent=0 // pred_fallthru
    _
  %v4 = vld [vmem:[%s0] ss:$0 sm:$0xff]
  %5 = vst [vmem:[%s1] sm:$0xff] %v4

// kernel: tile.49
$region0: #{tile.49}
  %s0 = inlined_call_operand.vmem [shape: f32[8,16], index: 0, kind: input, shape index: {}]
  %s1 = inlined_call_operand.vmem [shape: f32[1,128], index: 1, kind: output, shape index: {}]
  $region1: #{tile.49} parent=0
    #allocation0 [shape = 'u8[4096]{0}', space=vmem, size = 0x1000, scoped, tag = 'scoped mem for output reshape']
    %v2 = vld [vmem:[%s0] sm:$0x1]
    %vm3 = vcmask 130048
    %4 = vst.msk [vmem:[#allocation0] sm:$0x1] %vm3, %v2
    %s5 = scalar_lea.vmem %s0, 7
    %v6 = vld [vmem:[%s5] sm:$0x1]
    %7 = vrot.lane.b32.xlu0 %v6, 112
    %v8 = vpop.permute.xlu0 %7
    %vm9 = vcmask 1048448
    %10 = vst.msk [vmem:[#allocation0] sm:$0x1] %vm9, %v8
    %s11 = scalar_lea.vmem %s0, 6
    %v12 = vld [vmem:[%s11] sm:$0x1]
    %13 = vrot.lane.b32.xlu0 %v12, 96
    %v14 = vpop.permute.xlu0 %13
    %vm15 = vcmask 917248
    %16 = vst.msk [vmem:[#allocation0] sm:$0x1] %vm15, %v14
    %s17 = scalar_lea.vmem %s0, 5
    %v18 = vld [vmem:[%s17] sm:$0x1]
    %19 = vrot.lane.b32.xlu0 %v18, 80
    %v20 = vpop.permute.xlu0 %19
    %vm21 = vcmask 786048
    %22 = vst.msk [vmem:[#allocation0] sm:$0x1] %vm21, %v20
    %s23 = scalar_lea.vmem %s0, 4
    %v24 = vld [vmem:[%s23] sm:$0x1]
    %25 = vrot.lane.b32.xlu0 %v24, 64
    %v26 = vpop.permute.xlu0 %25
    %vm27 = vcmask 654848
    %28 = vst.msk [vmem:[#allocation0] sm:$0x1] %vm27, %v26
    %s29 = scalar_lea.vmem %s0, 3
    %v30 = vld [vmem:[%s29] sm:$0x1]
    %31 = vrot.lane.b32.xlu0 %v30, 48
    %v32 = vpop.permute.xlu0 %31
    %vm33 = vcmask 523648
    %34 = vst.msk [vmem:[#allocation0] sm:$0x1] %vm33, %v32
    %s35 = scalar_lea.vmem %s0, 2
    %v36 = vld [vmem:[%s35] sm:$0x1]
    %37 = vrot.lane.b32.xlu0 %v36, 32
    %v38 = vpop.permute.xlu0 %37
    %vm39 = vcmask 392448
    %40 = vst.msk [vmem:[#allocation0] sm:$0x1] %vm39, %v38
    %s41 = scalar_lea.vmem %s0, 1
    %v42 = vld [vmem:[%s41] sm:$0x1]
    %43 = vrot.lane.b32.xlu0 %v42, 16
    %v44 = vpop.permute.xlu0 %43
    %vm45 = vcmask 261248
    %46 = vst.msk [vmem:[#allocation0] sm:$0x1] %vm45, %v44
    %s48 = sshllo.u32 0, 1
    %v50 = vld [vmem:[#allocation0] sm:%s48]
    %s51 = sshllo.u32 0, 1
    %52 = vst [vmem:[%s1] sm:%s51] %v50

// kernel: tile.68
$region0: #{tile.68}
  #allocation0 [shape = 's32[1]{0}', space=sflag, size = 0x4, scoped, tag = 'scoped memory for tile.68']
  %s0 = inlined_call_operand.vmem [shape: f32[8], index: 0, kind: input, shape index: {}]
  %s1 = inlined_call_operand.vmem [shape: f32[16,8], index: 1, kind: output, shape index: {}]
  // Predicated region
  $region2: #{tile.68} parent=0 // pred_check
    _
  $region3: #{tile.68} parent=0 // pred_check_branch
    %3 = sbr.rel (0) target = $region5
  $region4: #{tile.68} parent=0 // pred_region
    _
  $region5: #{tile.68} parent=0 // pred_fallthru
    _
  %v4 = vld [vmem:[%s0] ss:$0 sm:$0xff]
  %5 = vst [vmem:[%s1] sm:$0xff] %v4
  %s6 = scalar_lea.vmem %s1, 8
  %7 = vst [vmem:[%s6] sm:$0xff] %v4

// kernel: tile.69
$region0: #{tile.69}
  %s0 = inlined_call_operand.vmem [shape: f32[16,8], index: 0, kind: input, shape index: {}]
  %s1 = inlined_call_operand.vmem [shape: f32[1,128], index: 1, kind: output, shape index: {}]
  $region1: #{tile.69} parent=0
    #allocation0 [shape = 'u8[4096]{0}', space=vmem, size = 0x1000, scoped, tag = 'scoped mem for output reshape']
    %v2 = vld [vmem:[%s0] sm:$0x1]
    %vm3 = vcmask 64512
    %4 = vst.msk [vmem:[#allocation0] sm:$0x1] %vm3, %v2
    %s5 = scalar_lea.vmem %s0, 15
    %v6 = vld [vmem:[%s5] sm:$0x1]
    %7 = vrot.lane.b32.xlu0 %v6, 120
    %v8 = vpop.permute.xlu0 %7
    %vm9 = vcmask 1048512
    %10 = vst.msk [vmem:[#allocation0] sm:$0x1] %vm9, %v8
    %s11 = scalar_lea.vmem %s0, 14
    %v12 = vld [vmem:[%s11] sm:$0x1]
    %13 = vrot.lane.b32.xlu0 %v12, 112
    %v14 = vpop.permute.xlu0 %13
    %vm15 = vcmask 982912
    %16 = vst.msk [vmem:[#allocation0] sm:$0x1] %vm15, %v14
    %s17 = scalar_lea.vmem %s0, 13
    %v18 = vld [vmem:[%s17] sm:$0x1]
    %19 = vrot.lane.b32.xlu0 %v18, 104
    %v20 = vpop.permute.xlu0 %19
    %vm21 = vcmask 917312
    %22 = vst.msk [vmem:[#allocation0] sm:$0x1] %vm21, %v20
    %s23 = scalar_lea.vmem %s0, 12
    %v24 = vld [vmem:[%s23] sm:$0x1]
    %25 = vrot.lane.b32.xlu0 %v24, 96
    %v26 = vpop.permute.xlu0 %25
    %vm27 = vcmask 851712
    %28 = vst.msk [vmem:[#allocation0] sm:$0x1] %vm27, %v26
    %s29 = scalar_lea.vmem %s0, 11
    %v30 = vld [vmem:[%s29] sm:$0x1]
    %31 = vrot.lane.b32.xlu0 %v30, 88
    %v32 = vpop.permute.xlu0 %31
    %vm33 = vcmask 786112
    %34 = vst.msk [vmem:[#allocation0] sm:$0x1] %vm33, %v32
    %s35 = scalar_lea.vmem %s0, 10
    %v36 = vld [vmem:[%s35] sm:$0x1]
    %37 = vrot.lane.b32.xlu0 %v36, 80
    %v38 = vpop.permute.xlu0 %37
    %vm39 = vcmask 720512
    %40 = vst.msk [vmem:[#allocation0] sm:$0x1] %vm39, %v38
    %s41 = scalar_lea.vmem %s0, 9
    %v42 = vld [vmem:[%s41] sm:$0x1]
    %43 = vrot.lane.b32.xlu0 %v42, 72
    %v44 = vpop.permute.xlu0 %43
    %vm45 = vcmask 654912
    %46 = vst.msk [vmem:[#allocation0] sm:$0x1] %vm45, %v44
    %s47 = scalar_lea.vmem %s0, 8
    %v48 = vld [vmem:[%s47] sm:$0x1]
    %49 = vrot.lane.b32.xlu0 %v48, 64
    %v50 = vpop.permute.xlu0 %49
    %vm51 = vcmask 589312
    %52 = vst.msk [vmem:[#allocation0] sm:$0x1] %vm51, %v50
    %s53 = scalar_lea.vmem %s0, 7
    %v54 = vld [vmem:[%s53] sm:$0x1]
    %55 = vrot.lane.b32.xlu0 %v54, 56
    %v56 = vpop.permute.xlu0 %55
    %vm57 = vcmask 523712
    %58 = vst.msk [vmem:[#allocation0] sm:$0x1] %vm57, %v56
    %s59 = scalar_lea.vmem %s0, 6
    %v60 = vld [vmem:[%s59] sm:$0x1]
    %61 = vrot.lane.b32.xlu0 %v60, 48
    %v62 = vpop.permute.xlu0 %61
    %vm63 = vcmask 458112
    %64 = vst.msk [vmem:[#allocation0] sm:$0x1] %vm63, %v62
    %s65 = scalar_lea.vmem %s0, 5
    %v66 = vld [vmem:[%s65] sm:$0x1]
    %67 = vrot.lane.b32.xlu0 %v66, 40
    %v68 = vpop.permute.xlu0 %67
    %vm69 = vcmask 392512
    %70 = vst.msk [vmem:[#allocation0] sm:$0x1] %vm69, %v68
    %s71 = scalar_lea.vmem %s0, 4
    %v72 = vld [vmem:[%s71] sm:$0x1]
    %73 = vrot.lane.b32.xlu0 %v72, 32
    %v74 = vpop.permute.xlu0 %73
    %vm75 = vcmask 326912
    %76 = vst.msk [vmem:[#allocation0] sm:$0x1] %vm75, %v74
    %s77 = scalar_lea.vmem %s0, 3
    %v78 = vld [vmem:[%s77] sm:$0x1]
    %79 = vrot.lane.b32.xlu0 %v78, 24
    %v80 = vpop.permute.xlu0 %79
    %vm81 = vcmask 261312
    %82 = vst.msk [vmem:[#allocation0] sm:$0x1] %vm81, %v80
    %s83 = scalar_lea.vmem %s0, 2
    %v84 = vld [vmem:[%s83] sm:$0x1]
    %85 = vrot.lane.b32.xlu0 %v84, 16
    %v86 = vpop.permute.xlu0 %85
    %vm87 = vcmask 195712
    %88 = vst.msk [vmem:[#allocation0] sm:$0x1] %vm87, %v86
    %s89 = scalar_lea.vmem %s0, 1
    %v90 = vld [vmem:[%s89] sm:$0x1]
    %91 = vrot.lane.b32.xlu0 %v90, 8
    %v92 = vpop.permute.xlu0 %91
    %vm93 = vcmask 130112
    %94 = vst.msk [vmem:[#allocation0] sm:$0x1] %vm93, %v92
    %s96 = sshllo.u32 0, 1
    %v98 = vld [vmem:[#allocation0] sm:%s96]
    %s99 = sshllo.u32 0, 1
    %100 = vst [vmem:[%s1] sm:%s99] %v98

// kernel: srunet_forward.1
$region0: #{srunet_forward.1}
  #allocation0 [shape = 'u32[]', space=smem, size = 0x4, offset = 0x4, fixed_abs, tag = 'smem constant byte address 0x4 - core index']
  #allocation1 [shape = 'u32[144,128]{1,0:T(1,128)}', space=vmem, size = 0x12000, scoped, tag = 'internal scratch']
  #allocation2 [shape = 'bf16[18,128]{1,0:T(8,128)(2,1)}', space=vmem, size = 0x1800, scoped, tag = 'scratch operand']
  #allocation3 [shape = 'bf16[18,128]{1,0:T(8,128)(2,1)}', space=vmem, size = 0x1800, scoped, tag = 'scratch operand']
  #allocation4 [shape = 'bf16[18,384]{1,0:T(8,128)(2,1)}', space=vmem, size = 0x4800, scoped, tag = 'scratch operand']
  #allocation5 [shape = 'bf16[18,128]{1,0:T(8,128)(2,1)}', space=vmem, size = 0x1800, scoped, tag = 'scratch operand']
  #allocation6 [shape = 'bf16[18,128]{1,0:T(8,128)(2,1)}', space=vmem, size = 0x1800, scoped, tag = 'scratch operand']
  #allocation7 [shape = 'bf16[10,64]{1,0:T(8,128)(2,1)}', space=vmem, size = 0x1000, scoped, tag = 'scratch operand']
  #allocation8 [shape = 'bf16[10,128]{1,0:T(8,128)(2,1)}', space=vmem, size = 0x1000, scoped, tag = 'scratch operand']
  #allocation9 [shape = 'bf16[8,128]{1,0:T(8,128)(2,1)}', space=vmem, size = 0x800, scoped, tag = 'scratch operand']
  %s0 = inlined_call_operand.vmem [shape: bf16[32,128], index: 0, kind: input, shape index: {}]
  %s1 = inlined_call_operand.vmem [shape: bf16[3,128,128], index: 1, kind: input, shape index: {}]
  %s2 = inlined_call_operand.vmem [shape: f32[1,128], index: 2, kind: input, shape index: {}]
  %s3 = inlined_call_operand.vmem [shape: bf16[3,128,128], index: 3, kind: input, shape index: {}]
  %s4 = inlined_call_operand.vmem [shape: f32[1,128], index: 4, kind: input, shape index: {}]
  %s5 = inlined_call_operand.vmem [shape: bf16[3,64,128], index: 5, kind: input, shape index: {}]
  %s6 = inlined_call_operand.vmem [shape: f32[1,128], index: 6, kind: input, shape index: {}]
  %s7 = inlined_call_operand.vmem [shape: bf16[3,128,128], index: 7, kind: input, shape index: {}]
  %s8 = inlined_call_operand.vmem [shape: f32[1,128], index: 8, kind: input, shape index: {}]
  %s9 = inlined_call_operand.vmem [shape: bf16[3,384,128], index: 9, kind: input, shape index: {}]
  %s10 = inlined_call_operand.vmem [shape: f32[1,128], index: 10, kind: input, shape index: {}]
  %s11 = inlined_call_operand.vmem [shape: bf16[3,128,128], index: 11, kind: input, shape index: {}]
  %s12 = inlined_call_operand.vmem [shape: f32[1,128], index: 12, kind: input, shape index: {}]
  %s13 = inlined_call_operand.vmem [shape: bf16[3,128,128], index: 13, kind: input, shape index: {}]
  %s14 = inlined_call_operand.vmem [shape: f32[1,128], index: 14, kind: input, shape index: {}]
  %s15 = inlined_call_operand.vmem [shape: bf16[8,16], index: 15, kind: input, shape index: {}]
  %s16 = inlined_call_operand.vmem [shape: bf16[8,16], index: 16, kind: input, shape index: {}]
  %s17 = inlined_call_operand.vmem [shape: bf16[128,64], index: 17, kind: input, shape index: {}]
  %s18 = inlined_call_operand.vmem [shape: bf16[128,64], index: 18, kind: input, shape index: {}]
  %s19 = inlined_call_operand.vmem [shape: bf16[16,8], index: 19, kind: input, shape index: {}]
  %s20 = inlined_call_operand.vmem [shape: bf16[128,256], index: 20, kind: input, shape index: {}]
  %s21 = inlined_call_operand.vmem [shape: f32[32,128], index: 21, kind: output, shape index: {}]
  %s22 = sld [smem:[#allocation0]]
  $region117: #{srunet_forward.1} parent=0
    _
  %s24 = ssub.s32 1, %s22
  %s25 = scalar_select 0, %s24, %s22
  loop: start=0, step=1, limit=4
  $region2: #{srunet_forward.1} parent=0 // loop_pre_header
    _
  $region3: #{srunet_forward.1} parent=0 // loop_header
    %s27 = sphi 0, %s31
    %p28 = scmp.ge.s32.totalorder %s27, 4
    %s37 = sphi 0, %s39
    %s40 = sphi 0, %s37
    %s41 = sphi 0, %s40
    %s57 = sphi 0, %s41
    %s61 = sphi 0, %s61
    %s63 = sphi 0, %s61
    %s64 = sphi 0, %s63
    %s78 = sphi 0, %s64
    %s82 = sphi 0, %s82
    %s84 = sphi 0, %s82
    %s85 = sphi 0, %s84
    %s99 = sphi 0, %s85
    %s103 = sphi 0, %s103
    %s105 = sphi 0, %s103
    %s106 = sphi 0, %s105
    %s120 = sphi 0, %s106
    %s124 = sphi 0, %s124
    %s126 = sphi 0, %s124
    %s127 = sphi 0, %s126
    %s141 = sphi 0, %s127
    %s145 = sphi 0, %s145
    %s147 = sphi 0, %s145
    %s148 = sphi 0, %s147
    %s162 = sphi 0, %s148
    %s166 = sphi 0, %s166
    %s168 = sphi 0, %s166
    %s169 = sphi 0, %s168
    %s183 = sphi 0, %s169
    %s187 = sphi 0, %s187
    %s189 = sphi 0, %s187
    %s190 = sphi 0, %s189
    %s204 = sphi 0, %s190
    %s208 = sphi 0, %s208
    %s210 = sphi 0, %s208
    %s211 = sphi 0, %s210
    %s225 = sphi 0, %s211
    %s229 = sphi 0, %s229
    %s231 = sphi 0, %s229
    %s232 = sphi 0, %s231
    %s246 = sphi 0, %s232
    %s250 = sphi 0, %s250
    %s252 = sphi 0, %s250
    %s253 = sphi 0, %s252
    %s267 = sphi 0, %s253
    %s271 = sphi 0, %s271
    %s273 = sphi 0, %s271
    %s274 = sphi 0, %s273
    %s288 = sphi 0, %s274
    %s292 = sphi 0, %s292
    %s294 = sphi 0, %s292
    %s295 = sphi 0, %s294
    %s309 = sphi 0, %s295
    %s313 = sphi 0, %s313
    %s315 = sphi 0, %s313
    %s316 = sphi 0, %s315
    %s330 = sphi 0, %s316
    %s334 = sphi 0, %s334
    %s336 = sphi 0, %s334
    %s337 = sphi 0, %s336
    %s351 = sphi 0, %s337
    %s355 = sphi 0, %s355
    %s357 = sphi 0, %s355
    %s358 = sphi 0, %s357
    %s372 = sphi 0, %s358
    %s376 = sphi 0, %s376
    %s378 = sphi 0, %s376
    %s379 = sphi 0, %s378
    %s393 = sphi 0, %s379
    %s397 = sphi 0, %s397
    %s399 = sphi 0, %s397
    %s400 = sphi 0, %s399
    %s414 = sphi 0, %s400
    %s418 = sphi 0, %s418
    %s420 = sphi 0, %s418
    %s421 = sphi 0, %s420
    %s435 = sphi 0, %s421
    %s439 = sphi 0, %s439
    %s441 = sphi 0, %s439
    %s442 = sphi 0, %s441
    %s456 = sphi 0, %s442
    %s460 = sphi 0, %s460
    %s462 = sphi 0, %s460
    %s463 = sphi 0, %s462
    %s477 = sphi 0, %s463
    %s483 = sphi 0, %s485
    %s486 = sphi 0, %s483
    %s487 = sphi 0, %s486
    %s503 = sphi 0, %s487
  $region4: #{srunet_forward.1} parent=0 // loop_header_branch
    %30 = sbr.rel (%p28) target = $region8
  $region5: #{srunet_forward.1} parent=0 // loop_body
    %s32 = ssub.s32 %s27, 1
    %s33 = ssub.s32 %s27, 2
    %s34 = sadd.s32 %s27, 1
    %s35 = ssub.s32 %s27, %s34
    %p36 = scmp.eq.s32.totalorder %s35, 0
    %s38 = sadd.s32 %s37, 1
    %s39 = scalar_select %p36, %s37, %s38
    %p42 = pneg %p36
    %p43 = scmp.eq.s32.totalorder %s27, 1
    %p44 = por %p42, %p43
    %p45 = scmp.ne.s32.totalorder %s37, %s40
    %p46 = scmp.eq.s32.totalorder %s27, 0
    %p47 = por %p45, %p46
    %p48 = scmp.ne.s32.totalorder %s37, %s40
    %p49 = scmp.eq.s32.totalorder %s32, 1
    %p50 = por %p48, %p49
    %p51 = scmp.ne.s32.totalorder %s40, %s41
    %p52 = scmp.eq.s32.totalorder %s32, 0
    %p53 = por %p51, %p52
    %p54 = scmp.ne.s32.totalorder %s40, %s41
    %p55 = scmp.eq.s32.totalorder %s33, 1
    %p56 = por %p54, %p55
    %p58 = scmp.ne.s32.totalorder %s41, %s57
    %p59 = scmp.eq.s32.totalorder %s33, 0
    %p60 = por %p58, %p59
    %s62 = sadd.s32 %s61, 1
    %p65 = scmp.eq.s32.totalorder %s27, 1
    %p66 = scmp.ne.s32.totalorder %s61, %s63
    %p67 = scmp.eq.s32.totalorder %s27, 0
    %p68 = por %p66, %p67
    %p69 = scmp.ne.s32.totalorder %s61, %s63
    %p70 = scmp.eq.s32.totalorder %s32, 1
    %p71 = por %p69, %p70
    %p72 = scmp.ne.s32.totalorder %s63, %s64
    %p73 = scmp.eq.s32.totalorder %s32, 0
    %p74 = por %p72, %p73
    %p75 = scmp.ne.s32.totalorder %s63, %s64
    %p76 = scmp.eq.s32.totalorder %s33, 1
    %p77 = por %p75, %p76
    %p79 = scmp.ne.s32.totalorder %s64, %s78
    %p80 = scmp.eq.s32.totalorder %s33, 0
    %p81 = por %p79, %p80
    %s83 = sadd.s32 %s82, 1
    %p86 = scmp.eq.s32.totalorder %s27, 1
    %p87 = scmp.ne.s32.totalorder %s82, %s84
    %p88 = scmp.eq.s32.totalorder %s27, 0
    %p89 = por %p87, %p88
    %p90 = scmp.ne.s32.totalorder %s82, %s84
    %p91 = scmp.eq.s32.totalorder %s32, 1
    %p92 = por %p90, %p91
    %p93 = scmp.ne.s32.totalorder %s84, %s85
    %p94 = scmp.eq.s32.totalorder %s32, 0
    %p95 = por %p93, %p94
    %p96 = scmp.ne.s32.totalorder %s84, %s85
    %p97 = scmp.eq.s32.totalorder %s33, 1
    %p98 = por %p96, %p97
    %p100 = scmp.ne.s32.totalorder %s85, %s99
    %p101 = scmp.eq.s32.totalorder %s33, 0
    %p102 = por %p100, %p101
    %s104 = sadd.s32 %s103, 1
    %p107 = scmp.eq.s32.totalorder %s27, 1
    %p108 = scmp.ne.s32.totalorder %s103, %s105
    %p109 = scmp.eq.s32.totalorder %s27, 0
    %p110 = por %p108, %p109
    %p111 = scmp.ne.s32.totalorder %s103, %s105
    %p112 = scmp.eq.s32.totalorder %s32, 1
    %p113 = por %p111, %p112
    %p114 = scmp.ne.s32.totalorder %s105, %s106
    %p115 = scmp.eq.s32.totalorder %s32, 0
    %p116 = por %p114, %p115
    %p117 = scmp.ne.s32.totalorder %s105, %s106
    %p118 = scmp.eq.s32.totalorder %s33, 1
    %p119 = por %p117, %p118
    %p121 = scmp.ne.s32.totalorder %s106, %s120
    %p122 = scmp.eq.s32.totalorder %s33, 0
    %p123 = por %p121, %p122
    %s125 = sadd.s32 %s124, 1
    %p128 = scmp.eq.s32.totalorder %s27, 1
    %p129 = scmp.ne.s32.totalorder %s124, %s126
    %p130 = scmp.eq.s32.totalorder %s27, 0
    %p131 = por %p129, %p130
    %p132 = scmp.ne.s32.totalorder %s124, %s126
    %p133 = scmp.eq.s32.totalorder %s32, 1
    %p134 = por %p132, %p133
    %p135 = scmp.ne.s32.totalorder %s126, %s127
    %p136 = scmp.eq.s32.totalorder %s32, 0
    %p137 = por %p135, %p136
    %p138 = scmp.ne.s32.totalorder %s126, %s127
    %p139 = scmp.eq.s32.totalorder %s33, 1
    %p140 = por %p138, %p139
    %p142 = scmp.ne.s32.totalorder %s127, %s141
    %p143 = scmp.eq.s32.totalorder %s33, 0
    %p144 = por %p142, %p143
    %s146 = sadd.s32 %s145, 1
    %p149 = scmp.eq.s32.totalorder %s27, 1
    %p150 = scmp.ne.s32.totalorder %s145, %s147
    %p151 = scmp.eq.s32.totalorder %s27, 0
    %p152 = por %p150, %p151
    %p153 = scmp.ne.s32.totalorder %s145, %s147
    %p154 = scmp.eq.s32.totalorder %s32, 1
    %p155 = por %p153, %p154
    %p156 = scmp.ne.s32.totalorder %s147, %s148
    %p157 = scmp.eq.s32.totalorder %s32, 0
    %p158 = por %p156, %p157
    %p159 = scmp.ne.s32.totalorder %s147, %s148
    %p160 = scmp.eq.s32.totalorder %s33, 1
    %p161 = por %p159, %p160
    %p163 = scmp.ne.s32.totalorder %s148, %s162
    %p164 = scmp.eq.s32.totalorder %s33, 0
    %p165 = por %p163, %p164
    %s167 = sadd.s32 %s166, 1
    %p170 = scmp.eq.s32.totalorder %s27, 1
    %p171 = scmp.ne.s32.totalorder %s166, %s168
    %p172 = scmp.eq.s32.totalorder %s27, 0
    %p173 = por %p171, %p172
    %p174 = scmp.ne.s32.totalorder %s166, %s168
    %p175 = scmp.eq.s32.totalorder %s32, 1
    %p176 = por %p174, %p175
    %p177 = scmp.ne.s32.totalorder %s168, %s169
    %p178 = scmp.eq.s32.totalorder %s32, 0
    %p179 = por %p177, %p178
    %p180 = scmp.ne.s32.totalorder %s168, %s169
    %p181 = scmp.eq.s32.totalorder %s33, 1
    %p182 = por %p180, %p181
    %p184 = scmp.ne.s32.totalorder %s169, %s183
    %p185 = scmp.eq.s32.totalorder %s33, 0
    %p186 = por %p184, %p185
    %s188 = sadd.s32 %s187, 1
    %p191 = scmp.eq.s32.totalorder %s27, 1
    %p192 = scmp.ne.s32.totalorder %s187, %s189
    %p193 = scmp.eq.s32.totalorder %s27, 0
    %p194 = por %p192, %p193
    %p195 = scmp.ne.s32.totalorder %s187, %s189
    %p196 = scmp.eq.s32.totalorder %s32, 1
    %p197 = por %p195, %p196
    %p198 = scmp.ne.s32.totalorder %s189, %s190
    %p199 = scmp.eq.s32.totalorder %s32, 0
    %p200 = por %p198, %p199
    %p201 = scmp.ne.s32.totalorder %s189, %s190
    %p202 = scmp.eq.s32.totalorder %s33, 1
    %p203 = por %p201, %p202
    %p205 = scmp.ne.s32.totalorder %s190, %s204
    %p206 = scmp.eq.s32.totalorder %s33, 0
    %p207 = por %p205, %p206
    %s209 = sadd.s32 %s208, 1
    %p212 = scmp.eq.s32.totalorder %s27, 1
    %p213 = scmp.ne.s32.totalorder %s208, %s210
    %p214 = scmp.eq.s32.totalorder %s27, 0
    %p215 = por %p213, %p214
    %p216 = scmp.ne.s32.totalorder %s208, %s210
    %p217 = scmp.eq.s32.totalorder %s32, 1
    %p218 = por %p216, %p217
    %p219 = scmp.ne.s32.totalorder %s210, %s211
    %p220 = scmp.eq.s32.totalorder %s32, 0
    %p221 = por %p219, %p220
    %p222 = scmp.ne.s32.totalorder %s210, %s211
    %p223 = scmp.eq.s32.totalorder %s33, 1
    %p224 = por %p222, %p223
    %p226 = scmp.ne.s32.totalorder %s211, %s225
    %p227 = scmp.eq.s32.totalorder %s33, 0
    %p228 = por %p226, %p227
    %s230 = sadd.s32 %s229, 1
    %p233 = scmp.eq.s32.totalorder %s27, 1
    %p234 = scmp.ne.s32.totalorder %s229, %s231
    %p235 = scmp.eq.s32.totalorder %s27, 0
    %p236 = por %p234, %p235
    %p237 = scmp.ne.s32.totalorder %s229, %s231
    %p238 = scmp.eq.s32.totalorder %s32, 1
    %p239 = por %p237, %p238
    %p240 = scmp.ne.s32.totalorder %s231, %s232
    %p241 = scmp.eq.s32.totalorder %s32, 0
    %p242 = por %p240, %p241
    %p243 = scmp.ne.s32.totalorder %s231, %s232
    %p244 = scmp.eq.s32.totalorder %s33, 1
    %p245 = por %p243, %p244
    %p247 = scmp.ne.s32.totalorder %s232, %s246
    %p248 = scmp.eq.s32.totalorder %s33, 0
    %p249 = por %p247, %p248
    %s251 = sadd.s32 %s250, 1
    %p254 = scmp.eq.s32.totalorder %s27, 1
    %p255 = scmp.ne.s32.totalorder %s250, %s252
    %p256 = scmp.eq.s32.totalorder %s27, 0
    %p257 = por %p255, %p256
    %p258 = scmp.ne.s32.totalorder %s250, %s252
    %p259 = scmp.eq.s32.totalorder %s32, 1
    %p260 = por %p258, %p259
    %p261 = scmp.ne.s32.totalorder %s252, %s253
    %p262 = scmp.eq.s32.totalorder %s32, 0
    %p263 = por %p261, %p262
    %p264 = scmp.ne.s32.totalorder %s252, %s253
    %p265 = scmp.eq.s32.totalorder %s33, 1
    %p266 = por %p264, %p265
    %p268 = scmp.ne.s32.totalorder %s253, %s267
    %p269 = scmp.eq.s32.totalorder %s33, 0
    %p270 = por %p268, %p269
    %s272 = sadd.s32 %s271, 1
    %p275 = scmp.eq.s32.totalorder %s27, 1
    %p276 = scmp.ne.s32.totalorder %s271, %s273
    %p277 = scmp.eq.s32.totalorder %s27, 0
    %p278 = por %p276, %p277
    %p279 = scmp.ne.s32.totalorder %s271, %s273
    %p280 = scmp.eq.s32.totalorder %s32, 1
    %p281 = por %p279, %p280
    %p282 = scmp.ne.s32.totalorder %s273, %s274
    %p283 = scmp.eq.s32.totalorder %s32, 0
    %p284 = por %p282, %p283
    %p285 = scmp.ne.s32.totalorder %s273, %s274
    %p286 = scmp.eq.s32.totalorder %s33, 1
    %p287 = por %p285, %p286
    %p289 = scmp.ne.s32.totalorder %s274, %s288
    %p290 = scmp.eq.s32.totalorder %s33, 0
    %p291 = por %p289, %p290
    %s293 = sadd.s32 %s292, 1
    %p296 = scmp.eq.s32.totalorder %s27, 1
    %p297 = scmp.ne.s32.totalorder %s292, %s294
    %p298 = scmp.eq.s32.totalorder %s27, 0
    %p299 = por %p297, %p298
    %p300 = scmp.ne.s32.totalorder %s292, %s294
    %p301 = scmp.eq.s32.totalorder %s32, 1
    %p302 = por %p300, %p301
    %p303 = scmp.ne.s32.totalorder %s294, %s295
    %p304 = scmp.eq.s32.totalorder %s32, 0
    %p305 = por %p303, %p304
    %p306 = scmp.ne.s32.totalorder %s294, %s295
    %p307 = scmp.eq.s32.totalorder %s33, 1
    %p308 = por %p306, %p307
    %p310 = scmp.ne.s32.totalorder %s295, %s309
    %p311 = scmp.eq.s32.totalorder %s33, 0
    %p312 = por %p310, %p311
    %s314 = sadd.s32 %s313, 1
    %p317 = scmp.eq.s32.totalorder %s27, 1
    %p318 = scmp.ne.s32.totalorder %s313, %s315
    %p319 = scmp.eq.s32.totalorder %s27, 0
    %p320 = por %p318, %p319
    %p321 = scmp.ne.s32.totalorder %s313, %s315
    %p322 = scmp.eq.s32.totalorder %s32, 1
    %p323 = por %p321, %p322
    %p324 = scmp.ne.s32.totalorder %s315, %s316
    %p325 = scmp.eq.s32.totalorder %s32, 0
    %p326 = por %p324, %p325
    %p327 = scmp.ne.s32.totalorder %s315, %s316
    %p328 = scmp.eq.s32.totalorder %s33, 1
    %p329 = por %p327, %p328
    %p331 = scmp.ne.s32.totalorder %s316, %s330
    %p332 = scmp.eq.s32.totalorder %s33, 0
    %p333 = por %p331, %p332
    %s335 = sadd.s32 %s334, 1
    %p338 = scmp.eq.s32.totalorder %s27, 1
    %p339 = scmp.ne.s32.totalorder %s334, %s336
    %p340 = scmp.eq.s32.totalorder %s27, 0
    %p341 = por %p339, %p340
    %p342 = scmp.ne.s32.totalorder %s334, %s336
    %p343 = scmp.eq.s32.totalorder %s32, 1
    %p344 = por %p342, %p343
    %p345 = scmp.ne.s32.totalorder %s336, %s337
    %p346 = scmp.eq.s32.totalorder %s32, 0
    %p347 = por %p345, %p346
    %p348 = scmp.ne.s32.totalorder %s336, %s337
    %p349 = scmp.eq.s32.totalorder %s33, 1
    %p350 = por %p348, %p349
    %p352 = scmp.ne.s32.totalorder %s337, %s351
    %p353 = scmp.eq.s32.totalorder %s33, 0
    %p354 = por %p352, %p353
    %s356 = sadd.s32 %s355, 1
    %p359 = scmp.eq.s32.totalorder %s27, 1
    %p360 = scmp.ne.s32.totalorder %s355, %s357
    %p361 = scmp.eq.s32.totalorder %s27, 0
    %p362 = por %p360, %p361
    %p363 = scmp.ne.s32.totalorder %s355, %s357
    %p364 = scmp.eq.s32.totalorder %s32, 1
    %p365 = por %p363, %p364
    %p366 = scmp.ne.s32.totalorder %s357, %s358
    %p367 = scmp.eq.s32.totalorder %s32, 0
    %p368 = por %p366, %p367
    %p369 = scmp.ne.s32.totalorder %s357, %s358
    %p370 = scmp.eq.s32.totalorder %s33, 1
    %p371 = por %p369, %p370
    %p373 = scmp.ne.s32.totalorder %s358, %s372
    %p374 = scmp.eq.s32.totalorder %s33, 0
    %p375 = por %p373, %p374
    %s377 = sadd.s32 %s376, 1
    %p380 = scmp.eq.s32.totalorder %s27, 1
    %p381 = scmp.ne.s32.totalorder %s376, %s378
    %p382 = scmp.eq.s32.totalorder %s27, 0
    %p383 = por %p381, %p382
    %p384 = scmp.ne.s32.totalorder %s376, %s378
    %p385 = scmp.eq.s32.totalorder %s32, 1
    %p386 = por %p384, %p385
    %p387 = scmp.ne.s32.totalorder %s378, %s379
    %p388 = scmp.eq.s32.totalorder %s32, 0
    %p389 = por %p387, %p388
    %p390 = scmp.ne.s32.totalorder %s378, %s379
    %p391 = scmp.eq.s32.totalorder %s33, 1
    %p392 = por %p390, %p391
    %p394 = scmp.ne.s32.totalorder %s379, %s393
    %p395 = scmp.eq.s32.totalorder %s33, 0
    %p396 = por %p394, %p395
    %s398 = sadd.s32 %s397, 1
    %p401 = scmp.eq.s32.totalorder %s27, 1
    %p402 = scmp.ne.s32.totalorder %s397, %s399
    %p403 = scmp.eq.s32.totalorder %s27, 0
    %p404 = por %p402, %p403
    %p405 = scmp.ne.s32.totalorder %s397, %s399
    %p406 = scmp.eq.s32.totalorder %s32, 1
    %p407 = por %p405, %p406
    %p408 = scmp.ne.s32.totalorder %s399, %s400
    %p409 = scmp.eq.s32.totalorder %s32, 0
    %p410 = por %p408, %p409
    %p411 = scmp.ne.s32.totalorder %s399, %s400
    %p412 = scmp.eq.s32.totalorder %s33, 1
    %p413 = por %p411, %p412
    %p415 = scmp.ne.s32.totalorder %s400, %s414
    %p416 = scmp.eq.s32.totalorder %s33, 0
    %p417 = por %p415, %p416
    %s419 = sadd.s32 %s418, 1
    %p422 = scmp.eq.s32.totalorder %s27, 1
    %p423 = scmp.ne.s32.totalorder %s418, %s420
    %p424 = scmp.eq.s32.totalorder %s27, 0
    %p425 = por %p423, %p424
    %p426 = scmp.ne.s32.totalorder %s418, %s420
    %p427 = scmp.eq.s32.totalorder %s32, 1
    %p428 = por %p426, %p427
    %p429 = scmp.ne.s32.totalorder %s420, %s421
    %p430 = scmp.eq.s32.totalorder %s32, 0
    %p431 = por %p429, %p430
    %p432 = scmp.ne.s32.totalorder %s420, %s421
    %p433 = scmp.eq.s32.totalorder %s33, 1
    %p434 = por %p432, %p433
    %p436 = scmp.ne.s32.totalorder %s421, %s435
    %p437 = scmp.eq.s32.totalorder %s33, 0
    %p438 = por %p436, %p437
    %s440 = sadd.s32 %s439, 1
    %p443 = scmp.eq.s32.totalorder %s27, 1
    %p444 = scmp.ne.s32.totalorder %s439, %s441
    %p445 = scmp.eq.s32.totalorder %s27, 0
    %p446 = por %p444, %p445
    %p447 = scmp.ne.s32.totalorder %s439, %s441
    %p448 = scmp.eq.s32.totalorder %s32, 1
    %p449 = por %p447, %p448
    %p450 = scmp.ne.s32.totalorder %s441, %s442
    %p451 = scmp.eq.s32.totalorder %s32, 0
    %p452 = por %p450, %p451
    %p453 = scmp.ne.s32.totalorder %s441, %s442
    %p454 = scmp.eq.s32.totalorder %s33, 1
    %p455 = por %p453, %p454
    %p457 = scmp.ne.s32.totalorder %s442, %s456
    %p458 = scmp.eq.s32.totalorder %s33, 0
    %p459 = por %p457, %p458
    %s461 = sadd.s32 %s460, 1
    %p464 = scmp.eq.s32.totalorder %s27, 1
    %p465 = scmp.ne.s32.totalorder %s460, %s462
    %p466 = scmp.eq.s32.totalorder %s27, 0
    %p467 = por %p465, %p466
    %p468 = scmp.ne.s32.totalorder %s460, %s462
    %p469 = scmp.eq.s32.totalorder %s32, 1
    %p470 = por %p468, %p469
    %p471 = scmp.ne.s32.totalorder %s462, %s463
    %p472 = scmp.eq.s32.totalorder %s32, 0
    %p473 = por %p471, %p472
    %p474 = scmp.ne.s32.totalorder %s462, %s463
    %p475 = scmp.eq.s32.totalorder %s33, 1
    %p476 = por %p474, %p475
    %p478 = scmp.ne.s32.totalorder %s463, %s477
    %p479 = scmp.eq.s32.totalorder %s33, 0
    %p480 = por %p478, %p479
    %s481 = ssub.s32 %s27, %s34
    %p482 = scmp.eq.s32.totalorder %s481, 0
    %s484 = sadd.s32 %s483, 1
    %s485 = scalar_select %p482, %s483, %s484
    %p488 = pneg %p482
    %p489 = scmp.eq.s32.totalorder %s27, 1
    %p490 = por %p488, %p489
    %p491 = scmp.ne.s32.totalorder %s483, %s486
    %p492 = scmp.eq.s32.totalorder %s27, 0
    %p493 = por %p491, %p492
    %p494 = scmp.ne.s32.totalorder %s483, %s486
    %p495 = scmp.eq.s32.totalorder %s32, 1
    %p496 = por %p494, %p495
    %p497 = scmp.ne.s32.totalorder %s486, %s487
    %p498 = scmp.eq.s32.totalorder %s32, 0
    %p499 = por %p497, %p498
    %p500 = scmp.ne.s32.totalorder %s486, %s487
    %p501 = scmp.eq.s32.totalorder %s33, 1
    %p502 = por %p500, %p501
    %p504 = scmp.ne.s32.totalorder %s487, %s503
    %p505 = scmp.eq.s32.totalorder %s33, 0
    %p506 = por %p504, %p505
    %p507 = scmp.le.s32.totalorder 1, %s27
    %p508 = scmp.lt.s32.totalorder %s27, 3
    %p509 = pnand %p507, %p508
    %p510 = pneg %p509
    // Predicated region
    $region9: #{srunet_forward.1} parent=5 // pred_check
      _
    $region10: #{srunet_forward.1} parent=5 // pred_check_branch
      %512 = sbr.rel (%p509) target = $region12
    $region11: #{srunet_forward.1} parent=5 // pred_region
      %s513 = ssub.s32 %s27, 1
      // Predicated region
      $region13: #{srunet_forward.1} parent=11 // pred_check
        %p514 = pneg %p74
      $region14: #{srunet_forward.1} parent=11 // pred_check_branch
        %516 = sbr.rel (%p514) target = $region16
      $region15: #{srunet_forward.1} parent=11 // pred_region
        _
      $region16: #{srunet_forward.1} parent=11 // pred_fallthru
        _
      // Predicated region
      $region17: #{srunet_forward.1} parent=11 // pred_check
        %p517 = pneg %p95
      $region18: #{srunet_forward.1} parent=11 // pred_check_branch
        %519 = sbr.rel (%p517) target = $region20
      $region19: #{srunet_forward.1} parent=11 // pred_region
        _
      $region20: #{srunet_forward.1} parent=11 // pred_fallthru
        _
      // Predicated region
      $region21: #{srunet_forward.1} parent=11 // pred_check
        %p520 = pneg %p116
      $region22: #{srunet_forward.1} parent=11 // pred_check_branch
        %522 = sbr.rel (%p520) target = $region24
      $region23: #{srunet_forward.1} parent=11 // pred_region
        _
      $region24: #{srunet_forward.1} parent=11 // pred_fallthru
        _
      // Predicated region
      $region25: #{srunet_forward.1} parent=11 // pred_check
        %p523 = pneg %p137
      $region26: #{srunet_forward.1} parent=11 // pred_check_branch
        %525 = sbr.rel (%p523) target = $region28
      $region27: #{srunet_forward.1} parent=11 // pred_region
        _
      $region28: #{srunet_forward.1} parent=11 // pred_fallthru
        _
      // Predicated region
      $region29: #{srunet_forward.1} parent=11 // pred_check
        %p526 = pneg %p158
      $region30: #{srunet_forward.1} parent=11 // pred_check_branch
        %528 = sbr.rel (%p526) target = $region32
      $region31: #{srunet_forward.1} parent=11 // pred_region
        _
      $region32: #{srunet_forward.1} parent=11 // pred_fallthru
        _
      // Predicated region
      $region33: #{srunet_forward.1} parent=11 // pred_check
        %p529 = pneg %p179
      $region34: #{srunet_forward.1} parent=11 // pred_check_branch
        %531 = sbr.rel (%p529) target = $region36
      $region35: #{srunet_forward.1} parent=11 // pred_region
        _
      $region36: #{srunet_forward.1} parent=11 // pred_fallthru
        _
      // Predicated region
      $region37: #{srunet_forward.1} parent=11 // pred_check
        %p532 = pneg %p200
      $region38: #{srunet_forward.1} parent=11 // pred_check_branch
        %534 = sbr.rel (%p532) target = $region40
      $region39: #{srunet_forward.1} parent=11 // pred_region
        _
      $region40: #{srunet_forward.1} parent=11 // pred_fallthru
        _
      // Predicated region
      $region41: #{srunet_forward.1} parent=11 // pred_check
        %p535 = pneg %p221
      $region42: #{srunet_forward.1} parent=11 // pred_check_branch
        %537 = sbr.rel (%p535) target = $region44
      $region43: #{srunet_forward.1} parent=11 // pred_region
        _
      $region44: #{srunet_forward.1} parent=11 // pred_fallthru
        _
      // Predicated region
      $region45: #{srunet_forward.1} parent=11 // pred_check
        %p538 = pneg %p242
      $region46: #{srunet_forward.1} parent=11 // pred_check_branch
        %540 = sbr.rel (%p538) target = $region48
      $region47: #{srunet_forward.1} parent=11 // pred_region
        _
      $region48: #{srunet_forward.1} parent=11 // pred_fallthru
        _
      // Predicated region
      $region49: #{srunet_forward.1} parent=11 // pred_check
        %p541 = pneg %p263
      $region50: #{srunet_forward.1} parent=11 // pred_check_branch
        %543 = sbr.rel (%p541) target = $region52
      $region51: #{srunet_forward.1} parent=11 // pred_region
        _
      $region52: #{srunet_forward.1} parent=11 // pred_fallthru
        _
      // Predicated region
      $region53: #{srunet_forward.1} parent=11 // pred_check
        %p544 = pneg %p284
      $region54: #{srunet_forward.1} parent=11 // pred_check_branch
        %546 = sbr.rel (%p544) target = $region56
      $region55: #{srunet_forward.1} parent=11 // pred_region
        _
      $region56: #{srunet_forward.1} parent=11 // pred_fallthru
        _
      // Predicated region
      $region57: #{srunet_forward.1} parent=11 // pred_check
        %p547 = pneg %p305
      $region58: #{srunet_forward.1} parent=11 // pred_check_branch
        %549 = sbr.rel (%p547) target = $region60
      $region59: #{srunet_forward.1} parent=11 // pred_region
        _
      $region60: #{srunet_forward.1} parent=11 // pred_fallthru
        _
      // Predicated region
      $region61: #{srunet_forward.1} parent=11 // pred_check
        %p550 = pneg %p326
      $region62: #{srunet_forward.1} parent=11 // pred_check_branch
        %552 = sbr.rel (%p550) target = $region64
      $region63: #{srunet_forward.1} parent=11 // pred_region
        _
      $region64: #{srunet_forward.1} parent=11 // pred_fallthru
        _
      // Predicated region
      $region65: #{srunet_forward.1} parent=11 // pred_check
        %p553 = pneg %p347
      $region66: #{srunet_forward.1} parent=11 // pred_check_branch
        %555 = sbr.rel (%p553) target = $region68
      $region67: #{srunet_forward.1} parent=11 // pred_region
        _
      $region68: #{srunet_forward.1} parent=11 // pred_fallthru
        _
      // Predicated region
      $region69: #{srunet_forward.1} parent=11 // pred_check
        %p556 = pneg %p368
      $region70: #{srunet_forward.1} parent=11 // pred_check_branch
        %558 = sbr.rel (%p556) target = $region72
      $region71: #{srunet_forward.1} parent=11 // pred_region
        _
      $region72: #{srunet_forward.1} parent=11 // pred_fallthru
        _
      // Predicated region
      $region73: #{srunet_forward.1} parent=11 // pred_check
        %p559 = pneg %p389
      $region74: #{srunet_forward.1} parent=11 // pred_check_branch
        %561 = sbr.rel (%p559) target = $region76
      $region75: #{srunet_forward.1} parent=11 // pred_region
        _
      $region76: #{srunet_forward.1} parent=11 // pred_fallthru
        _
      // Predicated region
      $region77: #{srunet_forward.1} parent=11 // pred_check
        %p562 = pneg %p410
      $region78: #{srunet_forward.1} parent=11 // pred_check_branch
        %564 = sbr.rel (%p562) target = $region80
      $region79: #{srunet_forward.1} parent=11 // pred_region
        _
      $region80: #{srunet_forward.1} parent=11 // pred_fallthru
        _
      // Predicated region
      $region81: #{srunet_forward.1} parent=11 // pred_check
        %p565 = pneg %p431
      $region82: #{srunet_forward.1} parent=11 // pred_check_branch
        %567 = sbr.rel (%p565) target = $region84
      $region83: #{srunet_forward.1} parent=11 // pred_region
        _
      $region84: #{srunet_forward.1} parent=11 // pred_fallthru
        _
      // Predicated region
      $region85: #{srunet_forward.1} parent=11 // pred_check
        %p568 = pneg %p452
      $region86: #{srunet_forward.1} parent=11 // pred_check_branch
        %570 = sbr.rel (%p568) target = $region88
      $region87: #{srunet_forward.1} parent=11 // pred_region
        _
      $region88: #{srunet_forward.1} parent=11 // pred_fallthru
        _
      // Predicated region
      $region89: #{srunet_forward.1} parent=11 // pred_check
        %p571 = pneg %p473
      $region90: #{srunet_forward.1} parent=11 // pred_check_branch
        %573 = sbr.rel (%p571) target = $region92
      $region91: #{srunet_forward.1} parent=11 // pred_region
        _
      $region92: #{srunet_forward.1} parent=11 // pred_fallthru
        _
    $region12: #{srunet_forward.1} parent=5 // pred_fallthru
      _
    %p574 = scmp.lt.s32.totalorder %s27, 2
    // Predicated region
    $region93: #{srunet_forward.1} parent=5 // pred_check
      %p575 = pneg %p574
    $region94: #{srunet_forward.1} parent=5 // pred_check_branch
      %577 = sbr.rel (%p575) target = $region96
    $region95: #{srunet_forward.1} parent=5 // pred_region
      // Predicated region
      $region97: #{srunet_forward.1} parent=95 // pred_check
        %p578 = pneg %p47
      $region98: #{srunet_forward.1} parent=95 // pred_check_branch
        %580 = sbr.rel (%p578) target = $region100
      $region99: #{srunet_forward.1} parent=95 // pred_region
        %s581 = smul.u32 2, %s27
        %p582 = scmp.lt.s32.totalorder %s581, 3
        %s583 = scalar_select %p582, %s581, 3
        %s584 = smul.addr %s583, 4
        %s585 = scalar_lea.vmem %s0, %s584
        %s586 = smul.u32 2, %s27
      $region100: #{srunet_forward.1} parent=95 // pred_fallthru
        _
    $region96: #{srunet_forward.1} parent=5 // pred_fallthru
      _
    %p587 = scmp.le.s32.totalorder 1, %s27
    %p588 = scmp.lt.s32.totalorder %s27, 3
    %p589 = pnand %p587, %p588
    %p590 = pneg %p589
    // Predicated region
    $region101: #{srunet_forward.1} parent=5 // pred_check
      _
    $region102: #{srunet_forward.1} parent=5 // pred_check_branch
      %592 = sbr.rel (%p589) target = $region104
    $region103: #{srunet_forward.1} parent=5 // pred_region
      %s593 = ssub.s32 %s27, 1
      %s594 = smul.u32 2, %s32
      %p595 = scmp.lt.s32.totalorder %s594, 3
      %s596 = scalar_select %p595, %s594, 3
      %s597 = smul.addr %s596, 4
      %s598 = scalar_lea.vmem %s0, %s597
      %p599 = pneg %p53
      %p600 = pneg %p50
      %p601 = pneg %p74
      %p602 = pneg %p71
      %p603 = pneg %p95
      %p604 = pneg %p92
      %p605 = pneg %p116
      %p606 = pneg %p113
      %p607 = pneg %p137
      %p608 = pneg %p134
      %p609 = pneg %p158
      %p610 = pneg %p155
      %p611 = pneg %p179
      %p612 = pneg %p176
      %p613 = pneg %p200
      %p614 = pneg %p197
      %p615 = pneg %p221
      %p616 = pneg %p218
      %p617 = pneg %p242
      %p618 = pneg %p239
      %p619 = pneg %p263
      %p620 = pneg %p260
      %p621 = pneg %p284
      %p622 = pneg %p281
      %p623 = pneg %p305
      %p624 = pneg %p302
      %p625 = pneg %p326
      %p626 = pneg %p323
      %p627 = pneg %p347
      %p628 = pneg %p344
      %p629 = pneg %p368
      %p630 = pneg %p365
      %p631 = pneg %p389
      %p632 = pneg %p386
      %p633 = pneg %p410
      %p634 = pneg %p407
      %p635 = pneg %p431
      %p636 = pneg %p428
      %p637 = pneg %p452
      %p638 = pneg %p449
      %p639 = pneg %p473
      %p640 = pneg %p470
      %p641 = pneg %p499
      %p642 = pneg %p496
      %s643 = smul.u32 2, %s32
      %p644 = scmp.lt.s32.totalorder %s643, 3
      %s645 = scalar_select %p644, %s643, 3
      %s646 = smul.addr %s645, 8
      %s647 = scalar_lea.vmem %s21, %s646
      %s648 = smul.u32 2, %s32
      %p649 = scmp.lt.s32.totalorder %s648, 3
      %s650 = scalar_select %p649, %s648, 3
      %s651 = smul.addr %s650, 4
      %s652 = scalar_lea.vmem %s0, %s651
      %s653 = smul.u32 2, %s32
      %s654 = smul.u32 2, %s32
      %p655 = scmp.lt.s32.totalorder %s654, 3
      %s656 = scalar_select %p655, %s654, 3
      %s657 = smul.addr %s656, 8
      %s658 = scalar_lea.vmem %s21, %s657
      %s659 = smul.u32 2, %s32
      %vm661 = vcmask 1040384
      %vm662 = vsmask.f32 256
      %vm663 = vmand %vm661, %vm662
      %v664 = vld [vmem:[#allocation2] sm:$0x1]
      %v665 = vsel %vm663, 0, %v664
      %666 = vst [vmem:[#allocation2] sm:$0x1] %v665
      %vm667 = vsmask.f32 7938
      %vm668 = vmand %vm661, %vm667
      %v669 = vld [vmem:[#allocation2 + $0x8] sm:$0x1]
      %v670 = vsel %vm668, 0, %v669
      %671 = vst [vmem:[#allocation2 + $0x8] sm:$0x1] %v670
      %v672 = vld [vmem:[#allocation3] sm:$0x1]
      %v673 = vsel %vm663, 0, %v672
      %674 = vst [vmem:[#allocation3] sm:$0x1] %v673
      %v675 = vld [vmem:[#allocation3 + $0x8] sm:$0x1]
      %v676 = vsel %vm668, 0, %v675
      %677 = vst [vmem:[#allocation3 + $0x8] sm:$0x1] %v676
      %vm678 = vcmask 1044484
      %vm679 = vsmask.f32 4352
      %vm680 = vmand %vm678, %vm679
      %vm681 = vmor %vm680, %vm663
      %v682 = vld [vmem:[#allocation4] sm:$0x11]
      %v683 = vsel %vm681, 0, %v682
      %684 = vst [vmem:[#allocation4] sm:$0x11] %v683
      %v685 = vld [vmem:[#allocation4 + $0x8] sm:$0x1]
      %v686 = vsel %vm663, 0, %v685
      %687 = vst [vmem:[#allocation4 + $0x8] sm:$0x1] %v686
      %vm688 = vsmask.f32 7954
      %vm689 = vmand %vm678, %vm688
      %vm690 = vmor %vm689, %vm668
      %v691 = vld [vmem:[#allocation4 + $0x18] sm:$0x11]
      %v692 = vsel %vm690, 0, %v691
      %693 = vst [vmem:[#allocation4 + $0x18] sm:$0x11] %v692
      %v694 = vld [vmem:[#allocation4 + $0x20] sm:$0x1]
      %v695 = vsel %vm668, 0, %v694
      %696 = vst [vmem:[#allocation4 + $0x20] sm:$0x1] %v695
      %v697 = vld [vmem:[#allocation5] sm:$0x1]
      %v698 = vsel %vm663, 0, %v697
      %699 = vst [vmem:[#allocation5] sm:$0x1] %v698
      %v700 = vld [vmem:[#allocation5 + $0x8] sm:$0x1]
      %v701 = vsel %vm668, 0, %v700
      %702 = vst [vmem:[#allocation5 + $0x8] sm:$0x1] %v701
      %v703 = vld [vmem:[#allocation6] sm:$0x1]
      %v704 = vsel %vm663, 0, %v703
      %705 = vst [vmem:[#allocation6] sm:$0x1] %v704
      %v706 = vld [vmem:[#allocation6 + $0x8] sm:$0x1]
      %v707 = vsel %vm668, 0, %v706
      %708 = vst [vmem:[#allocation6 + $0x8] sm:$0x1] %v707
      %vm709 = vcmask 516096
      %vm710 = vmand %vm709, %vm662
      %v711 = vld [vmem:[#allocation7] sm:$0x1]
      %v712 = vsel %vm710, 0, %v711
      %713 = vst [vmem:[#allocation7] sm:$0x1] %v712
      %vm714 = vmand %vm709, %vm667
      %v715 = vld [vmem:[#allocation7 + $0x4] sm:$0x1]
      %v716 = vsel %vm714, 0, %v715
      %717 = vst [vmem:[#allocation7 + $0x4] sm:$0x1] %v716
      %v718 = vld [vmem:[#allocation8] sm:$0x1]
      %v719 = vsel %vm663, 0, %v718
      %720 = vst [vmem:[#allocation8] sm:$0x1] %v719
      %v721 = vld [vmem:[#allocation8 + $0x4] sm:$0x1]
      %v722 = vsel %vm668, 0, %v721
      %723 = vst [vmem:[#allocation8 + $0x4] sm:$0x1] %v722
      %v724 = vld [vmem:[%s652] sm:$0xf]
      %v725 = vld [vmem:[%s652 + $0x4] sm:$0xf]
      %vm726 = vsmask.f32 4368
      %vm727 = vmor %vm662, %vm726
      %v729 = vshrl.u32 %v724, 16
      %v731 = vrot.slane %v729, 7
      %v732 = vshll.u32 %v724, 16
      %v734 = vor.u32 %v731, %v732
      %v735 = vrot.slane %v731, 4
      %v737 = vshrl.u32 %v725, 16
      %v739 = vrot.slane %v737, 7
      %v740 = vshll.u32 %v725, 16
      %v742 = vor.u32 %v739, %v740
      %v743 = vsel %vm727, %v735, %v742
      %v744 = vrot.slane %v739, 4
      %vm748 = vcmask 1043456
      %vm749 = vmand %vm748, %vm667
      %v750 = vld [vmem:[#allocation2] sm:$0xf]
      %v751 = vsel %vm749, %v734, %v750
      %752 = vst [vmem:[#allocation2] sm:$0xf] %v751
      %753 = vst [vmem:[#allocation2 + $0x4] sm:$0xf] %v743
      %v754 = vld [vmem:[#allocation2 + $0x8] sm:$0x1]
      %v755 = vsel %vm663, %v744, %v754
      %756 = vst [vmem:[#allocation2 + $0x8] sm:$0x1] %v755
      %v757 = vld [vmem:[#allocation2] sm:$0xf]
      %v758 = vld [vmem:[#allocation2 + $0x4] sm:$0xf]
      %v759 = vld [vmem:[%s1] sm:$0xf]
      %v760 = vld [vmem:[%s1 + $0x4] sm:$0xf]
      %v761 = vld [vmem:[%s1 + $0x8] sm:$0xf]
      %v762 = vld [vmem:[%s1 + $0xc] sm:$0xf]
      %v763 = vld [vmem:[%s1 + $0x10] sm:$0xf]
      %v764 = vld [vmem:[%s1 + $0x14] sm:$0xf]
      %v765 = vld [vmem:[%s1 + $0x18] sm:$0xf]
      %v766 = vld [vmem:[%s1 + $0x1c] sm:$0xf]
      %v767 = vld [vmem:[%s1 + $0x20] sm:$0xf]
      %v768 = vld [vmem:[%s1 + $0x24] sm:$0xf]
      %v769 = vld [vmem:[%s1 + $0x28] sm:$0xf]
      %v770 = vld [vmem:[%s1 + $0x2c] sm:$0xf]
      %v771 = vld [vmem:[%s1 + $0x30] sm:$0xf]
      %v772 = vld [vmem:[%s1 + $0x34] sm:$0xf]
      %v773 = vld [vmem:[%s1 + $0x38] sm:$0xf]
      %v774 = vld [vmem:[%s1 + $0x3c] sm:$0xf]
      %v775 = vld [vmem:[#allocation2 + $0x8] sm:$0x1]
      %s776 = scalar_lea.vmem %s1, 64
      %v777 = vld [vmem:[%s776] sm:$0xf]
      %v778 = vld [vmem:[%s776 + $0x4] sm:$0xf]
      %v779 = vld [vmem:[%s776 + $0x8] sm:$0xf]
      %v780 = vld [vmem:[%s776 + $0xc] sm:$0xf]
      %v781 = vld [vmem:[%s776 + $0x10] sm:$0xf]
      %v782 = vld [vmem:[%s776 + $0x14] sm:$0xf]
      %v783 = vld [vmem:[%s776 + $0x18] sm:$0xf]
      %v784 = vld [vmem:[%s776 + $0x1c] sm:$0xf]
      %v785 = vld [vmem:[%s776 + $0x20] sm:$0xf]
      %v786 = vld [vmem:[%s776 + $0x24] sm:$0xf]
      %v787 = vld [vmem:[%s776 + $0x28] sm:$0xf]
      %v788 = vld [vmem:[%s776 + $0x2c] sm:$0xf]
      %v789 = vld [vmem:[%s776 + $0x30] sm:$0xf]
      %v790 = vld [vmem:[%s776 + $0x34] sm:$0xf]
      %v791 = vld [vmem:[%s776 + $0x38] sm:$0xf]
      %v792 = vld [vmem:[%s776 + $0x3c] sm:$0xf]
      %v796 = vunpack.c.l.b16 %v757
      %v797 = vunpack.c.l.b16 %v758
      %v798 = vunpack.c.l.b16 %v775
      %v799 = vpack.c.b16 %v797, %v796
      %v800 = vpack.c.b16 %v798, %v798
      %vm801 = vsmask.f32 7424
      %v803 = vshrl.u32 %v799, 16
      %v805 = vshll.u32 %v799, 16
      %v807 = vrot.slane %v805, 1
      %v808 = vor.u32 %v803, %v807
      %v810 = vshll.u32 %v800, 16
      %v812 = vrot.slane %v810, 1
      %v813 = vsel %vm801, %v808, %v812
      %v831 = vunpack.c.l.b16 %v777
      %v832 = vunpack.c.l.b16 %v778
      %v833 = vunpack.c.l.b16 %v779
      %v834 = vunpack.c.l.b16 %v780
      %v835 = vunpack.c.l.b16 %v781
      %v836 = vunpack.c.l.b16 %v782
      %v837 = vunpack.c.l.b16 %v783
      %v838 = vunpack.c.l.b16 %v784
      %v839 = vunpack.c.l.b16 %v785
      %v840 = vunpack.c.l.b16 %v786
      %v841 = vunpack.c.l.b16 %v787
      %v842 = vunpack.c.l.b16 %v788
      %v843 = vunpack.c.l.b16 %v789
      %v844 = vunpack.c.l.b16 %v790
      %v845 = vunpack.c.l.b16 %v791
      %v846 = vunpack.c.l.b16 %v792
      %v847 = vpack.c.b16 %v832, %v831
      %v848 = vpack.c.b16 %v834, %v833
      %v849 = vpack.c.b16 %v836, %v835
      %v850 = vpack.c.b16 %v838, %v837
      %v851 = vpack.c.b16 %v840, %v839
      %v852 = vpack.c.b16 %v842, %v841
      %v853 = vpack.c.b16 %v844, %v843
      %v854 = vpack.c.b16 %v846, %v845
      %863 = vmatprep.subr.bf16.mxu0 0
      %864 = vmatpush1.bf16.msra.mxu0 %v847
      %865 = vmatprep.subr.bf16.mxu0 0
      %866 = vmatpush1.bf16.msra.mxu0 %v848
      %867 = vmatprep.subr.bf16.mxu0 0
      %868 = vmatpush1.bf16.msra.mxu0 %v849
      %869 = vmatprep.subr.bf16.mxu0 0
      %870 = vmatpush1.bf16.msra.mxu0 %v850
      %871 = vmatprep.subr.bf16.mxu0 0
      %872 = vmatpush1.bf16.msra.mxu0 %v851
      %873 = vmatprep.subr.bf16.mxu0 0
      %874 = vmatpush1.bf16.msra.mxu0 %v852
      %875 = vmatprep.subr.bf16.mxu0 0
      %876 = vmatpush1.bf16.msra.mxu0 %v853
      %877 = vmatprep.subr.bf16.mxu0 0
      %878 = vmatpush1.bf16.msra.mxu0 %v854
      %879 = vmatprep.subr.bf16.mxu0 0
      %880 = vmatpush1.bf16.msra.mxu0 0
      %881 = vmatprep.subr.bf16.mxu0 0
      %882 = vmatpush1.bf16.msra.mxu0 0
      %883 = vmatprep.subr.bf16.mxu0 0
      %884 = vmatpush1.bf16.msra.mxu0 0
      %885 = vmatprep.subr.bf16.mxu0 0
      %886 = vmatpush1.bf16.msra.mxu0 0
      %887 = vmatprep.subr.bf16.mxu0 0
      %888 = vmatpush1.bf16.msra.mxu0 0
      %889 = vmatprep.subr.bf16.mxu0 0
      %890 = vmatpush1.bf16.msra.mxu0 0
      %891 = vmatprep.subr.bf16.mxu0 0
      %892 = vmatpush1.bf16.msra.mxu0 0
      %893 = vmatprep.subr.bf16.mxu0 0
      %894 = vmatpush1.bf16.msra.mxu0 0
      %895 = vmatprep.mubr.bf16.mxu0 0
      %896 = vmatmul.mubr.bf16.gmra.mrb[0].mxu0 %v813
      %v897 = vpop.f32.mrb[0].mxu0
      %v898 = vadd.f32 0.0, %v897
      %v899 = vpop.f32.mrb[0].mxu0
      %v900 = vpop.f32.mrb[0].mxu0
      %v901 = vadd.f32 0.0, %v900
      %v902 = vpop.f32.mrb[0].mxu0
      %903 = vdwg.mxu0
      %v921 = vunpack.c.l.b16 %v759
      %v922 = vunpack.c.l.b16 %v760
      %v923 = vunpack.c.l.b16 %v761
      %v924 = vunpack.c.l.b16 %v762
      %v925 = vunpack.c.l.b16 %v763
      %v926 = vunpack.c.l.b16 %v764
      %v927 = vunpack.c.l.b16 %v765
      %v928 = vunpack.c.l.b16 %v766
      %v929 = vunpack.c.l.b16 %v767
      %v930 = vunpack.c.l.b16 %v768
      %v931 = vunpack.c.l.b16 %v769
      %v932 = vunpack.c.l.b16 %v770
      %v933 = vunpack.c.l.b16 %v771
      %v934 = vunpack.c.l.b16 %v772
      %v935 = vunpack.c.l.b16 %v773
      %v936 = vunpack.c.l.b16 %v774
      %v937 = vpack.c.b16 %v922, %v921
      %v938 = vpack.c.b16 %v924, %v923
      %v939 = vpack.c.b16 %v926, %v925
      %v940 = vpack.c.b16 %v928, %v927
      %v941 = vpack.c.b16 %v930, %v929
      %v942 = vpack.c.b16 %v932, %v931
      %v943 = vpack.c.b16 %v934, %v933
      %v944 = vpack.c.b16 %v936, %v935
      %953 = vmatprep.subr.bf16.mxu0 0
      %954 = vmatpush1.bf16.msra.mxu0 %v937
      %955 = vmatprep.subr.bf16.mxu0 0
      %956 = vmatpush1.bf16.msra.mxu0 %v938
      %957 = vmatprep.subr.bf16.mxu0 0
      %958 = vmatpush1.bf16.msra.mxu0 %v939
      %959 = vmatprep.subr.bf16.mxu0 0
      %960 = vmatpush1.bf16.msra.mxu0 %v940
      %961 = vmatprep.subr.bf16.mxu0 0
      %962 = vmatpush1.bf16.msra.mxu0 %v941
      %963 = vmatprep.subr.bf16.mxu0 0
      %964 = vmatpush1.bf16.msra.mxu0 %v942
      %965 = vmatprep.subr.bf16.mxu0 0
      %966 = vmatpush1.bf16.msra.mxu0 %v943
      %967 = vmatprep.subr.bf16.mxu0 0
      %968 = vmatpush1.bf16.msra.mxu0 %v944
      %969 = vmatprep.subr.bf16.mxu0 0
      %970 = vmatpush1.bf16.msra.mxu0 0
      %971 = vmatprep.subr.bf16.mxu0 0
      %972 = vmatpush1.bf16.msra.mxu0 0
      %973 = vmatprep.subr.bf16.mxu0 0
      %974 = vmatpush1.bf16.msra.mxu0 0
      %975 = vmatprep.subr.bf16.mxu0 0
      %976 = vmatpush1.bf16.msra.mxu0 0
      %977 = vmatprep.subr.bf16.mxu0 0
      %978 = vmatpush1.bf16.msra.mxu0 0
      %979 = vmatprep.subr.bf16.mxu0 0
      %980 = vmatpush1.bf16.msra.mxu0 0
      %981 = vmatprep.subr.bf16.mxu0 0
      %982 = vmatpush1.bf16.msra.mxu0 0
      %983 = vmatprep.subr.bf16.mxu0 0
      %984 = vmatpush1.bf16.msra.mxu0 0
      %985 = vmatprep.mubr.bf16.mxu0 0
      %986 = vmatmul.mubr.bf16.gmra.mrb[0].mxu0 %v799
      %v987 = vpop.f32.mrb[0].mxu0
      %v988 = vadd.f32 %v898, %v987
      %v989 = vpop.f32.mrb[0].mxu0
      %v990 = vpop.f32.mrb[0].mxu0
      %v991 = vadd.f32 %v901, %v990
      %v992 = vpop.f32.mrb[0].mxu0
      %993 = vdwg.mxu0
      %v994 = vld [vmem:[#allocation2] sm:$0xe]
      %s995 = scalar_lea.vmem %s1, 128
      %v996 = vld [vmem:[%s995] sm:$0xf]
      %v997 = vld [vmem:[%s995 + $0x4] sm:$0xf]
      %v998 = vld [vmem:[%s995 + $0x8] sm:$0xf]
      %v999 = vld [vmem:[%s995 + $0xc] sm:$0xf]
      %v1000 = vld [vmem:[%s995 + $0x10] sm:$0xf]
      %v1001 = vld [vmem:[%s995 + $0x14] sm:$0xf]
      %v1002 = vld [vmem:[%s995 + $0x18] sm:$0xf]
      %v1003 = vld [vmem:[%s995 + $0x1c] sm:$0xf]
      %v1004 = vld [vmem:[%s995 + $0x20] sm:$0xf]
      %v1005 = vld [vmem:[%s995 + $0x24] sm:$0xf]
      %v1006 = vld [vmem:[%s995 + $0x28] sm:$0xf]
      %v1007 = vld [vmem:[%s995 + $0x2c] sm:$0xf]
      %v1008 = vld [vmem:[%s995 + $0x30] sm:$0xf]
      %v1009 = vld [vmem:[%s995 + $0x34] sm:$0xf]
      %v1010 = vld [vmem:[%s995 + $0x38] sm:$0xf]
      %v1011 = vld [vmem:[%s995 + $0x3c] sm:$0xf]
      %v1013 = vunpack.c.l.b16 %v994
      %v1014 = vpack.c.b16 %v797, %v1013
      %vm1015 = vcmask 1046528
      %v1016 = vrot.slane %v1014, 1
      %v1017 = vrot.slane %v800, 1
      %v1018 = vsel %vm1015, %v1016, %v1017
      %v1036 = vunpack.c.l.b16 %v996
      %v1037 = vunpack.c.l.b16 %v997
      %v1038 = vunpack.c.l.b16 %v998
      %v1039 = vunpack.c.l.b16 %v999
      %v1040 = vunpack.c.l.b16 %v1000
      %v1041 = vunpack.c.l.b16 %v1001
      %v1042 = vunpack.c.l.b16 %v1002
      %v1043 = vunpack.c.l.b16 %v1003
      %v1044 = vunpack.c.l.b16 %v1004
      %v1045 = vunpack.c.l.b16 %v1005
      %v1046 = vunpack.c.l.b16 %v1006
      %v1047 = vunpack.c.l.b16 %v1007
      %v1048 = vunpack.c.l.b16 %v1008
      %v1049 = vunpack.c.l.b16 %v1009
      %v1050 = vunpack.c.l.b16 %v1010
      %v1051 = vunpack.c.l.b16 %v1011
      %v1052 = vpack.c.b16 %v1037, %v1036
      %v1053 = vpack.c.b16 %v1039, %v1038
      %v1054 = vpack.c.b16 %v1041, %v1040
      %v1055 = vpack.c.b16 %v1043, %v1042
      %v1056 = vpack.c.b16 %v1045, %v1044
      %v1057 = vpack.c.b16 %v1047, %v1046
      %v1058 = vpack.c.b16 %v1049, %v1048
      %v1059 = vpack.c.b16 %v1051, %v1050
      %1068 = vmatprep.subr.bf16.mxu0 0
      %1069 = vmatpush1.bf16.msra.mxu0 %v1052
      %1070 = vmatprep.subr.bf16.mxu0 0
      %1071 = vmatpush1.bf16.msra.mxu0 %v1053
      %1072 = vmatprep.subr.bf16.mxu0 0
      %1073 = vmatpush1.bf16.msra.mxu0 %v1054
      %1074 = vmatprep.subr.bf16.mxu0 0
      %1075 = vmatpush1.bf16.msra.mxu0 %v1055
      %1076 = vmatprep.subr.bf16.mxu0 0
      %1077 = vmatpush1.bf16.msra.mxu0 %v1056
      %1078 = vmatprep.subr.bf16.mxu0 0
      %1079 = vmatpush1.bf16.msra.mxu0 %v1057
      %1080 = vmatprep.subr.bf16.mxu0 0
      %1081 = vmatpush1.bf16.msra.mxu0 %v1058
      %1082 = vmatprep.subr.bf16.mxu0 0
      %1083 = vmatpush1.bf16.msra.mxu0 %v1059
      %1084 = vmatprep.subr.bf16.mxu0 0
      %1085 = vmatpush1.bf16.msra.mxu0 0
      %1086 = vmatprep.subr.bf16.mxu0 0
      %1087 = vmatpush1.bf16.msra.mxu0 0
      %1088 = vmatprep.subr.bf16.mxu0 0
      %1089 = vmatpush1.bf16.msra.mxu0 0
      %1090 = vmatprep.subr.bf16.mxu0 0
      %1091 = vmatpush1.bf16.msra.mxu0 0
      %1092 = vmatprep.subr.bf16.mxu0 0
      %1093 = vmatpush1.bf16.msra.mxu0 0
      %1094 = vmatprep.subr.bf16.mxu0 0
      %1095 = vmatpush1.bf16.msra.mxu0 0
      %1096 = vmatprep.subr.bf16.mxu0 0
      %1097 = vmatpush1.bf16.msra.mxu0 0
      %1098 = vmatprep.subr.bf16.mxu0 0
      %1099 = vmatpush1.bf16.msra.mxu0 0
      %1100 = vmatprep.mubr.bf16.mxu0 0
      %1101 = vmatmul.mubr.bf16.gmra.mrb[0].mxu0 %v1018
      %v1102 = vpop.f32.mrb[0].mxu0
      %v1103 = vadd.f32 0.0, %v1102
      %v1104 = vpop.f32.mrb[0].mxu0
      %v1105 = vpop.f32.mrb[0].mxu0
      %v1106 = vadd.f32 0.0, %v1105
      %v1107 = vpop.f32.mrb[0].mxu0
      %1108 = vdwg.mxu0
      %v1109 = vadd.f32 %v988, %v1103
      %v1110 = vadd.f32 %v991, %v1106
      %v1111 = vld [vmem:[%s2] sm:$0x1]
      %v1113 = vlaneseq
      %v1114 = vshrl.u32 %v1113, 7
      %v1115 = vsub.s32 0, %v1114
      %v1116 = vrot.slane %v1111, %v1115
      %v1118 = vadd.f32 %v1109, %v1116
      %v1119 = vadd.f32 %v1110, %v1116
      %v1120 = vmax.f32 %v1118, 0.0
      %v1121 = vmax.f32 %v1119, 0.0
      %v1122 = vpack.c.bf16 %v1121, %v1120
      %v1124 = vunpack.c.l.b16 %v1122
      %v1125 = vunpack.c.h.b16 %v1122
      %v1126 = vpack.c.b16 %v1124, %v1124
      %v1127 = vpack.c.b16 %v1125, %v1125
      %v1129 = vshrl.u32 %v1126, 16
      %v1131 = vrot.slane %v1129, 7
      %v1132 = vshll.u32 %v1126, 16
      %v1134 = vor.u32 %v1131, %v1132
      %v1135 = vrot.slane %v1131, 4
      %v1137 = vshrl.u32 %v1127, 16
      %v1139 = vrot.slane %v1137, 7
      %v1140 = vshll.u32 %v1127, 16
      %v1142 = vor.u32 %v1139, %v1140
      %v1143 = vsel %vm727, %v1135, %v1142
      %v1144 = vrot.slane %v1139, 4
      %v1148 = vld [vmem:[#allocation3] sm:$0xf]
      %v1149 = vsel %vm749, %v1134, %v1148
      %1150 = vst [vmem:[#allocation3] sm:$0xf] %v1149
      %1151 = vst [vmem:[#allocation3 + $0x4] sm:$0xf] %v1143
      %v1152 = vld [vmem:[#allocation3 + $0x8] sm:$0x1]
      %v1153 = vsel %vm663, %v1144, %v1152
      %1154 = vst [vmem:[#allocation3 + $0x8] sm:$0x1] %v1153
      %v1155 = vld [vmem:[#allocation3] sm:$0xf]
      %v1156 = vld [vmem:[#allocation3 + $0x4] sm:$0xf]
      %v1157 = vld [vmem:[%s3] sm:$0xf]
      %v1158 = vld [vmem:[%s3 + $0x4] sm:$0xf]
      %v1159 = vld [vmem:[%s3 + $0x8] sm:$0xf]
      %v1160 = vld [vmem:[%s3 + $0xc] sm:$0xf]
      %v1161 = vld [vmem:[%s3 + $0x10] sm:$0xf]
      %v1162 = vld [vmem:[%s3 + $0x14] sm:$0xf]
      %v1163 = vld [vmem:[%s3 + $0x18] sm:$0xf]
      %v1164 = vld [vmem:[%s3 + $0x1c] sm:$0xf]
      %v1165 = vld [vmem:[%s3 + $0x20] sm:$0xf]
      %v1166 = vld [vmem:[%s3 + $0x24] sm:$0xf]
      %v1167 = vld [vmem:[%s3 + $0x28] sm:$0xf]
      %v1168 = vld [vmem:[%s3 + $0x2c] sm:$0xf]
      %v1169 = vld [vmem:[%s3 + $0x30] sm:$0xf]
      %v1170 = vld [vmem:[%s3 + $0x34] sm:$0xf]
      %v1171 = vld [vmem:[%s3 + $0x38] sm:$0xf]
      %v1172 = vld [vmem:[%s3 + $0x3c] sm:$0xf]
      %v1173 = vld [vmem:[#allocation3 + $0x8] sm:$0x1]
      %s1174 = scalar_lea.vmem %s3, 64
      %v1175 = vld [vmem:[%s1174] sm:$0xf]
      %v1176 = vld [vmem:[%s1174 + $0x4] sm:$0xf]
      %v1177 = vld [vmem:[%s1174 + $0x8] sm:$0xf]
      %v1178 = vld [vmem:[%s1174 + $0xc] sm:$0xf]
      %v1179 = vld [vmem:[%s1174 + $0x10] sm:$0xf]
      %v1180 = vld [vmem:[%s1174 + $0x14] sm:$0xf]
      %v1181 = vld [vmem:[%s1174 + $0x18] sm:$0xf]
      %v1182 = vld [vmem:[%s1174 + $0x1c] sm:$0xf]
      %v1183 = vld [vmem:[%s1174 + $0x20] sm:$0xf]
      %v1184 = vld [vmem:[%s1174 + $0x24] sm:$0xf]
      %v1185 = vld [vmem:[%s1174 + $0x28] sm:$0xf]
      %v1186 = vld [vmem:[%s1174 + $0x2c] sm:$0xf]
      %v1187 = vld [vmem:[%s1174 + $0x30] sm:$0xf]
      %v1188 = vld [vmem:[%s1174 + $0x34] sm:$0xf]
      %v1189 = vld [vmem:[%s1174 + $0x38] sm:$0xf]
      %v1190 = vld [vmem:[%s1174 + $0x3c] sm:$0xf]
      %v1194 = vunpack.c.l.b16 %v1155
      %v1195 = vunpack.c.l.b16 %v1156
      %v1196 = vunpack.c.l.b16 %v1173
      %v1197 = vpack.c.b16 %v1195, %v1194
      %v1198 = vpack.c.b16 %v1196, %v1196
      %v1200 = vshrl.u32 %v1197, 16
      %v1202 = vshll.u32 %v1197, 16
      %v1204 = vrot.slane %v1202, 1
      %v1205 = vor.u32 %v1200, %v1204
      %v1207 = vshll.u32 %v1198, 16
      %v1209 = vrot.slane %v1207, 1
      %v1210 = vsel %vm801, %v1205, %v1209
      %v1228 = vunpack.c.l.b16 %v1175
      %v1229 = vunpack.c.l.b16 %v1176
      %v1230 = vunpack.c.l.b16 %v1177
      %v1231 = vunpack.c.l.b16 %v1178
      %v1232 = vunpack.c.l.b16 %v1179
      %v1233 = vunpack.c.l.b16 %v1180
      %v1234 = vunpack.c.l.b16 %v1181
      %v1235 = vunpack.c.l.b16 %v1182
      %v1236 = vunpack.c.l.b16 %v1183
      %v1237 = vunpack.c.l.b16 %v1184
      %v1238 = vunpack.c.l.b16 %v1185
      %v1239 = vunpack.c.l.b16 %v1186
      %v1240 = vunpack.c.l.b16 %v1187
      %v1241 = vunpack.c.l.b16 %v1188
      %v1242 = vunpack.c.l.b16 %v1189
      %v1243 = vunpack.c.l.b16 %v1190
      %v1244 = vpack.c.b16 %v1229, %v1228
      %v1245 = vpack.c.b16 %v1231, %v1230
      %v1246 = vpack.c.b16 %v1233, %v1232
      %v1247 = vpack.c.b16 %v1235, %v1234
      %v1248 = vpack.c.b16 %v1237, %v1236
      %v1249 = vpack.c.b16 %v1239, %v1238
      %v1250 = vpack.c.b16 %v1241, %v1240
      %v1251 = vpack.c.b16 %v1243, %v1242
      %1260 = vmatprep.subr.bf16.mxu0 0
      %1261 = vmatpush1.bf16.msra.mxu0 %v1244
      %1262 = vmatprep.subr.bf16.mxu0 0
      %1263 = vmatpush1.bf16.msra.mxu0 %v1245
      %1264 = vmatprep.subr.bf16.mxu0 0
      %1265 = vmatpush1.bf16.msra.mxu0 %v1246
      %1266 = vmatprep.subr.bf16.mxu0 0
      %1267 = vmatpush1.bf16.msra.mxu0 %v1247
      %1268 = vmatprep.subr.bf16.mxu0 0
      %1269 = vmatpush1.bf16.msra.mxu0 %v1248
      %1270 = vmatprep.subr.bf16.mxu0 0
      %1271 = vmatpush1.bf16.msra.mxu0 %v1249
      %1272 = vmatprep.subr.bf16.mxu0 0
      %1273 = vmatpush1.bf16.msra.mxu0 %v1250
      %1274 = vmatprep.subr.bf16.mxu0 0
      %1275 = vmatpush1.bf16.msra.mxu0 %v1251
      %1276 = vmatprep.subr.bf16.mxu0 0
      %1277 = vmatpush1.bf16.msra.mxu0 0
      %1278 = vmatprep.subr.bf16.mxu0 0
      %1279 = vmatpush1.bf16.msra.mxu0 0
      %1280 = vmatprep.subr.bf16.mxu0 0
      %1281 = vmatpush1.bf16.msra.mxu0 0
      %1282 = vmatprep.subr.bf16.mxu0 0
      %1283 = vmatpush1.bf16.msra.mxu0 0
      %1284 = vmatprep.subr.bf16.mxu0 0
      %1285 = vmatpush1.bf16.msra.mxu0 0
      %1286 = vmatprep.subr.bf16.mxu0 0
      %1287 = vmatpush1.bf16.msra.mxu0 0
      %1288 = vmatprep.subr.bf16.mxu0 0
      %1289 = vmatpush1.bf16.msra.mxu0 0
      %1290 = vmatprep.subr.bf16.mxu0 0
      %1291 = vmatpush1.bf16.msra.mxu0 0
      %1292 = vmatprep.mubr.bf16.mxu0 0
      %1293 = vmatmul.mubr.bf16.gmra.mrb[0].mxu0 %v1210
      %v1294 = vpop.f32.mrb[0].mxu0
      %v1295 = vadd.f32 0.0, %v1294
      %v1296 = vpop.f32.mrb[0].mxu0
      %v1297 = vpop.f32.mrb[0].mxu0
      %v1298 = vadd.f32 0.0, %v1297
      %v1299 = vpop.f32.mrb[0].mxu0
      %1300 = vdwg.mxu0
      %v1318 = vunpack.c.l.b16 %v1157
      %v1319 = vunpack.c.l.b16 %v1158
      %v1320 = vunpack.c.l.b16 %v1159
      %v1321 = vunpack.c.l.b16 %v1160
      %v1322 = vunpack.c.l.b16 %v1161
      %v1323 = vunpack.c.l.b16 %v1162
      %v1324 = vunpack.c.l.b16 %v1163
      %v1325 = vunpack.c.l.b16 %v1164
      %v1326 = vunpack.c.l.b16 %v1165
      %v1327 = vunpack.c.l.b16 %v1166
      %v1328 = vunpack.c.l.b16 %v1167
      %v1329 = vunpack.c.l.b16 %v1168
      %v1330 = vunpack.c.l.b16 %v1169
      %v1331 = vunpack.c.l.b16 %v1170
      %v1332 = vunpack.c.l.b16 %v1171
      %v1333 = vunpack.c.l.b16 %v1172
      %v1334 = vpack.c.b16 %v1319, %v1318
      %v1335 = vpack.c.b16 %v1321, %v1320
      %v1336 = vpack.c.b16 %v1323, %v1322
      %v1337 = vpack.c.b16 %v1325, %v1324
      %v1338 = vpack.c.b16 %v1327, %v1326
      %v1339 = vpack.c.b16 %v1329, %v1328
      %v1340 = vpack.c.b16 %v1331, %v1330
      %v1341 = vpack.c.b16 %v1333, %v1332
      %1350 = vmatprep.subr.bf16.mxu0 0
      %1351 = vmatpush1.bf16.msra.mxu0 %v1334
      %1352 = vmatprep.subr.bf16.mxu0 0
      %1353 = vmatpush1.bf16.msra.mxu0 %v1335
      %1354 = vmatprep.subr.bf16.mxu0 0
      %1355 = vmatpush1.bf16.msra.mxu0 %v1336
      %1356 = vmatprep.subr.bf16.mxu0 0
      %1357 = vmatpush1.bf16.msra.mxu0 %v1337
      %1358 = vmatprep.subr.bf16.mxu0 0
      %1359 = vmatpush1.bf16.msra.mxu0 %v1338
      %1360 = vmatprep.subr.bf16.mxu0 0
      %1361 = vmatpush1.bf16.msra.mxu0 %v1339
      %1362 = vmatprep.subr.bf16.mxu0 0
      %1363 = vmatpush1.bf16.msra.mxu0 %v1340
      %1364 = vmatprep.subr.bf16.mxu0 0
      %1365 = vmatpush1.bf16.msra.mxu0 %v1341
      %1366 = vmatprep.subr.bf16.mxu0 0
      %1367 = vmatpush1.bf16.msra.mxu0 0
      %1368 = vmatprep.subr.bf16.mxu0 0
      %1369 = vmatpush1.bf16.msra.mxu0 0
      %1370 = vmatprep.subr.bf16.mxu0 0
      %1371 = vmatpush1.bf16.msra.mxu0 0
      %1372 = vmatprep.subr.bf16.mxu0 0
      %1373 = vmatpush1.bf16.msra.mxu0 0
      %1374 = vmatprep.subr.bf16.mxu0 0
      %1375 = vmatpush1.bf16.msra.mxu0 0
      %1376 = vmatprep.subr.bf16.mxu0 0
      %1377 = vmatpush1.bf16.msra.mxu0 0
      %1378 = vmatprep.subr.bf16.mxu0 0
      %1379 = vmatpush1.bf16.msra.mxu0 0
      %1380 = vmatprep.subr.bf16.mxu0 0
      %1381 = vmatpush1.bf16.msra.mxu0 0
      %1382 = vmatprep.mubr.bf16.mxu0 0
      %1383 = vmatmul.mubr.bf16.gmra.mrb[0].mxu0 %v1197
      %v1384 = vpop.f32.mrb[0].mxu0
      %v1385 = vadd.f32 %v1295, %v1384
      %v1386 = vpop.f32.mrb[0].mxu0
      %v1387 = vpop.f32.mrb[0].mxu0
      %v1388 = vadd.f32 %v1298, %v1387
      %v1389 = vpop.f32.mrb[0].mxu0
      %1390 = vdwg.mxu0
      %v1391 = vld [vmem:[#allocation3] sm:$0xe]
      %s1392 = scalar_lea.vmem %s3, 128
      %v1393 = vld [vmem:[%s1392] sm:$0xf]
      %v1394 = vld [vmem:[%s1392 + $0x4] sm:$0xf]
      %v1395 = vld [vmem:[%s1392 + $0x8] sm:$0xf]
      %v1396 = vld [vmem:[%s1392 + $0xc] sm:$0xf]
      %v1397 = vld [vmem:[%s1392 + $0x10] sm:$0xf]
      %v1398 = vld [vmem:[%s1392 + $0x14] sm:$0xf]
      %v1399 = vld [vmem:[%s1392 + $0x18] sm:$0xf]
      %v1400 = vld [vmem:[%s1392 + $0x1c] sm:$0xf]
      %v1401 = vld [vmem:[%s1392 + $0x20] sm:$0xf]
      %v1402 = vld [vmem:[%s1392 + $0x24] sm:$0xf]
      %v1403 = vld [vmem:[%s1392 + $0x28] sm:$0xf]
      %v1404 = vld [vmem:[%s1392 + $0x2c] sm:$0xf]
      %v1405 = vld [vmem:[%s1392 + $0x30] sm:$0xf]
      %v1406 = vld [vmem:[%s1392 + $0x34] sm:$0xf]
      %v1407 = vld [vmem:[%s1392 + $0x38] sm:$0xf]
      %v1408 = vld [vmem:[%s1392 + $0x3c] sm:$0xf]
      %v1410 = vunpack.c.l.b16 %v1391
      %v1411 = vpack.c.b16 %v1195, %v1410
      %v1412 = vrot.slane %v1411, 1
      %v1413 = vrot.slane %v1198, 1
      %v1414 = vsel %vm1015, %v1412, %v1413
      %v1432 = vunpack.c.l.b16 %v1393
      %v1433 = vunpack.c.l.b16 %v1394
      %v1434 = vunpack.c.l.b16 %v1395
      %v1435 = vunpack.c.l.b16 %v1396
      %v1436 = vunpack.c.l.b16 %v1397
      %v1437 = vunpack.c.l.b16 %v1398
      %v1438 = vunpack.c.l.b16 %v1399
      %v1439 = vunpack.c.l.b16 %v1400
      %v1440 = vunpack.c.l.b16 %v1401
      %v1441 = vunpack.c.l.b16 %v1402
      %v1442 = vunpack.c.l.b16 %v1403
      %v1443 = vunpack.c.l.b16 %v1404
      %v1444 = vunpack.c.l.b16 %v1405
      %v1445 = vunpack.c.l.b16 %v1406
      %v1446 = vunpack.c.l.b16 %v1407
      %v1447 = vunpack.c.l.b16 %v1408
      %v1448 = vpack.c.b16 %v1433, %v1432
      %v1449 = vpack.c.b16 %v1435, %v1434
      %v1450 = vpack.c.b16 %v1437, %v1436
      %v1451 = vpack.c.b16 %v1439, %v1438
      %v1452 = vpack.c.b16 %v1441, %v1440
      %v1453 = vpack.c.b16 %v1443, %v1442
      %v1454 = vpack.c.b16 %v1445, %v1444
      %v1455 = vpack.c.b16 %v1447, %v1446
      %1464 = vmatprep.subr.bf16.mxu0 0
      %1465 = vmatpush1.bf16.msra.mxu0 %v1448
      %1466 = vmatprep.subr.bf16.mxu0 0
      %1467 = vmatpush1.bf16.msra.mxu0 %v1449
      %1468 = vmatprep.subr.bf16.mxu0 0
      %1469 = vmatpush1.bf16.msra.mxu0 %v1450
      %1470 = vmatprep.subr.bf16.mxu0 0
      %1471 = vmatpush1.bf16.msra.mxu0 %v1451
      %1472 = vmatprep.subr.bf16.mxu0 0
      %1473 = vmatpush1.bf16.msra.mxu0 %v1452
      %1474 = vmatprep.subr.bf16.mxu0 0
      %1475 = vmatpush1.bf16.msra.mxu0 %v1453
      %1476 = vmatprep.subr.bf16.mxu0 0
      %1477 = vmatpush1.bf16.msra.mxu0 %v1454
      %1478 = vmatprep.subr.bf16.mxu0 0
      %1479 = vmatpush1.bf16.msra.mxu0 %v1455
      %1480 = vmatprep.subr.bf16.mxu0 0
      %1481 = vmatpush1.bf16.msra.mxu0 0
      %1482 = vmatprep.subr.bf16.mxu0 0
      %1483 = vmatpush1.bf16.msra.mxu0 0
      %1484 = vmatprep.subr.bf16.mxu0 0
      %1485 = vmatpush1.bf16.msra.mxu0 0
      %1486 = vmatprep.subr.bf16.mxu0 0
      %1487 = vmatpush1.bf16.msra.mxu0 0
      %1488 = vmatprep.subr.bf16.mxu0 0
      %1489 = vmatpush1.bf16.msra.mxu0 0
      %1490 = vmatprep.subr.bf16.mxu0 0
      %1491 = vmatpush1.bf16.msra.mxu0 0
      %1492 = vmatprep.subr.bf16.mxu0 0
      %1493 = vmatpush1.bf16.msra.mxu0 0
      %1494 = vmatprep.subr.bf16.mxu0 0
      %1495 = vmatpush1.bf16.msra.mxu0 0
      %1496 = vmatprep.mubr.bf16.mxu0 0
      %1497 = vmatmul.mubr.bf16.gmra.mrb[0].mxu0 %v1414
      %v1498 = vpop.f32.mrb[0].mxu0
      %v1499 = vadd.f32 0.0, %v1498
      %v1500 = vpop.f32.mrb[0].mxu0
      %v1501 = vpop.f32.mrb[0].mxu0
      %v1502 = vadd.f32 0.0, %v1501
      %v1503 = vpop.f32.mrb[0].mxu0
      %1504 = vdwg.mxu0
      %v1505 = vadd.f32 %v1385, %v1499
      %v1506 = vadd.f32 %v1388, %v1502
      %v1507 = vld [vmem:[%s4] sm:$0x1]
      %v1509 = vlaneseq
      %v1510 = vshrl.u32 %v1509, 7
      %v1511 = vsub.s32 0, %v1510
      %v1512 = vrot.slane %v1507, %v1511
      %v1514 = vadd.f32 %v1505, %v1512
      %v1515 = vadd.f32 %v1506, %v1512
      %v1516 = vmax.f32 %v1514, 0.0
      %v1517 = vmax.f32 %v1515, 0.0
      %v1518 = vpack.c.bf16 %v1517, %v1516
      %v1520 = vunpack.c.l.b16 %v1518
      %v1521 = vunpack.c.h.b16 %v1518
      %v1522 = vpack.c.b16 %v1520, %v1520
      %v1523 = vpack.c.b16 %v1521, %v1521
      %v1525 = vshrl.u32 %v1522, 16
      %v1527 = vrot.slane %v1525, 7
      %v1528 = vshll.u32 %v1522, 16
      %v1530 = vor.u32 %v1527, %v1528
      %v1531 = vrot.slane %v1527, 4
      %v1533 = vshrl.u32 %v1523, 16
      %v1535 = vrot.slane %v1533, 7
      %v1536 = vshll.u32 %v1523, 16
      %v1538 = vor.u32 %v1535, %v1536
      %v1539 = vsel %vm727, %v1531, %v1538
      %v1540 = vrot.slane %v1535, 4
      %v1544 = vld [vmem:[#allocation4 + $0x8] sm:$0xf]
      %v1545 = vsel %vm749, %v1530, %v1544
      %1546 = vst [vmem:[#allocation4 + $0x8] sm:$0xf] %v1545
      %1547 = vst [vmem:[#allocation4 + $0x14] sm:$0xf] %v1539
      %v1548 = vld [vmem:[#allocation4 + $0x20] sm:$0x1]
      %v1549 = vsel %vm663, %v1540, %v1548
      %1550 = vst [vmem:[#allocation4 + $0x20] sm:$0x1] %v1549
      %v1551 = vld [vmem:[#allocation4 + $0x8] sm:$0xf]
      %v1552 = vld [vmem:[#allocation4 + $0x14] sm:$0xf]
      %v1553 = vld [vmem:[#allocation4 + $0x20] sm:$0x1]
      %v1554 = vld [vmem:[%s15] sm:$0xf]
      %v1558 = vunpack.c.l.b16 %v1551
      %v1559 = vunpack.c.l.b16 %v1552
      %v1560 = vunpack.c.l.b16 %v1553
      %v1561 = vpack.c.b16 %v1559, %v1558
      %v1562 = vpack.c.b16 %v1560, %v1560
      %v1564 = vshrl.u32 %v1561, 16
      %v1566 = vshll.u32 %v1561, 16
      %v1568 = vrot.slane %v1566, 1
      %v1569 = vor.u32 %v1564, %v1568
      %v1571 = vshll.u32 %v1562, 16
      %v1573 = vrot.slane %v1571, 1
      %v1574 = vsel %vm801, %v1569, %v1573
      %vm1576 = vcmask 130048
      %v1578 = vsel %vm1576, %v1554, 0
      %1580 = vmatprep.subr.bf16.mxu0 0
      %1581 = vmatpush1.bf16.msra.mxu0 %v1574
      %1582 = vmatprep.subr.bf16.mxu0 0
      %1583 = vmatpush1.bf16.msra.mxu0 0
      %1584 = vmatprep.subr.bf16.mxu0 0
      %1585 = vmatpush1.bf16.msra.mxu0 0
      %1586 = vmatprep.subr.bf16.mxu0 0
      %1587 = vmatpush1.bf16.msra.mxu0 0
      %1588 = vmatprep.subr.bf16.mxu0 0
      %1589 = vmatpush1.bf16.msra.mxu0 0
      %1590 = vmatprep.subr.bf16.mxu0 0
      %1591 = vmatpush1.bf16.msra.mxu0 0
      %1592 = vmatprep.subr.bf16.mxu0 0
      %1593 = vmatpush1.bf16.msra.mxu0 0
      %1594 = vmatprep.subr.bf16.mxu0 0
      %1595 = vmatpush1.bf16.msra.mxu0 0
      %1596 = vmatprep.subr.bf16.mxu0 0
      %1597 = vmatpush1.bf16.msra.mxu0 0
      %1598 = vmatprep.subr.bf16.mxu0 0
      %1599 = vmatpush1.bf16.msra.mxu0 0
      %1600 = vmatprep.subr.bf16.mxu0 0
      %1601 = vmatpush1.bf16.msra.mxu0 0
      %1602 = vmatprep.subr.bf16.mxu0 0
      %1603 = vmatpush1.bf16.msra.mxu0 0
      %1604 = vmatprep.subr.bf16.mxu0 0
      %1605 = vmatpush1.bf16.msra.mxu0 0
      %1606 = vmatprep.subr.bf16.mxu0 0
      %1607 = vmatpush1.bf16.msra.mxu0 0
      %1608 = vmatprep.subr.bf16.mxu0 0
      %1609 = vmatpush1.bf16.msra.mxu0 0
      %1610 = vmatprep.subr.bf16.mxu0 0
      %1611 = vmatpush1.bf16.msra.mxu0 0
      %1612 = vmatprep.mubr.bf16.mxu0 0
      %1613 = vmatmul.mubr.bf16.gmra.mrb[0].mxu0 %v1578
      %v1614 = vpop.f32.mrb[0].mxu0
      %v1615 = vadd.f32 0.0, %v1614
      %v1616 = vpop.f32.mrb[0].mxu0
      %v1617 = vpop.f32.mrb[0].mxu0
      %v1618 = vpop.f32.mrb[0].mxu0
      %1619 = vdwg.mxu0
      %v1620 = vld [vmem:[%s16] sm:$0xf]
      %v1622 = vsel %vm1576, %v1620, 0
      %1624 = vmatprep.subr.bf16.mxu0 0
      %1625 = vmatpush1.bf16.msra.mxu0 %v1574
      %1626 = vmatprep.subr.bf16.mxu0 0
      %1627 = vmatpush1.bf16.msra.mxu0 0
      %1628 = vmatprep.subr.bf16.mxu0 0
      %1629 = vmatpush1.bf16.msra.mxu0 0
      %1630 = vmatprep.subr.bf16.mxu0 0
      %1631 = vmatpush1.bf16.msra.mxu0 0
      %1632 = vmatprep.subr.bf16.mxu0 0
      %1633 = vmatpush1.bf16.msra.mxu0 0
      %1634 = vmatprep.subr.bf16.mxu0 0
      %1635 = vmatpush1.bf16.msra.mxu0 0
      %1636 = vmatprep.subr.bf16.mxu0 0
      %1637 = vmatpush1.bf16.msra.mxu0 0
      %1638 = vmatprep.subr.bf16.mxu0 0
      %1639 = vmatpush1.bf16.msra.mxu0 0
      %1640 = vmatprep.subr.bf16.mxu0 0
      %1641 = vmatpush1.bf16.msra.mxu0 0
      %1642 = vmatprep.subr.bf16.mxu0 0
      %1643 = vmatpush1.bf16.msra.mxu0 0
      %1644 = vmatprep.subr.bf16.mxu0 0
      %1645 = vmatpush1.bf16.msra.mxu0 0
      %1646 = vmatprep.subr.bf16.mxu0 0
      %1647 = vmatpush1.bf16.msra.mxu0 0
      %1648 = vmatprep.subr.bf16.mxu0 0
      %1649 = vmatpush1.bf16.msra.mxu0 0
      %1650 = vmatprep.subr.bf16.mxu0 0
      %1651 = vmatpush1.bf16.msra.mxu0 0
      %1652 = vmatprep.subr.bf16.mxu0 0
      %1653 = vmatpush1.bf16.msra.mxu0 0
      %1654 = vmatprep.subr.bf16.mxu0 0
      %1655 = vmatpush1.bf16.msra.mxu0 0
      %1656 = vmatprep.mubr.bf16.mxu0 0
      %1657 = vmatmul.mubr.bf16.gmra.mrb[0].mxu0 %v1622
      %v1658 = vpop.f32.mrb[0].mxu0
      %v1659 = vadd.f32 0.0, %v1658
      %v1660 = vpop.f32.mrb[0].mxu0
      %v1661 = vpop.f32.mrb[0].mxu0
      %v1662 = vpop.f32.mrb[0].mxu0
      %1663 = vdwg.mxu0
      %v1664 = vmax.f32 %v1615, %v1659
      %v1665 = vpack.c.bf16 %v1664, %v1664
      %v1666 = vld [vmem:[%s17] sm:$0xf]
      %v1667 = vld [vmem:[%s17 + $0x4] sm:$0xf]
      %v1668 = vld [vmem:[%s17 + $0x8] sm:$0xf]
      %v1669 = vld [vmem:[%s17 + $0xc] sm:$0xf]
      %v1670 = vld [vmem:[%s17 + $0x10] sm:$0xf]
      %v1671 = vld [vmem:[%s17 + $0x14] sm:$0xf]
      %v1672 = vld [vmem:[%s17 + $0x18] sm:$0xf]
      %v1673 = vld [vmem:[%s17 + $0x1c] sm:$0xf]
      %v1674 = vld [vmem:[%s17 + $0x20] sm:$0xf]
      %v1675 = vld [vmem:[%s17 + $0x24] sm:$0xf]
      %v1676 = vld [vmem:[%s17 + $0x28] sm:$0xf]
      %v1677 = vld [vmem:[%s17 + $0x2c] sm:$0xf]
      %v1678 = vld [vmem:[%s17 + $0x30] sm:$0xf]
      %v1679 = vld [vmem:[%s17 + $0x34] sm:$0xf]
      %v1680 = vld [vmem:[%s17 + $0x38] sm:$0xf]
      %v1681 = vld [vmem:[%s17 + $0x3c] sm:$0xf]
      %v1698 = vunpack.c.l.b16 %v1666
      %v1699 = vunpack.c.l.b16 %v1667
      %v1700 = vunpack.c.l.b16 %v1668
      %v1701 = vunpack.c.l.b16 %v1669
      %v1702 = vunpack.c.l.b16 %v1670
      %v1703 = vunpack.c.l.b16 %v1671
      %v1704 = vunpack.c.l.b16 %v1672
      %v1705 = vunpack.c.l.b16 %v1673
      %v1706 = vunpack.c.l.b16 %v1674
      %v1707 = vunpack.c.l.b16 %v1675
      %v1708 = vunpack.c.l.b16 %v1676
      %v1709 = vunpack.c.l.b16 %v1677
      %v1710 = vunpack.c.l.b16 %v1678
      %v1711 = vunpack.c.l.b16 %v1679
      %v1712 = vunpack.c.l.b16 %v1680
      %v1713 = vunpack.c.l.b16 %v1681
      %v1714 = vpack.c.b16 %v1699, %v1698
      %v1715 = vpack.c.b16 %v1701, %v1700
      %v1716 = vpack.c.b16 %v1703, %v1702
      %v1717 = vpack.c.b16 %v1705, %v1704
      %v1718 = vpack.c.b16 %v1707, %v1706
      %v1719 = vpack.c.b16 %v1709, %v1708
      %v1720 = vpack.c.b16 %v1711, %v1710
      %v1721 = vpack.c.b16 %v1713, %v1712
      %1730 = vmatprep.subr.bf16.mxu0 0
      %1731 = vmatpush1.bf16.msra.mxu0 %v1714
      %1732 = vmatprep.subr.bf16.mxu0 0
      %1733 = vmatpush1.bf16.msra.mxu0 %v1715
      %1734 = vmatprep.subr.bf16.mxu0 0
      %1735 = vmatpush1.bf16.msra.mxu0 %v1716
      %1736 = vmatprep.subr.bf16.mxu0 0
      %1737 = vmatpush1.bf16.msra.mxu0 %v1717
      %1738 = vmatprep.subr.bf16.mxu0 0
      %1739 = vmatpush1.bf16.msra.mxu0 %v1718
      %1740 = vmatprep.subr.bf16.mxu0 0
      %1741 = vmatpush1.bf16.msra.mxu0 %v1719
      %1742 = vmatprep.subr.bf16.mxu0 0
      %1743 = vmatpush1.bf16.msra.mxu0 %v1720
      %1744 = vmatprep.subr.bf16.mxu0 0
      %1745 = vmatpush1.bf16.msra.mxu0 %v1721
      %1746 = vmatprep.subr.bf16.mxu0 0
      %1747 = vmatpush1.bf16.msra.mxu0 0
      %1748 = vmatprep.subr.bf16.mxu0 0
      %1749 = vmatpush1.bf16.msra.mxu0 0
      %1750 = vmatprep.subr.bf16.mxu0 0
      %1751 = vmatpush1.bf16.msra.mxu0 0
      %1752 = vmatprep.subr.bf16.mxu0 0
      %1753 = vmatpush1.bf16.msra.mxu0 0
      %1754 = vmatprep.subr.bf16.mxu0 0
      %1755 = vmatpush1.bf16.msra.mxu0 0
      %1756 = vmatprep.subr.bf16.mxu0 0
      %1757 = vmatpush1.bf16.msra.mxu0 0
      %1758 = vmatprep.subr.bf16.mxu0 0
      %1759 = vmatpush1.bf16.msra.mxu0 0
      %1760 = vmatprep.subr.bf16.mxu0 0
      %1761 = vmatpush1.bf16.msra.mxu0 0
      %1762 = vmatprep.mubr.bf16.mxu0 0
      %1763 = vmatmul.mubr.bf16.gmra.mrb[0].mxu0 %v1665
      %v1764 = vpop.f32.mrb[0].mxu0
      %v1765 = vadd.f32 0.0, %v1764
      %v1766 = vpop.f32.mrb[0].mxu0
      %v1767 = vpop.f32.mrb[0].mxu0
      %v1768 = vpop.f32.mrb[0].mxu0
      %1769 = vdwg.mxu0
      %v1770 = vld [vmem:[%s18] sm:$0xf]
      %v1771 = vld [vmem:[%s18 + $0x4] sm:$0xf]
      %v1772 = vld [vmem:[%s18 + $0x8] sm:$0xf]
      %v1773 = vld [vmem:[%s18 + $0xc] sm:$0xf]
      %v1774 = vld [vmem:[%s18 + $0x10] sm:$0xf]
      %v1775 = vld [vmem:[%s18 + $0x14] sm:$0xf]
      %v1776 = vld [vmem:[%s18 + $0x18] sm:$0xf]
      %v1777 = vld [vmem:[%s18 + $0x1c] sm:$0xf]
      %v1778 = vld [vmem:[%s18 + $0x20] sm:$0xf]
      %v1779 = vld [vmem:[%s18 + $0x24] sm:$0xf]
      %v1780 = vld [vmem:[%s18 + $0x28] sm:$0xf]
      %v1781 = vld [vmem:[%s18 + $0x2c] sm:$0xf]
      %v1782 = vld [vmem:[%s18 + $0x30] sm:$0xf]
      %v1783 = vld [vmem:[%s18 + $0x34] sm:$0xf]
      %v1784 = vld [vmem:[%s18 + $0x38] sm:$0xf]
      %v1785 = vld [vmem:[%s18 + $0x3c] sm:$0xf]
      %v1802 = vunpack.c.l.b16 %v1770
      %v1803 = vunpack.c.l.b16 %v1771
      %v1804 = vunpack.c.l.b16 %v1772
      %v1805 = vunpack.c.l.b16 %v1773
      %v1806 = vunpack.c.l.b16 %v1774
      %v1807 = vunpack.c.l.b16 %v1775
      %v1808 = vunpack.c.l.b16 %v1776
      %v1809 = vunpack.c.l.b16 %v1777
      %v1810 = vunpack.c.l.b16 %v1778
      %v1811 = vunpack.c.l.b16 %v1779
      %v1812 = vunpack.c.l.b16 %v1780
      %v1813 = vunpack.c.l.b16 %v1781
      %v1814 = vunpack.c.l.b16 %v1782
      %v1815 = vunpack.c.l.b16 %v1783
      %v1816 = vunpack.c.l.b16 %v1784
      %v1817 = vunpack.c.l.b16 %v1785
      %v1818 = vpack.c.b16 %v1803, %v1802
      %v1819 = vpack.c.b16 %v1805, %v1804
      %v1820 = vpack.c.b16 %v1807, %v1806
      %v1821 = vpack.c.b16 %v1809, %v1808
      %v1822 = vpack.c.b16 %v1811, %v1810
      %v1823 = vpack.c.b16 %v1813, %v1812
      %v1824 = vpack.c.b16 %v1815, %v1814
      %v1825 = vpack.c.b16 %v1817, %v1816
      %1834 = vmatprep.subr.bf16.mxu0 0
      %1835 = vmatpush1.bf16.msra.mxu0 %v1818
      %1836 = vmatprep.subr.bf16.mxu0 0
      %1837 = vmatpush1.bf16.msra.mxu0 %v1819
      %1838 = vmatprep.subr.bf16.mxu0 0
      %1839 = vmatpush1.bf16.msra.mxu0 %v1820
      %1840 = vmatprep.subr.bf16.mxu0 0
      %1841 = vmatpush1.bf16.msra.mxu0 %v1821
      %1842 = vmatprep.subr.bf16.mxu0 0
      %1843 = vmatpush1.bf16.msra.mxu0 %v1822
      %1844 = vmatprep.subr.bf16.mxu0 0
      %1845 = vmatpush1.bf16.msra.mxu0 %v1823
      %1846 = vmatprep.subr.bf16.mxu0 0
      %1847 = vmatpush1.bf16.msra.mxu0 %v1824
      %1848 = vmatprep.subr.bf16.mxu0 0
      %1849 = vmatpush1.bf16.msra.mxu0 %v1825
      %1850 = vmatprep.subr.bf16.mxu0 0
      %1851 = vmatpush1.bf16.msra.mxu0 0
      %1852 = vmatprep.subr.bf16.mxu0 0
      %1853 = vmatpush1.bf16.msra.mxu0 0
      %1854 = vmatprep.subr.bf16.mxu0 0
      %1855 = vmatpush1.bf16.msra.mxu0 0
      %1856 = vmatprep.subr.bf16.mxu0 0
      %1857 = vmatpush1.bf16.msra.mxu0 0
      %1858 = vmatprep.subr.bf16.mxu0 0
      %1859 = vmatpush1.bf16.msra.mxu0 0
      %1860 = vmatprep.subr.bf16.mxu0 0
      %1861 = vmatpush1.bf16.msra.mxu0 0
      %1862 = vmatprep.subr.bf16.mxu0 0
      %1863 = vmatpush1.bf16.msra.mxu0 0
      %1864 = vmatprep.subr.bf16.mxu0 0
      %1865 = vmatpush1.bf16.msra.mxu0 0
      %1866 = vmatprep.mubr.bf16.mxu0 0
      %1867 = vmatmul.mubr.bf16.gmra.mrb[0].mxu0 %v1665
      %v1868 = vpop.f32.mrb[0].mxu0
      %v1869 = vadd.f32 0.0, %v1868
      %v1870 = vpop.f32.mrb[0].mxu0
      %v1871 = vpop.f32.mrb[0].mxu0
      %v1872 = vpop.f32.mrb[0].mxu0
      %1873 = vdwg.mxu0
      %v1874 = vmax.f32 %v1765, %v1869
      %v1875 = vpack.c.bf16 %v1874, %v1874
      %v1877 = vunpack.c.l.b16 %v1875
      %v1878 = vpack.c.b16 %v1877, %v1877
      %v1880 = vshrl.u32 %v1878, 16
      %v1882 = vrot.slane %v1880, 7
      %v1883 = vshll.u32 %v1878, 16
      %v1885 = vor.u32 %v1882, %v1883
      %v1886 = vrot.slane %v1882, 4
      %vm1889 = vcmask 519168
      %vm1890 = vmand %vm1889, %vm667
      %v1891 = vld [vmem:[#allocation7] sm:$0xf]
      %v1892 = vsel %vm1890, %v1885, %v1891
      %1893 = vst [vmem:[#allocation7] sm:$0xf] %v1892
      %v1894 = vld [vmem:[#allocation7 + $0x4] sm:$0x1]
      %v1895 = vsel %vm710, %v1886, %v1894
      %1896 = vst [vmem:[#allocation7 + $0x4] sm:$0x1] %v1895
      %v1897 = vld [vmem:[#allocation7] sm:$0xf]
      %v1898 = vld [vmem:[%s5] sm:$0xf]
      %v1899 = vld [vmem:[%s5 + $0x4] sm:$0xf]
      %v1900 = vld [vmem:[%s5 + $0x8] sm:$0xf]
      %v1901 = vld [vmem:[%s5 + $0xc] sm:$0xf]
      %v1902 = vld [vmem:[%s5 + $0x10] sm:$0xf]
      %v1903 = vld [vmem:[%s5 + $0x14] sm:$0xf]
      %v1904 = vld [vmem:[%s5 + $0x18] sm:$0xf]
      %v1905 = vld [vmem:[%s5 + $0x1c] sm:$0xf]
      %v1906 = vld [vmem:[#allocation7 + $0x4] sm:$0x1]
      %s1907 = scalar_lea.vmem %s5, 32
      %v1908 = vld [vmem:[%s1907] sm:$0xf]
      %v1909 = vld [vmem:[%s1907 + $0x4] sm:$0xf]
      %v1910 = vld [vmem:[%s1907 + $0x8] sm:$0xf]
      %v1911 = vld [vmem:[%s1907 + $0xc] sm:$0xf]
      %v1912 = vld [vmem:[%s1907 + $0x10] sm:$0xf]
      %v1913 = vld [vmem:[%s1907 + $0x14] sm:$0xf]
      %v1914 = vld [vmem:[%s1907 + $0x18] sm:$0xf]
      %v1915 = vld [vmem:[%s1907 + $0x1c] sm:$0xf]
      %v1918 = vunpack.c.l.b16 %v1897
      %v1919 = vunpack.c.l.b16 %v1906
      %v1920 = vpack.c.b16 %v1919, %v1918
      %v1922 = vshrl.u32 %v1920, 16
      %v1924 = vshll.u32 %v1920, 16
      %v1926 = vrot.slane %v1924, 1
      %v1927 = vor.u32 %v1922, %v1926
      %v1936 = vunpack.c.l.b16 %v1908
      %v1937 = vunpack.c.l.b16 %v1909
      %v1938 = vunpack.c.l.b16 %v1910
      %v1939 = vunpack.c.l.b16 %v1911
      %v1940 = vunpack.c.l.b16 %v1912
      %v1941 = vunpack.c.l.b16 %v1913
      %v1942 = vunpack.c.l.b16 %v1914
      %v1943 = vunpack.c.l.b16 %v1915
      %v1944 = vpack.c.b16 %v1937, %v1936
      %v1945 = vpack.c.b16 %v1939, %v1938
      %v1946 = vpack.c.b16 %v1941, %v1940
      %v1947 = vpack.c.b16 %v1943, %v1942
      %vm1952 = vcmask 523264
      %v1954 = vsel %vm1952, %v1927, 0
      %1956 = vmatprep.subr.bf16.mxu0 0
      %1957 = vmatpush1.bf16.msra.mxu0 %v1944
      %1958 = vmatprep.subr.bf16.mxu0 0
      %1959 = vmatpush1.bf16.msra.mxu0 %v1945
      %1960 = vmatprep.subr.bf16.mxu0 0
      %1961 = vmatpush1.bf16.msra.mxu0 %v1946
      %1962 = vmatprep.subr.bf16.mxu0 0
      %1963 = vmatpush1.bf16.msra.mxu0 %v1947
      %1964 = vmatprep.subr.bf16.mxu0 0
      %1965 = vmatpush1.bf16.msra.mxu0 0
      %1966 = vmatprep.subr.bf16.mxu0 0
      %1967 = vmatpush1.bf16.msra.mxu0 0
      %1968 = vmatprep.subr.bf16.mxu0 0
      %1969 = vmatpush1.bf16.msra.mxu0 0
      %1970 = vmatprep.subr.bf16.mxu0 0
      %1971 = vmatpush1.bf16.msra.mxu0 0
      %1972 = vmatprep.subr.bf16.mxu0 0
      %1973 = vmatpush1.bf16.msra.mxu0 0
      %1974 = vmatprep.subr.bf16.mxu0 0
      %1975 = vmatpush1.bf16.msra.mxu0 0
      %1976 = vmatprep.subr.bf16.mxu0 0
      %1977 = vmatpush1.bf16.msra.mxu0 0
      %1978 = vmatprep.subr.bf16.mxu0 0
      %1979 = vmatpush1.bf16.msra.mxu0 0
      %1980 = vmatprep.subr.bf16.mxu0 0
      %1981 = vmatpush1.bf16.msra.mxu0 0
      %1982 = vmatprep.subr.bf16.mxu0 0
      %1983 = vmatpush1.bf16.msra.mxu0 0
      %1984 = vmatprep.subr.bf16.mxu0 0
      %1985 = vmatpush1.bf16.msra.mxu0 0
      %1986 = vmatprep.subr.bf16.mxu0 0
      %1987 = vmatpush1.bf16.msra.mxu0 0
      %1988 = vmatprep.mubr.bf16.mxu0 0
      %1989 = vmatmul.mubr.bf16.gmra.mrb[0].mxu0 %v1954
      %v1990 = vpop.f32.mrb[0].mxu0
      %v1991 = vadd.f32 0.0, %v1990
      %v1992 = vpop.f32.mrb[0].mxu0
      %v1993 = vpop.f32.mrb[0].mxu0
      %v1994 = vpop.f32.mrb[0].mxu0
      %1995 = vdwg.mxu0
      %v2004 = vunpack.c.l.b16 %v1898
      %v2005 = vunpack.c.l.b16 %v1899
      %v2006 = vunpack.c.l.b16 %v1900
      %v2007 = vunpack.c.l.b16 %v1901
      %v2008 = vunpack.c.l.b16 %v1902
      %v2009 = vunpack.c.l.b16 %v1903
      %v2010 = vunpack.c.l.b16 %v1904
      %v2011 = vunpack.c.l.b16 %v1905
      %v2012 = vpack.c.b16 %v2005, %v2004
      %v2013 = vpack.c.b16 %v2007, %v2006
      %v2014 = vpack.c.b16 %v2009, %v2008
      %v2015 = vpack.c.b16 %v2011, %v2010
      %v2021 = vsel %vm1952, %v1897, 0
      %2023 = vmatprep.subr.bf16.mxu0 0
      %2024 = vmatpush1.bf16.msra.mxu0 %v2012
      %2025 = vmatprep.subr.bf16.mxu0 0
      %2026 = vmatpush1.bf16.msra.mxu0 %v2013
      %2027 = vmatprep.subr.bf16.mxu0 0
      %2028 = vmatpush1.bf16.msra.mxu0 %v2014
      %2029 = vmatprep.subr.bf16.mxu0 0
      %2030 = vmatpush1.bf16.msra.mxu0 %v2015
      %2031 = vmatprep.subr.bf16.mxu0 0
      %2032 = vmatpush1.bf16.msra.mxu0 0
      %2033 = vmatprep.subr.bf16.mxu0 0
      %2034 = vmatpush1.bf16.msra.mxu0 0
      %2035 = vmatprep.subr.bf16.mxu0 0
      %2036 = vmatpush1.bf16.msra.mxu0 0
      %2037 = vmatprep.subr.bf16.mxu0 0
      %2038 = vmatpush1.bf16.msra.mxu0 0
      %2039 = vmatprep.subr.bf16.mxu0 0
      %2040 = vmatpush1.bf16.msra.mxu0 0
      %2041 = vmatprep.subr.bf16.mxu0 0
      %2042 = vmatpush1.bf16.msra.mxu0 0
      %2043 = vmatprep.subr.bf16.mxu0 0
      %2044 = vmatpush1.bf16.msra.mxu0 0
      %2045 = vmatprep.subr.bf16.mxu0 0
      %2046 = vmatpush1.bf16.msra.mxu0 0
      %2047 = vmatprep.subr.bf16.mxu0 0
      %2048 = vmatpush1.bf16.msra.mxu0 0
      %2049 = vmatprep.subr.bf16.mxu0 0
      %2050 = vmatpush1.bf16.msra.mxu0 0
      %2051 = vmatprep.subr.bf16.mxu0 0
      %2052 = vmatpush1.bf16.msra.mxu0 0
      %2053 = vmatprep.subr.bf16.mxu0 0
      %2054 = vmatpush1.bf16.msra.mxu0 0
      %2055 = vmatprep.mubr.bf16.mxu0 0
      %2056 = vmatmul.mubr.bf16.gmra.mrb[0].mxu0 %v2021
      %v2057 = vpop.f32.mrb[0].mxu0
      %v2058 = vadd.f32 %v1991, %v2057
      %v2059 = vpop.f32.mrb[0].mxu0
      %v2060 = vpop.f32.mrb[0].mxu0
      %v2061 = vpop.f32.mrb[0].mxu0
      %2062 = vdwg.mxu0
      %v2063 = vld [vmem:[#allocation7] sm:$0xe]
      %s2064 = scalar_lea.vmem %s5, 64
      %v2065 = vld [vmem:[%s2064] sm:$0xf]
      %v2066 = vld [vmem:[%s2064 + $0x4] sm:$0xf]
      %v2067 = vld [vmem:[%s2064 + $0x8] sm:$0xf]
      %v2068 = vld [vmem:[%s2064 + $0xc] sm:$0xf]
      %v2069 = vld [vmem:[%s2064 + $0x10] sm:$0xf]
      %v2070 = vld [vmem:[%s2064 + $0x14] sm:$0xf]
      %v2071 = vld [vmem:[%s2064 + $0x18] sm:$0xf]
      %v2072 = vld [vmem:[%s2064 + $0x1c] sm:$0xf]
      %v2074 = vunpack.c.l.b16 %v2063
      %v2075 = vpack.c.b16 %v1919, %v2074
      %v2076 = vrot.slane %v2075, 1
      %v2085 = vunpack.c.l.b16 %v2065
      %v2086 = vunpack.c.l.b16 %v2066
      %v2087 = vunpack.c.l.b16 %v2067
      %v2088 = vunpack.c.l.b16 %v2068
      %v2089 = vunpack.c.l.b16 %v2069
      %v2090 = vunpack.c.l.b16 %v2070
      %v2091 = vunpack.c.l.b16 %v2071
      %v2092 = vunpack.c.l.b16 %v2072
      %v2093 = vpack.c.b16 %v2086, %v2085
      %v2094 = vpack.c.b16 %v2088, %v2087
      %v2095 = vpack.c.b16 %v2090, %v2089
      %v2096 = vpack.c.b16 %v2092, %v2091
      %v2102 = vsel %vm1952, %v2076, 0
      %2104 = vmatprep.subr.bf16.mxu0 0
      %2105 = vmatpush1.bf16.msra.mxu0 %v2093
      %2106 = vmatprep.subr.bf16.mxu0 0
      %2107 = vmatpush1.bf16.msra.mxu0 %v2094
      %2108 = vmatprep.subr.bf16.mxu0 0
      %2109 = vmatpush1.bf16.msra.mxu0 %v2095
      %2110 = vmatprep.subr.bf16.mxu0 0
      %2111 = vmatpush1.bf16.msra.mxu0 %v2096
      %2112 = vmatprep.subr.bf16.mxu0 0
      %2113 = vmatpush1.bf16.msra.mxu0 0
      %2114 = vmatprep.subr.bf16.mxu0 0
      %2115 = vmatpush1.bf16.msra.mxu0 0
      %2116 = vmatprep.subr.bf16.mxu0 0
      %2117 = vmatpush1.bf16.msra.mxu0 0
      %2118 = vmatprep.subr.bf16.mxu0 0
      %2119 = vmatpush1.bf16.msra.mxu0 0
      %2120 = vmatprep.subr.bf16.mxu0 0
      %2121 = vmatpush1.bf16.msra.mxu0 0
      %2122 = vmatprep.subr.bf16.mxu0 0
      %2123 = vmatpush1.bf16.msra.mxu0 0
      %2124 = vmatprep.subr.bf16.mxu0 0
      %2125 = vmatpush1.bf16.msra.mxu0 0
      %2126 = vmatprep.subr.bf16.mxu0 0
      %2127 = vmatpush1.bf16.msra.mxu0 0
      %2128 = vmatprep.subr.bf16.mxu0 0
      %2129 = vmatpush1.bf16.msra.mxu0 0
      %2130 = vmatprep.subr.bf16.mxu0 0
      %2131 = vmatpush1.bf16.msra.mxu0 0
      %2132 = vmatprep.subr.bf16.mxu0 0
      %2133 = vmatpush1.bf16.msra.mxu0 0
      %2134 = vmatprep.subr.bf16.mxu0 0
      %2135 = vmatpush1.bf16.msra.mxu0 0
      %2136 = vmatprep.mubr.bf16.mxu0 0
      %2137 = vmatmul.mubr.bf16.gmra.mrb[0].mxu0 %v2102
      %v2138 = vpop.f32.mrb[0].mxu0
      %v2139 = vadd.f32 0.0, %v2138
      %v2140 = vpop.f32.mrb[0].mxu0
      %v2141 = vpop.f32.mrb[0].mxu0
      %v2142 = vpop.f32.mrb[0].mxu0
      %2143 = vdwg.mxu0
      %v2144 = vadd.f32 %v2058, %v2139
      %v2145 = vld [vmem:[%s6] sm:$0x1]
      %v2147 = vlaneseq
      %v2148 = vshrl.u32 %v2147, 7
      %v2149 = vsub.s32 0, %v2148
      %v2150 = vrot.slane %v2145, %v2149
      %v2152 = vadd.f32 %v2144, %v2150
      %v2153 = vmax.f32 %v2152, 0.0
      %v2154 = vpack.c.bf16 %v2153, %v2153
      %v2156 = vunpack.c.l.b16 %v2154
      %v2157 = vpack.c.b16 %v2156, %v2156
      %v2159 = vshrl.u32 %v2157, 16
      %v2161 = vrot.slane %v2159, 7
      %v2162 = vshll.u32 %v2157, 16
      %v2164 = vor.u32 %v2161, %v2162
      %v2165 = vrot.slane %v2161, 4
      %v2168 = vld [vmem:[#allocation8] sm:$0xf]
      %v2169 = vsel %vm749, %v2164, %v2168
      %2170 = vst [vmem:[#allocation8] sm:$0xf] %v2169
      %v2171 = vld [vmem:[#allocation8 + $0x4] sm:$0x1]
      %v2172 = vsel %vm663, %v2165, %v2171
      %2173 = vst [vmem:[#allocation8 + $0x4] sm:$0x1] %v2172
      %v2174 = vld [vmem:[#allocation8] sm:$0xf]
      %v2175 = vld [vmem:[%s7] sm:$0xf]
      %v2176 = vld [vmem:[%s7 + $0x4] sm:$0xf]
      %v2177 = vld [vmem:[%s7 + $0x8] sm:$0xf]
      %v2178 = vld [vmem:[%s7 + $0xc] sm:$0xf]
      %v2179 = vld [vmem:[%s7 + $0x10] sm:$0xf]
      %v2180 = vld [vmem:[%s7 + $0x14] sm:$0xf]
      %v2181 = vld [vmem:[%s7 + $0x18] sm:$0xf]
      %v2182 = vld [vmem:[%s7 + $0x1c] sm:$0xf]
      %v2183 = vld [vmem:[%s7 + $0x20] sm:$0xf]
      %v2184 = vld [vmem:[%s7 + $0x24] sm:$0xf]
      %v2185 = vld [vmem:[%s7 + $0x28] sm:$0xf]
      %v2186 = vld [vmem:[%s7 + $0x2c] sm:$0xf]
      %v2187 = vld [vmem:[%s7 + $0x30] sm:$0xf]
      %v2188 = vld [vmem:[%s7 + $0x34] sm:$0xf]
      %v2189 = vld [vmem:[%s7 + $0x38] sm:$0xf]
      %v2190 = vld [vmem:[%s7 + $0x3c] sm:$0xf]
      %v2191 = vld [vmem:[#allocation8 + $0x4] sm:$0x1]
      %s2192 = scalar_lea.vmem %s7, 64
      %v2193 = vld [vmem:[%s2192] sm:$0xf]
      %v2194 = vld [vmem:[%s2192 + $0x4] sm:$0xf]
      %v2195 = vld [vmem:[%s2192 + $0x8] sm:$0xf]
      %v2196 = vld [vmem:[%s2192 + $0xc] sm:$0xf]
      %v2197 = vld [vmem:[%s2192 + $0x10] sm:$0xf]
      %v2198 = vld [vmem:[%s2192 + $0x14] sm:$0xf]
      %v2199 = vld [vmem:[%s2192 + $0x18] sm:$0xf]
      %v2200 = vld [vmem:[%s2192 + $0x1c] sm:$0xf]
      %v2201 = vld [vmem:[%s2192 + $0x20] sm:$0xf]
      %v2202 = vld [vmem:[%s2192 + $0x24] sm:$0xf]
      %v2203 = vld [vmem:[%s2192 + $0x28] sm:$0xf]
      %v2204 = vld [vmem:[%s2192 + $0x2c] sm:$0xf]
      %v2205 = vld [vmem:[%s2192 + $0x30] sm:$0xf]
      %v2206 = vld [vmem:[%s2192 + $0x34] sm:$0xf]
      %v2207 = vld [vmem:[%s2192 + $0x38] sm:$0xf]
      %v2208 = vld [vmem:[%s2192 + $0x3c] sm:$0xf]
      %v2211 = vunpack.c.l.b16 %v2174
      %v2212 = vunpack.c.l.b16 %v2191
      %v2213 = vpack.c.b16 %v2212, %v2211
      %v2215 = vshrl.u32 %v2213, 16
      %v2217 = vshll.u32 %v2213, 16
      %v2219 = vrot.slane %v2217, 1
      %v2220 = vor.u32 %v2215, %v2219
      %v2238 = vunpack.c.l.b16 %v2193
      %v2239 = vunpack.c.l.b16 %v2194
      %v2240 = vunpack.c.l.b16 %v2195
      %v2241 = vunpack.c.l.b16 %v2196
      %v2242 = vunpack.c.l.b16 %v2197
      %v2243 = vunpack.c.l.b16 %v2198
      %v2244 = vunpack.c.l.b16 %v2199
      %v2245 = vunpack.c.l.b16 %v2200
      %v2246 = vunpack.c.l.b16 %v2201
      %v2247 = vunpack.c.l.b16 %v2202
      %v2248 = vunpack.c.l.b16 %v2203
      %v2249 = vunpack.c.l.b16 %v2204
      %v2250 = vunpack.c.l.b16 %v2205
      %v2251 = vunpack.c.l.b16 %v2206
      %v2252 = vunpack.c.l.b16 %v2207
      %v2253 = vunpack.c.l.b16 %v2208
      %v2254 = vpack.c.b16 %v2239, %v2238
      %v2255 = vpack.c.b16 %v2241, %v2240
      %v2256 = vpack.c.b16 %v2243, %v2242
      %v2257 = vpack.c.b16 %v2245, %v2244
      %v2258 = vpack.c.b16 %v2247, %v2246
      %v2259 = vpack.c.b16 %v2249, %v2248
      %v2260 = vpack.c.b16 %v2251, %v2250
      %v2261 = vpack.c.b16 %v2253, %v2252
      %2270 = vmatprep.subr.bf16.mxu0 0
      %2271 = vmatpush1.bf16.msra.mxu0 %v2254
      %2272 = vmatprep.subr.bf16.mxu0 0
      %2273 = vmatpush1.bf16.msra.mxu0 %v2255
      %2274 = vmatprep.subr.bf16.mxu0 0
      %2275 = vmatpush1.bf16.msra.mxu0 %v2256
      %2276 = vmatprep.subr.bf16.mxu0 0
      %2277 = vmatpush1.bf16.msra.mxu0 %v2257
      %2278 = vmatprep.subr.bf16.mxu0 0
      %2279 = vmatpush1.bf16.msra.mxu0 %v2258
      %2280 = vmatprep.subr.bf16.mxu0 0
      %2281 = vmatpush1.bf16.msra.mxu0 %v2259
      %2282 = vmatprep.subr.bf16.mxu0 0
      %2283 = vmatpush1.bf16.msra.mxu0 %v2260
      %2284 = vmatprep.subr.bf16.mxu0 0
      %2285 = vmatpush1.bf16.msra.mxu0 %v2261
      %2286 = vmatprep.subr.bf16.mxu0 0
      %2287 = vmatpush1.bf16.msra.mxu0 0
      %2288 = vmatprep.subr.bf16.mxu0 0
      %2289 = vmatpush1.bf16.msra.mxu0 0
      %2290 = vmatprep.subr.bf16.mxu0 0
      %2291 = vmatpush1.bf16.msra.mxu0 0
      %2292 = vmatprep.subr.bf16.mxu0 0
      %2293 = vmatpush1.bf16.msra.mxu0 0
      %2294 = vmatprep.subr.bf16.mxu0 0
      %2295 = vmatpush1.bf16.msra.mxu0 0
      %2296 = vmatprep.subr.bf16.mxu0 0
      %2297 = vmatpush1.bf16.msra.mxu0 0
      %2298 = vmatprep.subr.bf16.mxu0 0
      %2299 = vmatpush1.bf16.msra.mxu0 0
      %2300 = vmatprep.subr.bf16.mxu0 0
      %2301 = vmatpush1.bf16.msra.mxu0 0
      %2302 = vmatprep.mubr.bf16.mxu0 0
      %2303 = vmatmul.mubr.bf16.gmra.mrb[0].mxu0 %v2220
      %v2304 = vpop.f32.mrb[0].mxu0
      %v2305 = vadd.f32 0.0, %v2304
      %v2306 = vpop.f32.mrb[0].mxu0
      %v2307 = vpop.f32.mrb[0].mxu0
      %v2308 = vpop.f32.mrb[0].mxu0
      %2309 = vdwg.mxu0
      %v2326 = vunpack.c.l.b16 %v2175
      %v2327 = vunpack.c.l.b16 %v2176
      %v2328 = vunpack.c.l.b16 %v2177
      %v2329 = vunpack.c.l.b16 %v2178
      %v2330 = vunpack.c.l.b16 %v2179
      %v2331 = vunpack.c.l.b16 %v2180
      %v2332 = vunpack.c.l.b16 %v2181
      %v2333 = vunpack.c.l.b16 %v2182
      %v2334 = vunpack.c.l.b16 %v2183
      %v2335 = vunpack.c.l.b16 %v2184
      %v2336 = vunpack.c.l.b16 %v2185
      %v2337 = vunpack.c.l.b16 %v2186
      %v2338 = vunpack.c.l.b16 %v2187
      %v2339 = vunpack.c.l.b16 %v2188
      %v2340 = vunpack.c.l.b16 %v2189
      %v2341 = vunpack.c.l.b16 %v2190
      %v2342 = vpack.c.b16 %v2327, %v2326
      %v2343 = vpack.c.b16 %v2329, %v2328
      %v2344 = vpack.c.b16 %v2331, %v2330
      %v2345 = vpack.c.b16 %v2333, %v2332
      %v2346 = vpack.c.b16 %v2335, %v2334
      %v2347 = vpack.c.b16 %v2337, %v2336
      %v2348 = vpack.c.b16 %v2339, %v2338
      %v2349 = vpack.c.b16 %v2341, %v2340
      %2358 = vmatprep.subr.bf16.mxu0 0
      %2359 = vmatpush1.bf16.msra.mxu0 %v2342
      %2360 = vmatprep.subr.bf16.mxu0 0
      %2361 = vmatpush1.bf16.msra.mxu0 %v2343
      %2362 = vmatprep.subr.bf16.mxu0 0
      %2363 = vmatpush1.bf16.msra.mxu0 %v2344
      %2364 = vmatprep.subr.bf16.mxu0 0
      %2365 = vmatpush1.bf16.msra.mxu0 %v2345
      %2366 = vmatprep.subr.bf16.mxu0 0
      %2367 = vmatpush1.bf16.msra.mxu0 %v2346
      %2368 = vmatprep.subr.bf16.mxu0 0
      %2369 = vmatpush1.bf16.msra.mxu0 %v2347
      %2370 = vmatprep.subr.bf16.mxu0 0
      %2371 = vmatpush1.bf16.msra.mxu0 %v2348
      %2372 = vmatprep.subr.bf16.mxu0 0
      %2373 = vmatpush1.bf16.msra.mxu0 %v2349
      %2374 = vmatprep.subr.bf16.mxu0 0
      %2375 = vmatpush1.bf16.msra.mxu0 0
      %2376 = vmatprep.subr.bf16.mxu0 0
      %2377 = vmatpush1.bf16.msra.mxu0 0
      %2378 = vmatprep.subr.bf16.mxu0 0
      %2379 = vmatpush1.bf16.msra.mxu0 0
      %2380 = vmatprep.subr.bf16.mxu0 0
      %2381 = vmatpush1.bf16.msra.mxu0 0
      %2382 = vmatprep.subr.bf16.mxu0 0
      %2383 = vmatpush1.bf16.msra.mxu0 0
      %2384 = vmatprep.subr.bf16.mxu0 0
      %2385 = vmatpush1.bf16.msra.mxu0 0
      %2386 = vmatprep.subr.bf16.mxu0 0
      %2387 = vmatpush1.bf16.msra.mxu0 0
      %2388 = vmatprep.subr.bf16.mxu0 0
      %2389 = vmatpush1.bf16.msra.mxu0 0
      %2390 = vmatprep.mubr.bf16.mxu0 0
      %2391 = vmatmul.mubr.bf16.gmra.mrb[0].mxu0 %v2174
      %v2392 = vpop.f32.mrb[0].mxu0
      %v2393 = vadd.f32 %v2305, %v2392
      %v2394 = vpop.f32.mrb[0].mxu0
      %v2395 = vpop.f32.mrb[0].mxu0
      %v2396 = vpop.f32.mrb[0].mxu0
      %2397 = vdwg.mxu0
      %v2398 = vld [vmem:[#allocation8] sm:$0xe]
      %s2399 = scalar_lea.vmem %s7, 128
      %v2400 = vld [vmem:[%s2399] sm:$0xf]
      %v2401 = vld [vmem:[%s2399 + $0x4] sm:$0xf]
      %v2402 = vld [vmem:[%s2399 + $0x8] sm:$0xf]
      %v2403 = vld [vmem:[%s2399 + $0xc] sm:$0xf]
      %v2404 = vld [vmem:[%s2399 + $0x10] sm:$0xf]
      %v2405 = vld [vmem:[%s2399 + $0x14] sm:$0xf]
      %v2406 = vld [vmem:[%s2399 + $0x18] sm:$0xf]
      %v2407 = vld [vmem:[%s2399 + $0x1c] sm:$0xf]
      %v2408 = vld [vmem:[%s2399 + $0x20] sm:$0xf]
      %v2409 = vld [vmem:[%s2399 + $0x24] sm:$0xf]
      %v2410 = vld [vmem:[%s2399 + $0x28] sm:$0xf]
      %v2411 = vld [vmem:[%s2399 + $0x2c] sm:$0xf]
      %v2412 = vld [vmem:[%s2399 + $0x30] sm:$0xf]
      %v2413 = vld [vmem:[%s2399 + $0x34] sm:$0xf]
      %v2414 = vld [vmem:[%s2399 + $0x38] sm:$0xf]
      %v2415 = vld [vmem:[%s2399 + $0x3c] sm:$0xf]
      %v2417 = vunpack.c.l.b16 %v2398
      %v2418 = vpack.c.b16 %v2212, %v2417
      %v2419 = vrot.slane %v2418, 1
      %v2437 = vunpack.c.l.b16 %v2400
      %v2438 = vunpack.c.l.b16 %v2401
      %v2439 = vunpack.c.l.b16 %v2402
      %v2440 = vunpack.c.l.b16 %v2403
      %v2441 = vunpack.c.l.b16 %v2404
      %v2442 = vunpack.c.l.b16 %v2405
      %v2443 = vunpack.c.l.b16 %v2406
      %v2444 = vunpack.c.l.b16 %v2407
      %v2445 = vunpack.c.l.b16 %v2408
      %v2446 = vunpack.c.l.b16 %v2409
      %v2447 = vunpack.c.l.b16 %v2410
      %v2448 = vunpack.c.l.b16 %v2411
      %v2449 = vunpack.c.l.b16 %v2412
      %v2450 = vunpack.c.l.b16 %v2413
      %v2451 = vunpack.c.l.b16 %v2414
      %v2452 = vunpack.c.l.b16 %v2415
      %v2453 = vpack.c.b16 %v2438, %v2437
      %v2454 = vpack.c.b16 %v2440, %v2439
      %v2455 = vpack.c.b16 %v2442, %v2441
      %v2456 = vpack.c.b16 %v2444, %v2443
      %v2457 = vpack.c.b16 %v2446, %v2445
      %v2458 = vpack.c.b16 %v2448, %v2447
      %v2459 = vpack.c.b16 %v2450, %v2449
      %v2460 = vpack.c.b16 %v2452, %v2451
      %2469 = vmatprep.subr.bf16.mxu0 0
      %2470 = vmatpush1.bf16.msra.mxu0 %v2453
      %2471 = vmatprep.subr.bf16.mxu0 0
      %2472 = vmatpush1.bf16.msra.mxu0 %v2454
      %2473 = vmatprep.subr.bf16.mxu0 0
      %2474 = vmatpush1.bf16.msra.mxu0 %v2455
      %2475 = vmatprep.subr.bf16.mxu0 0
      %2476 = vmatpush1.bf16.msra.mxu0 %v2456
      %2477 = vmatprep.subr.bf16.mxu0 0
      %2478 = vmatpush1.bf16.msra.mxu0 %v2457
      %2479 = vmatprep.subr.bf16.mxu0 0
      %2480 = vmatpush1.bf16.msra.mxu0 %v2458
      %2481 = vmatprep.subr.bf16.mxu0 0
      %2482 = vmatpush1.bf16.msra.mxu0 %v2459
      %2483 = vmatprep.subr.bf16.mxu0 0
      %2484 = vmatpush1.bf16.msra.mxu0 %v2460
      %2485 = vmatprep.subr.bf16.mxu0 0
      %2486 = vmatpush1.bf16.msra.mxu0 0
      %2487 = vmatprep.subr.bf16.mxu0 0
      %2488 = vmatpush1.bf16.msra.mxu0 0
      %2489 = vmatprep.subr.bf16.mxu0 0
      %2490 = vmatpush1.bf16.msra.mxu0 0
      %2491 = vmatprep.subr.bf16.mxu0 0
      %2492 = vmatpush1.bf16.msra.mxu0 0
      %2493 = vmatprep.subr.bf16.mxu0 0
      %2494 = vmatpush1.bf16.msra.mxu0 0
      %2495 = vmatprep.subr.bf16.mxu0 0
      %2496 = vmatpush1.bf16.msra.mxu0 0
      %2497 = vmatprep.subr.bf16.mxu0 0
      %2498 = vmatpush1.bf16.msra.mxu0 0
      %2499 = vmatprep.subr.bf16.mxu0 0
      %2500 = vmatpush1.bf16.msra.mxu0 0
      %2501 = vmatprep.mubr.bf16.mxu0 0
      %2502 = vmatmul.mubr.bf16.gmra.mrb[0].mxu0 %v2419
      %v2503 = vpop.f32.mrb[0].mxu0
      %v2504 = vadd.f32 0.0, %v2503
      %v2505 = vpop.f32.mrb[0].mxu0
      %v2506 = vpop.f32.mrb[0].mxu0
      %v2507 = vpop.f32.mrb[0].mxu0
      %2508 = vdwg.mxu0
      %v2509 = vadd.f32 %v2393, %v2504
      %v2510 = vld [vmem:[%s8] sm:$0x1]
      %v2512 = vlaneseq
      %v2513 = vshrl.u32 %v2512, 7
      %v2514 = vsub.s32 0, %v2513
      %v2515 = vrot.slane %v2510, %v2514
      %v2517 = vadd.f32 %v2509, %v2515
      %v2518 = vmax.f32 %v2517, 0.0
      %v2519 = vpack.c.bf16 %v2518, %v2518
      %2520 = vst [vmem:[#allocation9] sm:$0xf] %v2519
      %v2521 = vld [vmem:[%s19] sm:$0xf]
      %v2522 = vld [vmem:[%s19 + $0x4] sm:$0xf]
      %v2523 = vld [vmem:[#allocation9] sm:$0xf]
      %v2526 = vunpack.c.l.b16 %v2521
      %v2527 = vunpack.c.l.b16 %v2522
      %v2528 = vpack.c.b16 %v2527, %v2526
      %vm2529 = vcmask 64512
      %v2531 = vsel %vm2529, %v2528, 0
      %vm2533 = vcmask 1043456
      %v2535 = vsel %vm2533, %v2523, 0
      %2537 = vmatprep.subr.bf16.mxu0 0
      %2538 = vmatpush1.bf16.msra.mxu0 %v2535
      %2539 = vmatprep.subr.bf16.mxu0 0
      %2540 = vmatpush1.bf16.msra.mxu0 0
      %2541 = vmatprep.subr.bf16.mxu0 0
      %2542 = vmatpush1.bf16.msra.mxu0 0
      %2543 = vmatprep.subr.bf16.mxu0 0
      %2544 = vmatpush1.bf16.msra.mxu0 0
      %2545 = vmatprep.subr.bf16.mxu0 0
      %2546 = vmatpush1.bf16.msra.mxu0 0
      %2547 = vmatprep.subr.bf16.mxu0 0
      %2548 = vmatpush1.bf16.msra.mxu0 0
      %2549 = vmatprep.subr.bf16.mxu0 0
      %2550 = vmatpush1.bf16.msra.mxu0 0
      %2551 = vmatprep.subr.bf16.mxu0 0
      %2552 = vmatpush1.bf16.msra.mxu0 0
      %2553 = vmatprep.subr.bf16.mxu0 0
      %2554 = vmatpush1.bf16.msra.mxu0 0
      %2555 = vmatprep.subr.bf16.mxu0 0
      %2556 = vmatpush1.bf16.msra.mxu0 0
      %2557 = vmatprep.subr.bf16.mxu0 0
      %2558 = vmatpush1.bf16.msra.mxu0 0
      %2559 = vmatprep.subr.bf16.mxu0 0
      %2560 = vmatpush1.bf16.msra.mxu0 0
      %2561 = vmatprep.subr.bf16.mxu0 0
      %2562 = vmatpush1.bf16.msra.mxu0 0
      %2563 = vmatprep.subr.bf16.mxu0 0
      %2564 = vmatpush1.bf16.msra.mxu0 0
      %2565 = vmatprep.subr.bf16.mxu0 0
      %2566 = vmatpush1.bf16.msra.mxu0 0
      %2567 = vmatprep.subr.bf16.mxu0 0
      %2568 = vmatpush1.bf16.msra.mxu0 0
      %2569 = vmatprep.mubr.bf16.mxu0 0
      %2570 = vmatmul.mubr.bf16.gmra.mrb[0].mxu0 %v2531
      %v2571 = vpop.f32.mrb[0].mxu0
      %v2572 = vadd.f32 0.0, %v2571
      %v2573 = vpop.f32.mrb[0].mxu0
      %v2574 = vpop.f32.mrb[0].mxu0
      %v2575 = vadd.f32 0.0, %v2574
      %v2576 = vpop.f32.mrb[0].mxu0
      %2577 = vdwg.mxu0
      %v2578 = vpack.c.bf16 %v2575, %v2572
      %v2579 = vld [vmem:[%s20] sm:$0xff]
      %v2580 = vld [vmem:[%s20 + $0x8] sm:$0xff]
      %v2581 = vld [vmem:[%s20 + $0x10] sm:$0xff]
      %v2582 = vld [vmem:[%s20 + $0x18] sm:$0xff]
      %v2583 = vld [vmem:[%s20 + $0x20] sm:$0xff]
      %v2584 = vld [vmem:[%s20 + $0x28] sm:$0xff]
      %v2585 = vld [vmem:[%s20 + $0x30] sm:$0xff]
      %v2586 = vld [vmem:[%s20 + $0x38] sm:$0xff]
      %v2587 = vld [vmem:[%s20 + $0x40] sm:$0xff]
      %v2588 = vld [vmem:[%s20 + $0x48] sm:$0xff]
      %v2589 = vld [vmem:[%s20 + $0x50] sm:$0xff]
      %v2590 = vld [vmem:[%s20 + $0x58] sm:$0xff]
      %v2591 = vld [vmem:[%s20 + $0x60] sm:$0xff]
      %v2592 = vld [vmem:[%s20 + $0x68] sm:$0xff]
      %v2593 = vld [vmem:[%s20 + $0x70] sm:$0xff]
      %v2594 = vld [vmem:[%s20 + $0x78] sm:$0xff]
      %v2611 = vunpack.c.l.b16 %v2579
      %v2612 = vunpack.c.h.b16 %v2579
      %v2613 = vunpack.c.l.b16 %v2580
      %v2614 = vunpack.c.h.b16 %v2580
      %v2615 = vunpack.c.l.b16 %v2581
      %v2616 = vunpack.c.h.b16 %v2581
      %v2617 = vunpack.c.l.b16 %v2582
      %v2618 = vunpack.c.h.b16 %v2582
      %v2619 = vunpack.c.l.b16 %v2583
      %v2620 = vunpack.c.h.b16 %v2583
      %v2621 = vunpack.c.l.b16 %v2584
      %v2622 = vunpack.c.h.b16 %v2584
      %v2623 = vunpack.c.l.b16 %v2585
      %v2624 = vunpack.c.h.b16 %v2585
      %v2625 = vunpack.c.l.b16 %v2586
      %v2626 = vunpack.c.h.b16 %v2586
      %v2627 = vunpack.c.l.b16 %v2587
      %v2628 = vunpack.c.h.b16 %v2587
      %v2629 = vunpack.c.l.b16 %v2588
      %v2630 = vunpack.c.h.b16 %v2588
      %v2631 = vunpack.c.l.b16 %v2589
      %v2632 = vunpack.c.h.b16 %v2589
      %v2633 = vunpack.c.l.b16 %v2590
      %v2634 = vunpack.c.h.b16 %v2590
      %v2635 = vunpack.c.l.b16 %v2591
      %v2636 = vunpack.c.h.b16 %v2591
      %v2637 = vunpack.c.l.b16 %v2592
      %v2638 = vunpack.c.h.b16 %v2592
      %v2639 = vunpack.c.l.b16 %v2593
      %v2640 = vunpack.c.h.b16 %v2593
      %v2641 = vunpack.c.l.b16 %v2594
      %v2642 = vunpack.c.h.b16 %v2594
      %v2643 = vpack.c.b16 %v2613, %v2611
      %v2644 = vpack.c.b16 %v2614, %v2612
      %v2645 = vpack.c.b16 %v2617, %v2615
      %v2646 = vpack.c.b16 %v2618, %v2616
      %v2647 = vpack.c.b16 %v2621, %v2619
      %v2648 = vpack.c.b16 %v2622, %v2620
      %v2649 = vpack.c.b16 %v2625, %v2623
      %v2650 = vpack.c.b16 %v2626, %v2624
      %v2651 = vpack.c.b16 %v2629, %v2627
      %v2652 = vpack.c.b16 %v2630, %v2628
      %v2653 = vpack.c.b16 %v2633, %v2631
      %v2654 = vpack.c.b16 %v2634, %v2632
      %v2655 = vpack.c.b16 %v2637, %v2635
      %v2656 = vpack.c.b16 %v2638, %v2636
      %v2657 = vpack.c.b16 %v2641, %v2639
      %v2658 = vpack.c.b16 %v2642, %v2640
      %2675 = vmatprep.subr.bf16.mxu0 %v2644
      %2676 = vmatpush1.bf16.msra.mxu0 %v2643
      %2677 = vmatprep.subr.bf16.mxu0 %v2646
      %2678 = vmatpush1.bf16.msra.mxu0 %v2645
      %2679 = vmatprep.subr.bf16.mxu0 %v2648
      %2680 = vmatpush1.bf16.msra.mxu0 %v2647
      %2681 = vmatprep.subr.bf16.mxu0 %v2650
      %2682 = vmatpush1.bf16.msra.mxu0 %v2649
      %2683 = vmatprep.subr.bf16.mxu0 %v2652
      %2684 = vmatpush1.bf16.msra.mxu0 %v2651
      %2685 = vmatprep.subr.bf16.mxu0 %v2654
      %2686 = vmatpush1.bf16.msra.mxu0 %v2653
      %2687 = vmatprep.subr.bf16.mxu0 %v2656
      %2688 = vmatpush1.bf16.msra.mxu0 %v2655
      %2689 = vmatprep.subr.bf16.mxu0 %v2658
      %2690 = vmatpush1.bf16.msra.mxu0 %v2657
      %2691 = vmatprep.subr.bf16.mxu0 0
      %2692 = vmatpush1.bf16.msra.mxu0 0
      %2693 = vmatprep.subr.bf16.mxu0 0
      %2694 = vmatpush1.bf16.msra.mxu0 0
      %2695 = vmatprep.subr.bf16.mxu0 0
      %2696 = vmatpush1.bf16.msra.mxu0 0
      %2697 = vmatprep.subr.bf16.mxu0 0
      %2698 = vmatpush1.bf16.msra.mxu0 0
      %2699 = vmatprep.subr.bf16.mxu0 0
      %2700 = vmatpush1.bf16.msra.mxu0 0
      %2701 = vmatprep.subr.bf16.mxu0 0
      %2702 = vmatpush1.bf16.msra.mxu0 0
      %2703 = vmatprep.subr.bf16.mxu0 0
      %2704 = vmatpush1.bf16.msra.mxu0 0
      %2705 = vmatprep.subr.bf16.mxu0 0
      %2706 = vmatpush1.bf16.msra.mxu0 0
      %2707 = vmatprep.mubr.bf16.mxu0 0
      %2708 = vmatmul.mubr.bf16.gmra.mrb[0].mxu0 %v2578
      %v2709 = vpop.f32.mrb[0].mxu0
      %v2710 = vadd.f32 0.0, %v2709
      %v2711 = vpop.f32.mrb[0].mxu0
      %v2712 = vadd.f32 0.0, %v2711
      %v2713 = vpop.f32.mrb[0].mxu0
      %v2714 = vadd.f32 0.0, %v2713
      %v2715 = vpop.f32.mrb[0].mxu0
      %v2716 = vadd.f32 0.0, %v2715
      %2717 = vdwg.mxu0
      %v2718 = vpack.c.bf16 %v2714, %v2710
      %v2719 = vpack.c.bf16 %v2716, %v2712
      %v2722 = vunpack.c.l.b16 %v2718
      %v2723 = vunpack.c.l.b16 %v2719
      %v2724 = vunpack.c.h.b16 %v2718
      %v2725 = vunpack.c.h.b16 %v2719
      %v2726 = vpack.c.b16 %v2723, %v2722
      %v2727 = vpack.c.b16 %v2725, %v2724
      %v2729 = vshrl.u32 %v2726, 16
      %v2731 = vrot.slane %v2729, 7
      %v2732 = vshll.u32 %v2726, 16
      %v2734 = vor.u32 %v2731, %v2732
      %v2735 = vrot.slane %v2731, 4
      %v2737 = vshrl.u32 %v2727, 16
      %v2739 = vrot.slane %v2737, 7
      %v2740 = vshll.u32 %v2727, 16
      %v2742 = vor.u32 %v2739, %v2740
      %v2743 = vsel %vm727, %v2735, %v2742
      %v2744 = vrot.slane %v2739, 4
      %vm2748 = vcmask 1047556
      %vm2749 = vmand %vm2748, %vm688
      %vm2750 = vmor %vm2749, %vm749
      %v2751 = vld [vmem:[#allocation4] sm:$0xff]
      %v2752 = vsel %vm2750, %v2734, %v2751
      %2753 = vst [vmem:[#allocation4] sm:$0xff] %v2752
      %2754 = vst [vmem:[#allocation4 + $0xc] sm:$0xff] %v2743
      %v2755 = vld [vmem:[#allocation4 + $0x18] sm:$0x11]
      %v2756 = vsel %vm681, %v2744, %v2755
      %2757 = vst [vmem:[#allocation4 + $0x18] sm:$0x11] %v2756
      %v2758 = vld [vmem:[#allocation4] sm:$0xff]
      %v2759 = vld [vmem:[#allocation4 + $0x8] sm:$0xf]
      %v2760 = vld [vmem:[#allocation4 + $0xc] sm:$0xff]
      %v2761 = vld [vmem:[#allocation4 + $0x14] sm:$0xf]
      %v2762 = vld [vmem:[%s9] sm:$0xf]
      %v2763 = vld [vmem:[%s9 + $0x4] sm:$0xf]
      %v2764 = vld [vmem:[%s9 + $0x8] sm:$0xf]
      %v2765 = vld [vmem:[%s9 + $0xc] sm:$0xf]
      %v2766 = vld [vmem:[%s9 + $0x10] sm:$0xf]
      %v2767 = vld [vmem:[%s9 + $0x14] sm:$0xf]
      %v2768 = vld [vmem:[%s9 + $0x18] sm:$0xf]
      %v2769 = vld [vmem:[%s9 + $0x1c] sm:$0xf]
      %v2770 = vld [vmem:[%s9 + $0x20] sm:$0xf]
      %v2771 = vld [vmem:[%s9 + $0x24] sm:$0xf]
      %v2772 = vld [vmem:[%s9 + $0x28] sm:$0xf]
      %v2773 = vld [vmem:[%s9 + $0x2c] sm:$0xf]
      %v2774 = vld [vmem:[%s9 + $0x30] sm:$0xf]
      %v2775 = vld [vmem:[%s9 + $0x34] sm:$0xf]
      %v2776 = vld [vmem:[%s9 + $0x38] sm:$0xf]
      %v2777 = vld [vmem:[%s9 + $0x3c] sm:$0xf]
      %v2778 = vld [vmem:[%s9 + $0x40] sm:$0xf]
      %v2779 = vld [vmem:[%s9 + $0x44] sm:$0xf]
      %v2780 = vld [vmem:[%s9 + $0x48] sm:$0xf]
      %v2781 = vld [vmem:[%s9 + $0x4c] sm:$0xf]
      %v2782 = vld [vmem:[%s9 + $0x50] sm:$0xf]
      %v2783 = vld [vmem:[%s9 + $0x54] sm:$0xf]
      %v2784 = vld [vmem:[%s9 + $0x58] sm:$0xf]
      %v2785 = vld [vmem:[%s9 + $0x5c] sm:$0xf]
      %v2786 = vld [vmem:[%s9 + $0x60] sm:$0xf]
      %v2787 = vld [vmem:[%s9 + $0x64] sm:$0xf]
      %v2788 = vld [vmem:[%s9 + $0x68] sm:$0xf]
      %v2789 = vld [vmem:[%s9 + $0x6c] sm:$0xf]
      %v2790 = vld [vmem:[%s9 + $0x70] sm:$0xf]
      %v2791 = vld [vmem:[%s9 + $0x74] sm:$0xf]
      %v2792 = vld [vmem:[%s9 + $0x78] sm:$0xf]
      %v2793 = vld [vmem:[%s9 + $0x7c] sm:$0xf]
      %v2794 = vld [vmem:[%s9 + $0x80] sm:$0xf]
      %v2795 = vld [vmem:[%s9 + $0x84] sm:$0xf]
      %v2796 = vld [vmem:[%s9 + $0x88] sm:$0xf]
      %v2797 = vld [vmem:[%s9 + $0x8c] sm:$0xf]
      %v2798 = vld [vmem:[%s9 + $0x90] sm:$0xf]
      %v2799 = vld [vmem:[%s9 + $0x94] sm:$0xf]
      %v2800 = vld [vmem:[%s9 + $0x98] sm:$0xf]
      %v2801 = vld [vmem:[%s9 + $0x9c] sm:$0xf]
      %v2802 = vld [vmem:[%s9 + $0xa0] sm:$0xf]
      %v2803 = vld [vmem:[%s9 + $0xa4] sm:$0xf]
      %v2804 = vld [vmem:[%s9 + $0xa8] sm:$0xf]
      %v2805 = vld [vmem:[%s9 + $0xac] sm:$0xf]
      %v2806 = vld [vmem:[%s9 + $0xb0] sm:$0xf]
      %v2807 = vld [vmem:[%s9 + $0xb4] sm:$0xf]
      %v2808 = vld [vmem:[%s9 + $0xb8] sm:$0xf]
      %v2809 = vld [vmem:[%s9 + $0xbc] sm:$0xf]
      %v2810 = vld [vmem:[#allocation4 + $0x18] sm:$0x11]
      %v2811 = vld [vmem:[#allocation4 + $0x20] sm:$0x1]
      %s2812 = scalar_lea.vmem %s9, 192
      %v2813 = vld [vmem:[%s2812] sm:$0xf]
      %v2814 = vld [vmem:[%s2812 + $0x4] sm:$0xf]
      %v2815 = vld [vmem:[%s2812 + $0x8] sm:$0xf]
      %v2816 = vld [vmem:[%s2812 + $0xc] sm:$0xf]
      %v2817 = vld [vmem:[%s2812 + $0x10] sm:$0xf]
      %v2818 = vld [vmem:[%s2812 + $0x14] sm:$0xf]
      %v2819 = vld [vmem:[%s2812 + $0x18] sm:$0xf]
      %v2820 = vld [vmem:[%s2812 + $0x1c] sm:$0xf]
      %v2821 = vld [vmem:[%s2812 + $0x20] sm:$0xf]
      %v2822 = vld [vmem:[%s2812 + $0x24] sm:$0xf]
      %v2823 = vld [vmem:[%s2812 + $0x28] sm:$0xf]
      %v2824 = vld [vmem:[%s2812 + $0x2c] sm:$0xf]
      %v2825 = vld [vmem:[%s2812 + $0x30] sm:$0xf]
      %v2826 = vld [vmem:[%s2812 + $0x34] sm:$0xf]
      %v2827 = vld [vmem:[%s2812 + $0x38] sm:$0xf]
      %v2828 = vld [vmem:[%s2812 + $0x3c] sm:$0xf]
      %v2829 = vld [vmem:[%s2812 + $0x40] sm:$0xf]
      %v2830 = vld [vmem:[%s2812 + $0x44] sm:$0xf]
      %v2831 = vld [vmem:[%s2812 + $0x48] sm:$0xf]
      %v2832 = vld [vmem:[%s2812 + $0x4c] sm:$0xf]
      %v2833 = vld [vmem:[%s2812 + $0x50] sm:$0xf]
      %v2834 = vld [vmem:[%s2812 + $0x54] sm:$0xf]
      %v2835 = vld [vmem:[%s2812 + $0x58] sm:$0xf]
      %v2836 = vld [vmem:[%s2812 + $0x5c] sm:$0xf]
      %v2837 = vld [vmem:[%s2812 + $0x60] sm:$0xf]
      %v2838 = vld [vmem:[%s2812 + $0x64] sm:$0xf]
      %v2839 = vld [vmem:[%s2812 + $0x68] sm:$0xf]
      %v2840 = vld [vmem:[%s2812 + $0x6c] sm:$0xf]
      %v2841 = vld [vmem:[%s2812 + $0x70] sm:$0xf]
      %v2842 = vld [vmem:[%s2812 + $0x74] sm:$0xf]
      %v2843 = vld [vmem:[%s2812 + $0x78] sm:$0xf]
      %v2844 = vld [vmem:[%s2812 + $0x7c] sm:$0xf]
      %v2845 = vld [vmem:[%s2812 + $0x80] sm:$0xf]
      %v2846 = vld [vmem:[%s2812 + $0x84] sm:$0xf]
      %v2847 = vld [vmem:[%s2812 + $0x88] sm:$0xf]
      %v2848 = vld [vmem:[%s2812 + $0x8c] sm:$0xf]
      %v2849 = vld [vmem:[%s2812 + $0x90] sm:$0xf]
      %v2850 = vld [vmem:[%s2812 + $0x94] sm:$0xf]
      %v2851 = vld [vmem:[%s2812 + $0x98] sm:$0xf]
      %v2852 = vld [vmem:[%s2812 + $0x9c] sm:$0xf]
      %v2853 = vld [vmem:[%s2812 + $0xa0] sm:$0xf]
      %v2854 = vld [vmem:[%s2812 + $0xa4] sm:$0xf]
      %v2855 = vld [vmem:[%s2812 + $0xa8] sm:$0xf]
      %v2856 = vld [vmem:[%s2812 + $0xac] sm:$0xf]
      %v2857 = vld [vmem:[%s2812 + $0xb0] sm:$0xf]
      %v2858 = vld [vmem:[%s2812 + $0xb4] sm:$0xf]
      %v2859 = vld [vmem:[%s2812 + $0xb8] sm:$0xf]
      %v2860 = vld [vmem:[%s2812 + $0xbc] sm:$0xf]
      %v2867 = vunpack.c.l.b16 %v2758
      %v2868 = vunpack.c.h.b16 %v2758
      %v2869 = vunpack.c.l.b16 %v2759
      %v2870 = vunpack.c.l.b16 %v2760
      %v2871 = vunpack.c.h.b16 %v2760
      %v2872 = vunpack.c.l.b16 %v2761
      %v2873 = vunpack.c.l.b16 %v2810
      %v2874 = vunpack.c.h.b16 %v2810
      %v2875 = vunpack.c.l.b16 %v2811
      %v2876 = vpack.c.b16 %v2870, %v2867
      %v2877 = vpack.c.b16 %v2871, %v2868
      %v2878 = vpack.c.b16 %v2872, %v2869
      %v2879 = vpack.c.b16 %v2873, %v2873
      %v2880 = vpack.c.b16 %v2874, %v2874
      %v2881 = vpack.c.b16 %v2875, %v2875
      %v2883 = vshrl.u32 %v2876, 16
      %v2885 = vshll.u32 %v2876, 16
      %v2887 = vrot.slane %v2885, 1
      %v2888 = vor.u32 %v2883, %v2887
      %v2890 = vshll.u32 %v2879, 16
      %v2892 = vrot.slane %v2890, 1
      %v2893 = vsel %vm801, %v2888, %v2892
      %v2895 = vshrl.u32 %v2877, 16
      %v2897 = vshll.u32 %v2877, 16
      %v2899 = vrot.slane %v2897, 1
      %v2900 = vor.u32 %v2895, %v2899
      %v2902 = vshll.u32 %v2880, 16
      %v2904 = vrot.slane %v2902, 1
      %v2905 = vsel %vm801, %v2900, %v2904
      %v2907 = vshrl.u32 %v2878, 16
      %v2909 = vshll.u32 %v2878, 16
      %v2911 = vrot.slane %v2909, 1
      %v2912 = vor.u32 %v2907, %v2911
      %v2914 = vshll.u32 %v2881, 16
      %v2916 = vrot.slane %v2914, 1
      %v2917 = vsel %vm801, %v2912, %v2916
      %v2969 = vunpack.c.l.b16 %v2813
      %v2970 = vunpack.c.l.b16 %v2814
      %v2971 = vunpack.c.l.b16 %v2815
      %v2972 = vunpack.c.l.b16 %v2816
      %v2973 = vunpack.c.l.b16 %v2817
      %v2974 = vunpack.c.l.b16 %v2818
      %v2975 = vunpack.c.l.b16 %v2819
      %v2976 = vunpack.c.l.b16 %v2820
      %v2977 = vunpack.c.l.b16 %v2821
      %v2978 = vunpack.c.l.b16 %v2822
      %v2979 = vunpack.c.l.b16 %v2823
      %v2980 = vunpack.c.l.b16 %v2824
      %v2981 = vunpack.c.l.b16 %v2825
      %v2982 = vunpack.c.l.b16 %v2826
      %v2983 = vunpack.c.l.b16 %v2827
      %v2984 = vunpack.c.l.b16 %v2828
      %v2985 = vunpack.c.l.b16 %v2829
      %v2986 = vunpack.c.l.b16 %v2830
      %v2987 = vunpack.c.l.b16 %v2831
      %v2988 = vunpack.c.l.b16 %v2832
      %v2989 = vunpack.c.l.b16 %v2833
      %v2990 = vunpack.c.l.b16 %v2834
      %v2991 = vunpack.c.l.b16 %v2835
      %v2992 = vunpack.c.l.b16 %v2836
      %v2993 = vunpack.c.l.b16 %v2837
      %v2994 = vunpack.c.l.b16 %v2838
      %v2995 = vunpack.c.l.b16 %v2839
      %v2996 = vunpack.c.l.b16 %v2840
      %v2997 = vunpack.c.l.b16 %v2841
      %v2998 = vunpack.c.l.b16 %v2842
      %v2999 = vunpack.c.l.b16 %v2843
      %v3000 = vunpack.c.l.b16 %v2844
      %v3001 = vunpack.c.l.b16 %v2845
      %v3002 = vunpack.c.l.b16 %v2846
      %v3003 = vunpack.c.l.b16 %v2847
      %v3004 = vunpack.c.l.b16 %v2848
      %v3005 = vunpack.c.l.b16 %v2849
      %v3006 = vunpack.c.l.b16 %v2850
      %v3007 = vunpack.c.l.b16 %v2851
      %v3008 = vunpack.c.l.b16 %v2852
      %v3009 = vunpack.c.l.b16 %v2853
      %v3010 = vunpack.c.l.b16 %v2854
      %v3011 = vunpack.c.l.b16 %v2855
      %v3012 = vunpack.c.l.b16 %v2856
      %v3013 = vunpack.c.l.b16 %v2857
      %v3014 = vunpack.c.l.b16 %v2858
      %v3015 = vunpack.c.l.b16 %v2859
      %v3016 = vunpack.c.l.b16 %v2860
      %v3017 = vpack.c.b16 %v2970, %v2969
      %v3018 = vpack.c.b16 %v2972, %v2971
      %v3019 = vpack.c.b16 %v2974, %v2973
      %v3020 = vpack.c.b16 %v2976, %v2975
      %v3021 = vpack.c.b16 %v2978, %v2977
      %v3022 = vpack.c.b16 %v2980, %v2979
      %v3023 = vpack.c.b16 %v2982, %v2981
      %v3024 = vpack.c.b16 %v2984, %v2983
      %v3025 = vpack.c.b16 %v2986, %v2985
      %v3026 = vpack.c.b16 %v2988, %v2987
      %v3027 = vpack.c.b16 %v2990, %v2989
      %v3028 = vpack.c.b16 %v2992, %v2991
      %v3029 = vpack.c.b16 %v2994, %v2993
      %v3030 = vpack.c.b16 %v2996, %v2995
      %v3031 = vpack.c.b16 %v2998, %v2997
      %v3032 = vpack.c.b16 %v3000, %v2999
      %v3033 = vpack.c.b16 %v3002, %v3001
      %v3034 = vpack.c.b16 %v3004, %v3003
      %v3035 = vpack.c.b16 %v3006, %v3005
      %v3036 = vpack.c.b16 %v3008, %v3007
      %v3037 = vpack.c.b16 %v3010, %v3009
      %v3038 = vpack.c.b16 %v3012, %v3011
      %v3039 = vpack.c.b16 %v3014, %v3013
      %v3040 = vpack.c.b16 %v3016, %v3015
      %3065 = vmatprep.subr.bf16.mxu0 0
      %3066 = vmatpush1.bf16.msra.mxu0 %v3017
      %3067 = vmatprep.subr.bf16.mxu0 0
      %3068 = vmatpush1.bf16.msra.mxu0 %v3018
      %3069 = vmatprep.subr.bf16.mxu0 0
      %3070 = vmatpush1.bf16.msra.mxu0 %v3019
      %3071 = vmatprep.subr.bf16.mxu0 0
      %3072 = vmatpush1.bf16.msra.mxu0 %v3020
      %3073 = vmatprep.subr.bf16.mxu0 0
      %3074 = vmatpush1.bf16.msra.mxu0 %v3021
      %3075 = vmatprep.subr.bf16.mxu0 0
      %3076 = vmatpush1.bf16.msra.mxu0 %v3022
      %3077 = vmatprep.subr.bf16.mxu0 0
      %3078 = vmatpush1.bf16.msra.mxu0 %v3023
      %3079 = vmatprep.subr.bf16.mxu0 0
      %3080 = vmatpush1.bf16.msra.mxu0 %v3024
      %3081 = vmatprep.subr.bf16.mxu0 0
      %3082 = vmatpush1.bf16.msra.mxu0 %v3025
      %3083 = vmatprep.subr.bf16.mxu0 0
      %3084 = vmatpush1.bf16.msra.mxu0 %v3026
      %3085 = vmatprep.subr.bf16.mxu0 0
      %3086 = vmatpush1.bf16.msra.mxu0 %v3027
      %3087 = vmatprep.subr.bf16.mxu0 0
      %3088 = vmatpush1.bf16.msra.mxu0 %v3028
      %3089 = vmatprep.subr.bf16.mxu0 0
      %3090 = vmatpush1.bf16.msra.mxu0 %v3029
      %3091 = vmatprep.subr.bf16.mxu0 0
      %3092 = vmatpush1.bf16.msra.mxu0 %v3030
      %3093 = vmatprep.subr.bf16.mxu0 0
      %3094 = vmatpush1.bf16.msra.mxu0 %v3031
      %3095 = vmatprep.subr.bf16.mxu0 0
      %3096 = vmatpush1.bf16.msra.mxu0 %v3032
      %3097 = vmatprep.mubr.bf16.mxu0 %v2905
      %3098 = vmatmul.mubr.bf16.gmra.mrb[0].mxu0 %v2893
      %v3099 = vpop.f32.mrb[0].mxu0
      %v3100 = vadd.f32 0.0, %v3099
      %v3101 = vpop.f32.mrb[0].mxu0
      %v3102 = vpop.f32.mrb[0].mxu0
      %v3103 = vadd.f32 0.0, %v3102
      %v3104 = vpop.f32.mrb[0].mxu0
      %3105 = vdwg.mxu0
      %3106 = vmatprep.subr.bf16.mxu0 0
      %3107 = vmatpush1.bf16.msra.mxu0 %v3033
      %3108 = vmatprep.subr.bf16.mxu0 0
      %3109 = vmatpush1.bf16.msra.mxu0 %v3034
      %3110 = vmatprep.subr.bf16.mxu0 0
      %3111 = vmatpush1.bf16.msra.mxu0 %v3035
      %3112 = vmatprep.subr.bf16.mxu0 0
      %3113 = vmatpush1.bf16.msra.mxu0 %v3036
      %3114 = vmatprep.subr.bf16.mxu0 0
      %3115 = vmatpush1.bf16.msra.mxu0 %v3037
      %3116 = vmatprep.subr.bf16.mxu0 0
      %3117 = vmatpush1.bf16.msra.mxu0 %v3038
      %3118 = vmatprep.subr.bf16.mxu0 0
      %3119 = vmatpush1.bf16.msra.mxu0 %v3039
      %3120 = vmatprep.subr.bf16.mxu0 0
      %3121 = vmatpush1.bf16.msra.mxu0 %v3040
      %3122 = vmatprep.subr.bf16.mxu0 0
      %3123 = vmatpush1.bf16.msra.mxu0 0
      %3124 = vmatprep.subr.bf16.mxu0 0
      %3125 = vmatpush1.bf16.msra.mxu0 0
      %3126 = vmatprep.subr.bf16.mxu0 0
      %3127 = vmatpush1.bf16.msra.mxu0 0
      %3128 = vmatprep.subr.bf16.mxu0 0
      %3129 = vmatpush1.bf16.msra.mxu0 0
      %3130 = vmatprep.subr.bf16.mxu0 0
      %3131 = vmatpush1.bf16.msra.mxu0 0
      %3132 = vmatprep.subr.bf16.mxu0 0
      %3133 = vmatpush1.bf16.msra.mxu0 0
      %3134 = vmatprep.subr.bf16.mxu0 0
      %3135 = vmatpush1.bf16.msra.mxu0 0
      %3136 = vmatprep.subr.bf16.mxu0 0
      %3137 = vmatpush1.bf16.msra.mxu0 0
      %3138 = vmatprep.mubr.bf16.mxu0 0
      %3139 = vmatmul.mubr.bf16.gmra.mrb[0].mxu0 %v2917
      %v3140 = vpop.f32.mrb[0].mxu0
      %v3141 = vadd.f32 %v3100, %v3140
      %v3142 = vpop.f32.mrb[0].mxu0
      %v3143 = vpop.f32.mrb[0].mxu0
      %v3144 = vadd.f32 %v3103, %v3143
      %v3145 = vpop.f32.mrb[0].mxu0
      %3146 = vdwg.mxu0
      %v3198 = vunpack.c.l.b16 %v2762
      %v3199 = vunpack.c.l.b16 %v2763
      %v3200 = vunpack.c.l.b16 %v2764
      %v3201 = vunpack.c.l.b16 %v2765
      %v3202 = vunpack.c.l.b16 %v2766
      %v3203 = vunpack.c.l.b16 %v2767
      %v3204 = vunpack.c.l.b16 %v2768
      %v3205 = vunpack.c.l.b16 %v2769
      %v3206 = vunpack.c.l.b16 %v2770
      %v3207 = vunpack.c.l.b16 %v2771
      %v3208 = vunpack.c.l.b16 %v2772
      %v3209 = vunpack.c.l.b16 %v2773
      %v3210 = vunpack.c.l.b16 %v2774
      %v3211 = vunpack.c.l.b16 %v2775
      %v3212 = vunpack.c.l.b16 %v2776
      %v3213 = vunpack.c.l.b16 %v2777
      %v3214 = vunpack.c.l.b16 %v2778
      %v3215 = vunpack.c.l.b16 %v2779
      %v3216 = vunpack.c.l.b16 %v2780
      %v3217 = vunpack.c.l.b16 %v2781
      %v3218 = vunpack.c.l.b16 %v2782
      %v3219 = vunpack.c.l.b16 %v2783
      %v3220 = vunpack.c.l.b16 %v2784
      %v3221 = vunpack.c.l.b16 %v2785
      %v3222 = vunpack.c.l.b16 %v2786
      %v3223 = vunpack.c.l.b16 %v2787
      %v3224 = vunpack.c.l.b16 %v2788
      %v3225 = vunpack.c.l.b16 %v2789
      %v3226 = vunpack.c.l.b16 %v2790
      %v3227 = vunpack.c.l.b16 %v2791
      %v3228 = vunpack.c.l.b16 %v2792
      %v3229 = vunpack.c.l.b16 %v2793
      %v3230 = vunpack.c.l.b16 %v2794
      %v3231 = vunpack.c.l.b16 %v2795
      %v3232 = vunpack.c.l.b16 %v2796
      %v3233 = vunpack.c.l.b16 %v2797
      %v3234 = vunpack.c.l.b16 %v2798
      %v3235 = vunpack.c.l.b16 %v2799
      %v3236 = vunpack.c.l.b16 %v2800
      %v3237 = vunpack.c.l.b16 %v2801
      %v3238 = vunpack.c.l.b16 %v2802
      %v3239 = vunpack.c.l.b16 %v2803
      %v3240 = vunpack.c.l.b16 %v2804
      %v3241 = vunpack.c.l.b16 %v2805
      %v3242 = vunpack.c.l.b16 %v2806
      %v3243 = vunpack.c.l.b16 %v2807
      %v3244 = vunpack.c.l.b16 %v2808
      %v3245 = vunpack.c.l.b16 %v2809
      %v3246 = vpack.c.b16 %v3199, %v3198
      %v3247 = vpack.c.b16 %v3201, %v3200
      %v3248 = vpack.c.b16 %v3203, %v3202
      %v3249 = vpack.c.b16 %v3205, %v3204
      %v3250 = vpack.c.b16 %v3207, %v3206
      %v3251 = vpack.c.b16 %v3209, %v3208
      %v3252 = vpack.c.b16 %v3211, %v3210
      %v3253 = vpack.c.b16 %v3213, %v3212
      %v3254 = vpack.c.b16 %v3215, %v3214
      %v3255 = vpack.c.b16 %v3217, %v3216
      %v3256 = vpack.c.b16 %v3219, %v3218
      %v3257 = vpack.c.b16 %v3221, %v3220
      %v3258 = vpack.c.b16 %v3223, %v3222
      %v3259 = vpack.c.b16 %v3225, %v3224
      %v3260 = vpack.c.b16 %v3227, %v3226
      %v3261 = vpack.c.b16 %v3229, %v3228
      %v3262 = vpack.c.b16 %v3231, %v3230
      %v3263 = vpack.c.b16 %v3233, %v3232
      %v3264 = vpack.c.b16 %v3235, %v3234
      %v3265 = vpack.c.b16 %v3237, %v3236
      %v3266 = vpack.c.b16 %v3239, %v3238
      %v3267 = vpack.c.b16 %v3241, %v3240
      %v3268 = vpack.c.b16 %v3243, %v3242
      %v3269 = vpack.c.b16 %v3245, %v3244
      %3294 = vmatprep.subr.bf16.mxu0 0
      %3295 = vmatpush1.bf16.msra.mxu0 %v3246
      %3296 = vmatprep.subr.bf16.mxu0 0
      %3297 = vmatpush1.bf16.msra.mxu0 %v3247
      %3298 = vmatprep.subr.bf16.mxu0 0
      %3299 = vmatpush1.bf16.msra.mxu0 %v3248
      %3300 = vmatprep.subr.bf16.mxu0 0
      %3301 = vmatpush1.bf16.msra.mxu0 %v3249
      %3302 = vmatprep.subr.bf16.mxu0 0
      %3303 = vmatpush1.bf16.msra.mxu0 %v3250
      %3304 = vmatprep.subr.bf16.mxu0 0
      %3305 = vmatpush1.bf16.msra.mxu0 %v3251
      %3306 = vmatprep.subr.bf16.mxu0 0
      %3307 = vmatpush1.bf16.msra.mxu0 %v3252
      %3308 = vmatprep.subr.bf16.mxu0 0
      %3309 = vmatpush1.bf16.msra.mxu0 %v3253
      %3310 = vmatprep.subr.bf16.mxu0 0
      %3311 = vmatpush1.bf16.msra.mxu0 %v3254
      %3312 = vmatprep.subr.bf16.mxu0 0
      %3313 = vmatpush1.bf16.msra.mxu0 %v3255
      %3314 = vmatprep.subr.bf16.mxu0 0
      %3315 = vmatpush1.bf16.msra.mxu0 %v3256
      %3316 = vmatprep.subr.bf16.mxu0 0
      %3317 = vmatpush1.bf16.msra.mxu0 %v3257
      %3318 = vmatprep.subr.bf16.mxu0 0
      %3319 = vmatpush1.bf16.msra.mxu0 %v3258
      %3320 = vmatprep.subr.bf16.mxu0 0
      %3321 = vmatpush1.bf16.msra.mxu0 %v3259
      %3322 = vmatprep.subr.bf16.mxu0 0
      %3323 = vmatpush1.bf16.msra.mxu0 %v3260
      %3324 = vmatprep.subr.bf16.mxu0 0
      %3325 = vmatpush1.bf16.msra.mxu0 %v3261
      %3326 = vmatprep.mubr.bf16.mxu0 %v2877
      %3327 = vmatmul.mubr.bf16.gmra.mrb[0].mxu0 %v2876
      %v3328 = vpop.f32.mrb[0].mxu0
      %v3329 = vadd.f32 %v3141, %v3328
      %v3330 = vpop.f32.mrb[0].mxu0
      %v3331 = vpop.f32.mrb[0].mxu0
      %v3332 = vadd.f32 %v3144, %v3331
      %v3333 = vpop.f32.mrb[0].mxu0
      %3334 = vdwg.mxu0
      %3335 = vmatprep.subr.bf16.mxu0 0
      %3336 = vmatpush1.bf16.msra.mxu0 %v3262
      %3337 = vmatprep.subr.bf16.mxu0 0
      %3338 = vmatpush1.bf16.msra.mxu0 %v3263
      %3339 = vmatprep.subr.bf16.mxu0 0
      %3340 = vmatpush1.bf16.msra.mxu0 %v3264
      %3341 = vmatprep.subr.bf16.mxu0 0
      %3342 = vmatpush1.bf16.msra.mxu0 %v3265
      %3343 = vmatprep.subr.bf16.mxu0 0
      %3344 = vmatpush1.bf16.msra.mxu0 %v3266
      %3345 = vmatprep.subr.bf16.mxu0 0
      %3346 = vmatpush1.bf16.msra.mxu0 %v3267
      %3347 = vmatprep.subr.bf16.mxu0 0
      %3348 = vmatpush1.bf16.msra.mxu0 %v3268
      %3349 = vmatprep.subr.bf16.mxu0 0
      %3350 = vmatpush1.bf16.msra.mxu0 %v3269
      %3351 = vmatprep.subr.bf16.mxu0 0
      %3352 = vmatpush1.bf16.msra.mxu0 0
      %3353 = vmatprep.subr.bf16.mxu0 0
      %3354 = vmatpush1.bf16.msra.mxu0 0
      %3355 = vmatprep.subr.bf16.mxu0 0
      %3356 = vmatpush1.bf16.msra.mxu0 0
      %3357 = vmatprep.subr.bf16.mxu0 0
      %3358 = vmatpush1.bf16.msra.mxu0 0
      %3359 = vmatprep.subr.bf16.mxu0 0
      %3360 = vmatpush1.bf16.msra.mxu0 0
      %3361 = vmatprep.subr.bf16.mxu0 0
      %3362 = vmatpush1.bf16.msra.mxu0 0
      %3363 = vmatprep.subr.bf16.mxu0 0
      %3364 = vmatpush1.bf16.msra.mxu0 0
      %3365 = vmatprep.subr.bf16.mxu0 0
      %3366 = vmatpush1.bf16.msra.mxu0 0
      %3367 = vmatprep.mubr.bf16.mxu0 0
      %3368 = vmatmul.mubr.bf16.gmra.mrb[0].mxu0 %v2878
      %v3369 = vpop.f32.mrb[0].mxu0
      %v3370 = vadd.f32 %v3329, %v3369
      %v3371 = vpop.f32.mrb[0].mxu0
      %v3372 = vpop.f32.mrb[0].mxu0
      %v3373 = vadd.f32 %v3332, %v3372
      %v3374 = vpop.f32.mrb[0].mxu0
      %3375 = vdwg.mxu0
      %v3376 = vld [vmem:[#allocation4] sm:$0xee]
      %v3377 = vld [vmem:[#allocation4 + $0x8] sm:$0xe]
      %s3378 = scalar_lea.vmem %s9, 384
      %v3379 = vld [vmem:[%s3378] sm:$0xf]
      %v3380 = vld [vmem:[%s3378 + $0x4] sm:$0xf]
      %v3381 = vld [vmem:[%s3378 + $0x8] sm:$0xf]
      %v3382 = vld [vmem:[%s3378 + $0xc] sm:$0xf]
      %v3383 = vld [vmem:[%s3378 + $0x10] sm:$0xf]
      %v3384 = vld [vmem:[%s3378 + $0x14] sm:$0xf]
      %v3385 = vld [vmem:[%s3378 + $0x18] sm:$0xf]
      %v3386 = vld [vmem:[%s3378 + $0x1c] sm:$0xf]
      %v3387 = vld [vmem:[%s3378 + $0x20] sm:$0xf]
      %v3388 = vld [vmem:[%s3378 + $0x24] sm:$0xf]
      %v3389 = vld [vmem:[%s3378 + $0x28] sm:$0xf]
      %v3390 = vld [vmem:[%s3378 + $0x2c] sm:$0xf]
      %v3391 = vld [vmem:[%s3378 + $0x30] sm:$0xf]
      %v3392 = vld [vmem:[%s3378 + $0x34] sm:$0xf]
      %v3393 = vld [vmem:[%s3378 + $0x38] sm:$0xf]
      %v3394 = vld [vmem:[%s3378 + $0x3c] sm:$0xf]
      %v3395 = vld [vmem:[%s3378 + $0x40] sm:$0xf]
      %v3396 = vld [vmem:[%s3378 + $0x44] sm:$0xf]
      %v3397 = vld [vmem:[%s3378 + $0x48] sm:$0xf]
      %v3398 = vld [vmem:[%s3378 + $0x4c] sm:$0xf]
      %v3399 = vld [vmem:[%s3378 + $0x50] sm:$0xf]
      %v3400 = vld [vmem:[%s3378 + $0x54] sm:$0xf]
      %v3401 = vld [vmem:[%s3378 + $0x58] sm:$0xf]
      %v3402 = vld [vmem:[%s3378 + $0x5c] sm:$0xf]
      %v3403 = vld [vmem:[%s3378 + $0x60] sm:$0xf]
      %v3404 = vld [vmem:[%s3378 + $0x64] sm:$0xf]
      %v3405 = vld [vmem:[%s3378 + $0x68] sm:$0xf]
      %v3406 = vld [vmem:[%s3378 + $0x6c] sm:$0xf]
      %v3407 = vld [vmem:[%s3378 + $0x70] sm:$0xf]
      %v3408 = vld [vmem:[%s3378 + $0x74] sm:$0xf]
      %v3409 = vld [vmem:[%s3378 + $0x78] sm:$0xf]
      %v3410 = vld [vmem:[%s3378 + $0x7c] sm:$0xf]
      %v3411 = vld [vmem:[%s3378 + $0x80] sm:$0xf]
      %v3412 = vld [vmem:[%s3378 + $0x84] sm:$0xf]
      %v3413 = vld [vmem:[%s3378 + $0x88] sm:$0xf]
      %v3414 = vld [vmem:[%s3378 + $0x8c] sm:$0xf]
      %v3415 = vld [vmem:[%s3378 + $0x90] sm:$0xf]
      %v3416 = vld [vmem:[%s3378 + $0x94] sm:$0xf]
      %v3417 = vld [vmem:[%s3378 + $0x98] sm:$0xf]
      %v3418 = vld [vmem:[%s3378 + $0x9c] sm:$0xf]
      %v3419 = vld [vmem:[%s3378 + $0xa0] sm:$0xf]
      %v3420 = vld [vmem:[%s3378 + $0xa4] sm:$0xf]
      %v3421 = vld [vmem:[%s3378 + $0xa8] sm:$0xf]
      %v3422 = vld [vmem:[%s3378 + $0xac] sm:$0xf]
      %v3423 = vld [vmem:[%s3378 + $0xb0] sm:$0xf]
      %v3424 = vld [vmem:[%s3378 + $0xb4] sm:$0xf]
      %v3425 = vld [vmem:[%s3378 + $0xb8] sm:$0xf]
      %v3426 = vld [vmem:[%s3378 + $0xbc] sm:$0xf]
      %v3429 = vunpack.c.l.b16 %v3376
      %v3430 = vunpack.c.h.b16 %v3376
      %v3431 = vunpack.c.l.b16 %v3377
      %v3432 = vpack.c.b16 %v2870, %v3429
      %v3433 = vpack.c.b16 %v2871, %v3430
      %v3434 = vpack.c.b16 %v2872, %v3431
      %v3435 = vrot.slane %v3432, 1
      %v3436 = vrot.slane %v2879, 1
      %v3437 = vsel %vm1015, %v3435, %v3436
      %v3438 = vrot.slane %v3433, 1
      %v3439 = vrot.slane %v2880, 1
      %v3440 = vsel %vm1015, %v3438, %v3439
      %v3441 = vrot.slane %v3434, 1
      %v3442 = vrot.slane %v2881, 1
      %v3443 = vsel %vm1015, %v3441, %v3442
      %v3495 = vunpack.c.l.b16 %v3379
      %v3496 = vunpack.c.l.b16 %v3380
      %v3497 = vunpack.c.l.b16 %v3381
      %v3498 = vunpack.c.l.b16 %v3382
      %v3499 = vunpack.c.l.b16 %v3383
      %v3500 = vunpack.c.l.b16 %v3384
      %v3501 = vunpack.c.l.b16 %v3385
      %v3502 = vunpack.c.l.b16 %v3386
      %v3503 = vunpack.c.l.b16 %v3387
      %v3504 = vunpack.c.l.b16 %v3388
      %v3505 = vunpack.c.l.b16 %v3389
      %v3506 = vunpack.c.l.b16 %v3390
      %v3507 = vunpack.c.l.b16 %v3391
      %v3508 = vunpack.c.l.b16 %v3392
      %v3509 = vunpack.c.l.b16 %v3393
      %v3510 = vunpack.c.l.b16 %v3394
      %v3511 = vunpack.c.l.b16 %v3395
      %v3512 = vunpack.c.l.b16 %v3396
      %v3513 = vunpack.c.l.b16 %v3397
      %v3514 = vunpack.c.l.b16 %v3398
      %v3515 = vunpack.c.l.b16 %v3399
      %v3516 = vunpack.c.l.b16 %v3400
      %v3517 = vunpack.c.l.b16 %v3401
      %v3518 = vunpack.c.l.b16 %v3402
      %v3519 = vunpack.c.l.b16 %v3403
      %v3520 = vunpack.c.l.b16 %v3404
      %v3521 = vunpack.c.l.b16 %v3405
      %v3522 = vunpack.c.l.b16 %v3406
      %v3523 = vunpack.c.l.b16 %v3407
      %v3524 = vunpack.c.l.b16 %v3408
      %v3525 = vunpack.c.l.b16 %v3409
      %v3526 = vunpack.c.l.b16 %v3410
      %v3527 = vunpack.c.l.b16 %v3411
      %v3528 = vunpack.c.l.b16 %v3412
      %v3529 = vunpack.c.l.b16 %v3413
      %v3530 = vunpack.c.l.b16 %v3414
      %v3531 = vunpack.c.l.b16 %v3415
      %v3532 = vunpack.c.l.b16 %v3416
      %v3533 = vunpack.c.l.b16 %v3417
      %v3534 = vunpack.c.l.b16 %v3418
      %v3535 = vunpack.c.l.b16 %v3419
      %v3536 = vunpack.c.l.b16 %v3420
      %v3537 = vunpack.c.l.b16 %v3421
      %v3538 = vunpack.c.l.b16 %v3422
      %v3539 = vunpack.c.l.b16 %v3423
      %v3540 = vunpack.c.l.b16 %v3424
      %v3541 = vunpack.c.l.b16 %v3425
      %v3542 = vunpack.c.l.b16 %v3426
      %v3543 = vpack.c.b16 %v3496, %v3495
      %v3544 = vpack.c.b16 %v3498, %v3497
      %v3545 = vpack.c.b16 %v3500, %v3499
      %v3546 = vpack.c.b16 %v3502, %v3501
      %v3547 = vpack.c.b16 %v3504, %v3503
      %v3548 = vpack.c.b16 %v3506, %v3505
      %v3549 = vpack.c.b16 %v3508, %v3507
      %v3550 = vpack.c.b16 %v3510, %v3509
      %v3551 = vpack.c.b16 %v3512, %v3511
      %v3552 = vpack.c.b16 %v3514, %v3513
      %v3553 = vpack.c.b16 %v3516, %v3515
      %v3554 = vpack.c.b16 %v3518, %v3517
      %v3555 = vpack.c.b16 %v3520, %v3519
      %v3556 = vpack.c.b16 %v3522, %v3521
      %v3557 = vpack.c.b16 %v3524, %v3523
      %v3558 = vpack.c.b16 %v3526, %v3525
      %v3559 = vpack.c.b16 %v3528, %v3527
      %v3560 = vpack.c.b16 %v3530, %v3529
      %v3561 = vpack.c.b16 %v3532, %v3531
      %v3562 = vpack.c.b16 %v3534, %v3533
      %v3563 = vpack.c.b16 %v3536, %v3535
      %v3564 = vpack.c.b16 %v3538, %v3537
      %v3565 = vpack.c.b16 %v3540, %v3539
      %v3566 = vpack.c.b16 %v3542, %v3541
      %3591 = vmatprep.subr.bf16.mxu0 0
      %3592 = vmatpush1.bf16.msra.mxu0 %v3543
      %3593 = vmatprep.subr.bf16.mxu0 0
      %3594 = vmatpush1.bf16.msra.mxu0 %v3544
      %3595 = vmatprep.subr.bf16.mxu0 0
      %3596 = vmatpush1.bf16.msra.mxu0 %v3545
      %3597 = vmatprep.subr.bf16.mxu0 0
      %3598 = vmatpush1.bf16.msra.mxu0 %v3546
      %3599 = vmatprep.subr.bf16.mxu0 0
      %3600 = vmatpush1.bf16.msra.mxu0 %v3547
      %3601 = vmatprep.subr.bf16.mxu0 0
      %3602 = vmatpush1.bf16.msra.mxu0 %v3548
      %3603 = vmatprep.subr.bf16.mxu0 0
      %3604 = vmatpush1.bf16.msra.mxu0 %v3549
      %3605 = vmatprep.subr.bf16.mxu0 0
      %3606 = vmatpush1.bf16.msra.mxu0 %v3550
      %3607 = vmatprep.subr.bf16.mxu0 0
      %3608 = vmatpush1.bf16.msra.mxu0 %v3551
      %3609 = vmatprep.subr.bf16.mxu0 0
      %3610 = vmatpush1.bf16.msra.mxu0 %v3552
      %3611 = vmatprep.subr.bf16.mxu0 0
      %3612 = vmatpush1.bf16.msra.mxu0 %v3553
      %3613 = vmatprep.subr.bf16.mxu0 0
      %3614 = vmatpush1.bf16.msra.mxu0 %v3554
      %3615 = vmatprep.subr.bf16.mxu0 0
      %3616 = vmatpush1.bf16.msra.mxu0 %v3555
      %3617 = vmatprep.subr.bf16.mxu0 0
      %3618 = vmatpush1.bf16.msra.mxu0 %v3556
      %3619 = vmatprep.subr.bf16.mxu0 0
      %3620 = vmatpush1.bf16.msra.mxu0 %v3557
      %3621 = vmatprep.subr.bf16.mxu0 0
      %3622 = vmatpush1.bf16.msra.mxu0 %v3558
      %3623 = vmatprep.mubr.bf16.mxu0 %v3440
      %3624 = vmatmul.mubr.bf16.gmra.mrb[0].mxu0 %v3437
      %v3625 = vpop.f32.mrb[0].mxu0
      %v3626 = vadd.f32 0.0, %v3625
      %v3627 = vpop.f32.mrb[0].mxu0
      %v3628 = vpop.f32.mrb[0].mxu0
      %v3629 = vadd.f32 0.0, %v3628
      %v3630 = vpop.f32.mrb[0].mxu0
      %3631 = vdwg.mxu0
      %3632 = vmatprep.subr.bf16.mxu0 0
      %3633 = vmatpush1.bf16.msra.mxu0 %v3559
      %3634 = vmatprep.subr.bf16.mxu0 0
      %3635 = vmatpush1.bf16.msra.mxu0 %v3560
      %3636 = vmatprep.subr.bf16.mxu0 0
      %3637 = vmatpush1.bf16.msra.mxu0 %v3561
      %3638 = vmatprep.subr.bf16.mxu0 0
      %3639 = vmatpush1.bf16.msra.mxu0 %v3562
      %3640 = vmatprep.subr.bf16.mxu0 0
      %3641 = vmatpush1.bf16.msra.mxu0 %v3563
      %3642 = vmatprep.subr.bf16.mxu0 0
      %3643 = vmatpush1.bf16.msra.mxu0 %v3564
      %3644 = vmatprep.subr.bf16.mxu0 0
      %3645 = vmatpush1.bf16.msra.mxu0 %v3565
      %3646 = vmatprep.subr.bf16.mxu0 0
      %3647 = vmatpush1.bf16.msra.mxu0 %v3566
      %3648 = vmatprep.subr.bf16.mxu0 0
      %3649 = vmatpush1.bf16.msra.mxu0 0
      %3650 = vmatprep.subr.bf16.mxu0 0
      %3651 = vmatpush1.bf16.msra.mxu0 0
      %3652 = vmatprep.subr.bf16.mxu0 0
      %3653 = vmatpush1.bf16.msra.mxu0 0
      %3654 = vmatprep.subr.bf16.mxu0 0
      %3655 = vmatpush1.bf16.msra.mxu0 0
      %3656 = vmatprep.subr.bf16.mxu0 0
      %3657 = vmatpush1.bf16.msra.mxu0 0
      %3658 = vmatprep.subr.bf16.mxu0 0
      %3659 = vmatpush1.bf16.msra.mxu0 0
      %3660 = vmatprep.subr.bf16.mxu0 0
      %3661 = vmatpush1.bf16.msra.mxu0 0
      %3662 = vmatprep.subr.bf16.mxu0 0
      %3663 = vmatpush1.bf16.msra.mxu0 0
      %3664 = vmatprep.mubr.bf16.mxu0 0
      %3665 = vmatmul.mubr.bf16.gmra.mrb[0].mxu0 %v3443
      %v3666 = vpop.f32.mrb[0].mxu0
      %v3667 = vadd.f32 %v3626, %v3666
      %v3668 = vpop.f32.mrb[0].mxu0
      %v3669 = vpop.f32.mrb[0].mxu0
      %v3670 = vadd.f32 %v3629, %v3669
      %v3671 = vpop.f32.mrb[0].mxu0
      %3672 = vdwg.mxu0
      %v3673 = vadd.f32 %v3370, %v3667
      %v3674 = vadd.f32 %v3373, %v3670
      %v3675 = vld [vmem:[%s10] sm:$0x1]
      %v3677 = vlaneseq
      %v3678 = vshrl.u32 %v3677, 7
      %v3679 = vsub.s32 0, %v3678
      %v3680 = vrot.slane %v3675, %v3679
      %v3682 = vadd.f32 %v3673, %v3680
      %v3683 = vadd.f32 %v3674, %v3680
      %v3684 = vmax.f32 %v3682, 0.0
      %v3685 = vmax.f32 %v3683, 0.0
      %v3686 = vpack.c.bf16 %v3685, %v3684
      %v3688 = vunpack.c.l.b16 %v3686
      %v3689 = vunpack.c.h.b16 %v3686
      %v3690 = vpack.c.b16 %v3688, %v3688
      %v3691 = vpack.c.b16 %v3689, %v3689
      %v3693 = vshrl.u32 %v3690, 16
      %v3695 = vrot.slane %v3693, 7
      %v3696 = vshll.u32 %v3690, 16
      %v3698 = vor.u32 %v3695, %v3696
      %v3699 = vrot.slane %v3695, 4
      %v3701 = vshrl.u32 %v3691, 16
      %v3703 = vrot.slane %v3701, 7
      %v3704 = vshll.u32 %v3691, 16
      %v3706 = vor.u32 %v3703, %v3704
      %v3707 = vsel %vm727, %v3699, %v3706
      %v3708 = vrot.slane %v3703, 4
      %v3712 = vld [vmem:[#allocation5] sm:$0xf]
      %v3713 = vsel %vm749, %v3698, %v3712
      %3714 = vst [vmem:[#allocation5] sm:$0xf] %v3713
      %3715 = vst [vmem:[#allocation5 + $0x4] sm:$0xf] %v3707
      %v3716 = vld [vmem:[#allocation5 + $0x8] sm:$0x1]
      %v3717 = vsel %vm663, %v3708, %v3716
      %3718 = vst [vmem:[#allocation5 + $0x8] sm:$0x1] %v3717
      %v3719 = vld [vmem:[#allocation5] sm:$0xf]
      %v3720 = vld [vmem:[#allocation5 + $0x4] sm:$0xf]
      %v3721 = vld [vmem:[%s11] sm:$0xf]
      %v3722 = vld [vmem:[%s11 + $0x4] sm:$0xf]
      %v3723 = vld [vmem:[%s11 + $0x8] sm:$0xf]
      %v3724 = vld [vmem:[%s11 + $0xc] sm:$0xf]
      %v3725 = vld [vmem:[%s11 + $0x10] sm:$0xf]
      %v3726 = vld [vmem:[%s11 + $0x14] sm:$0xf]
      %v3727 = vld [vmem:[%s11 + $0x18] sm:$0xf]
      %v3728 = vld [vmem:[%s11 + $0x1c] sm:$0xf]
      %v3729 = vld [vmem:[%s11 + $0x20] sm:$0xf]
      %v3730 = vld [vmem:[%s11 + $0x24] sm:$0xf]
      %v3731 = vld [vmem:[%s11 + $0x28] sm:$0xf]
      %v3732 = vld [vmem:[%s11 + $0x2c] sm:$0xf]
      %v3733 = vld [vmem:[%s11 + $0x30] sm:$0xf]
      %v3734 = vld [vmem:[%s11 + $0x34] sm:$0xf]
      %v3735 = vld [vmem:[%s11 + $0x38] sm:$0xf]
      %v3736 = vld [vmem:[%s11 + $0x3c] sm:$0xf]
      %v3737 = vld [vmem:[#allocation5 + $0x8] sm:$0x1]
      %s3738 = scalar_lea.vmem %s11, 64
      %v3739 = vld [vmem:[%s3738] sm:$0xf]
      %v3740 = vld [vmem:[%s3738 + $0x4] sm:$0xf]
      %v3741 = vld [vmem:[%s3738 + $0x8] sm:$0xf]
      %v3742 = vld [vmem:[%s3738 + $0xc] sm:$0xf]
      %v3743 = vld [vmem:[%s3738 + $0x10] sm:$0xf]
      %v3744 = vld [vmem:[%s3738 + $0x14] sm:$0xf]
      %v3745 = vld [vmem:[%s3738 + $0x18] sm:$0xf]
      %v3746 = vld [vmem:[%s3738 + $0x1c] sm:$0xf]
      %v3747 = vld [vmem:[%s3738 + $0x20] sm:$0xf]
      %v3748 = vld [vmem:[%s3738 + $0x24] sm:$0xf]
      %v3749 = vld [vmem:[%s3738 + $0x28] sm:$0xf]
      %v3750 = vld [vmem:[%s3738 + $0x2c] sm:$0xf]
      %v3751 = vld [vmem:[%s3738 + $0x30] sm:$0xf]
      %v3752 = vld [vmem:[%s3738 + $0x34] sm:$0xf]
      %v3753 = vld [vmem:[%s3738 + $0x38] sm:$0xf]
      %v3754 = vld [vmem:[%s3738 + $0x3c] sm:$0xf]
      %v3758 = vunpack.c.l.b16 %v3719
      %v3759 = vunpack.c.l.b16 %v3720
      %v3760 = vunpack.c.l.b16 %v3737
      %v3761 = vpack.c.b16 %v3759, %v3758
      %v3762 = vpack.c.b16 %v3760, %v3760
      %v3764 = vshrl.u32 %v3761, 16
      %v3766 = vshll.u32 %v3761, 16
      %v3768 = vrot.slane %v3766, 1
      %v3769 = vor.u32 %v3764, %v3768
      %v3771 = vshll.u32 %v3762, 16
      %v3773 = vrot.slane %v3771, 1
      %v3774 = vsel %vm801, %v3769, %v3773
      %v3792 = vunpack.c.l.b16 %v3739
      %v3793 = vunpack.c.l.b16 %v3740
      %v3794 = vunpack.c.l.b16 %v3741
      %v3795 = vunpack.c.l.b16 %v3742
      %v3796 = vunpack.c.l.b16 %v3743
      %v3797 = vunpack.c.l.b16 %v3744
      %v3798 = vunpack.c.l.b16 %v3745
      %v3799 = vunpack.c.l.b16 %v3746
      %v3800 = vunpack.c.l.b16 %v3747
      %v3801 = vunpack.c.l.b16 %v3748
      %v3802 = vunpack.c.l.b16 %v3749
      %v3803 = vunpack.c.l.b16 %v3750
      %v3804 = vunpack.c.l.b16 %v3751
      %v3805 = vunpack.c.l.b16 %v3752
      %v3806 = vunpack.c.l.b16 %v3753
      %v3807 = vunpack.c.l.b16 %v3754
      %v3808 = vpack.c.b16 %v3793, %v3792
      %v3809 = vpack.c.b16 %v3795, %v3794
      %v3810 = vpack.c.b16 %v3797, %v3796
      %v3811 = vpack.c.b16 %v3799, %v3798
      %v3812 = vpack.c.b16 %v3801, %v3800
      %v3813 = vpack.c.b16 %v3803, %v3802
      %v3814 = vpack.c.b16 %v3805, %v3804
      %v3815 = vpack.c.b16 %v3807, %v3806
      %3824 = vmatprep.subr.bf16.mxu0 0
      %3825 = vmatpush1.bf16.msra.mxu0 %v3808
      %3826 = vmatprep.subr.bf16.mxu0 0
      %3827 = vmatpush1.bf16.msra.mxu0 %v3809
      %3828 = vmatprep.subr.bf16.mxu0 0
      %3829 = vmatpush1.bf16.msra.mxu0 %v3810
      %3830 = vmatprep.subr.bf16.mxu0 0
      %3831 = vmatpush1.bf16.msra.mxu0 %v3811
      %3832 = vmatprep.subr.bf16.mxu0 0
      %3833 = vmatpush1.bf16.msra.mxu0 %v3812
      %3834 = vmatprep.subr.bf16.mxu0 0
      %3835 = vmatpush1.bf16.msra.mxu0 %v3813
      %3836 = vmatprep.subr.bf16.mxu0 0
      %3837 = vmatpush1.bf16.msra.mxu0 %v3814
      %3838 = vmatprep.subr.bf16.mxu0 0
      %3839 = vmatpush1.bf16.msra.mxu0 %v3815
      %3840 = vmatprep.subr.bf16.mxu0 0
      %3841 = vmatpush1.bf16.msra.mxu0 0
      %3842 = vmatprep.subr.bf16.mxu0 0
      %3843 = vmatpush1.bf16.msra.mxu0 0
      %3844 = vmatprep.subr.bf16.mxu0 0
      %3845 = vmatpush1.bf16.msra.mxu0 0
      %3846 = vmatprep.subr.bf16.mxu0 0
      %3847 = vmatpush1.bf16.msra.mxu0 0
      %3848 = vmatprep.subr.bf16.mxu0 0
      %3849 = vmatpush1.bf16.msra.mxu0 0
      %3850 = vmatprep.subr.bf16.mxu0 0
      %3851 = vmatpush1.bf16.msra.mxu0 0
      %3852 = vmatprep.subr.bf16.mxu0 0
      %3853 = vmatpush1.bf16.msra.mxu0 0
      %3854 = vmatprep.subr.bf16.mxu0 0
      %3855 = vmatpush1.bf16.msra.mxu0 0
      %3856 = vmatprep.mubr.bf16.mxu0 0
      %3857 = vmatmul.mubr.bf16.gmra.mrb[0].mxu0 %v3774
      %v3858 = vpop.f32.mrb[0].mxu0
      %v3859 = vadd.f32 0.0, %v3858
      %v3860 = vpop.f32.mrb[0].mxu0
      %v3861 = vpop.f32.mrb[0].mxu0
      %v3862 = vadd.f32 0.0, %v3861
      %v3863 = vpop.f32.mrb[0].mxu0
      %3864 = vdwg.mxu0
      %v3882 = vunpack.c.l.b16 %v3721
      %v3883 = vunpack.c.l.b16 %v3722
      %v3884 = vunpack.c.l.b16 %v3723
      %v3885 = vunpack.c.l.b16 %v3724
      %v3886 = vunpack.c.l.b16 %v3725
      %v3887 = vunpack.c.l.b16 %v3726
      %v3888 = vunpack.c.l.b16 %v3727
      %v3889 = vunpack.c.l.b16 %v3728
      %v3890 = vunpack.c.l.b16 %v3729
      %v3891 = vunpack.c.l.b16 %v3730
      %v3892 = vunpack.c.l.b16 %v3731
      %v3893 = vunpack.c.l.b16 %v3732
      %v3894 = vunpack.c.l.b16 %v3733
      %v3895 = vunpack.c.l.b16 %v3734
      %v3896 = vunpack.c.l.b16 %v3735
      %v3897 = vunpack.c.l.b16 %v3736
      %v3898 = vpack.c.b16 %v3883, %v3882
      %v3899 = vpack.c.b16 %v3885, %v3884
      %v3900 = vpack.c.b16 %v3887, %v3886
      %v3901 = vpack.c.b16 %v3889, %v3888
      %v3902 = vpack.c.b16 %v3891, %v3890
      %v3903 = vpack.c.b16 %v3893, %v3892
      %v3904 = vpack.c.b16 %v3895, %v3894
      %v3905 = vpack.c.b16 %v3897, %v3896
      %3914 = vmatprep.subr.bf16.mxu0 0
      %3915 = vmatpush1.bf16.msra.mxu0 %v3898
      %3916 = vmatprep.subr.bf16.mxu0 0
      %3917 = vmatpush1.bf16.msra.mxu0 %v3899
      %3918 = vmatprep.subr.bf16.mxu0 0
      %3919 = vmatpush1.bf16.msra.mxu0 %v3900
      %3920 = vmatprep.subr.bf16.mxu0 0
      %3921 = vmatpush1.bf16.msra.mxu0 %v3901
      %3922 = vmatprep.subr.bf16.mxu0 0
      %3923 = vmatpush1.bf16.msra.mxu0 %v3902
      %3924 = vmatprep.subr.bf16.mxu0 0
      %3925 = vmatpush1.bf16.msra.mxu0 %v3903
      %3926 = vmatprep.subr.bf16.mxu0 0
      %3927 = vmatpush1.bf16.msra.mxu0 %v3904
      %3928 = vmatprep.subr.bf16.mxu0 0
      %3929 = vmatpush1.bf16.msra.mxu0 %v3905
      %3930 = vmatprep.subr.bf16.mxu0 0
      %3931 = vmatpush1.bf16.msra.mxu0 0
      %3932 = vmatprep.subr.bf16.mxu0 0
      %3933 = vmatpush1.bf16.msra.mxu0 0
      %3934 = vmatprep.subr.bf16.mxu0 0
      %3935 = vmatpush1.bf16.msra.mxu0 0
      %3936 = vmatprep.subr.bf16.mxu0 0
      %3937 = vmatpush1.bf16.msra.mxu0 0
      %3938 = vmatprep.subr.bf16.mxu0 0
      %3939 = vmatpush1.bf16.msra.mxu0 0
      %3940 = vmatprep.subr.bf16.mxu0 0
      %3941 = vmatpush1.bf16.msra.mxu0 0
      %3942 = vmatprep.subr.bf16.mxu0 0
      %3943 = vmatpush1.bf16.msra.mxu0 0
      %3944 = vmatprep.subr.bf16.mxu0 0
      %3945 = vmatpush1.bf16.msra.mxu0 0
      %3946 = vmatprep.mubr.bf16.mxu0 0
      %3947 = vmatmul.mubr.bf16.gmra.mrb[0].mxu0 %v3761
      %v3948 = vpop.f32.mrb[0].mxu0
      %v3949 = vadd.f32 %v3859, %v3948
      %v3950 = vpop.f32.mrb[0].mxu0
      %v3951 = vpop.f32.mrb[0].mxu0
      %v3952 = vadd.f32 %v3862, %v3951
      %v3953 = vpop.f32.mrb[0].mxu0
      %3954 = vdwg.mxu0
      %v3955 = vld [vmem:[#allocation5] sm:$0xe]
      %s3956 = scalar_lea.vmem %s11, 128
      %v3957 = vld [vmem:[%s3956] sm:$0xf]
      %v3958 = vld [vmem:[%s3956 + $0x4] sm:$0xf]
      %v3959 = vld [vmem:[%s3956 + $0x8] sm:$0xf]
      %v3960 = vld [vmem:[%s3956 + $0xc] sm:$0xf]
      %v3961 = vld [vmem:[%s3956 + $0x10] sm:$0xf]
      %v3962 = vld [vmem:[%s3956 + $0x14] sm:$0xf]
      %v3963 = vld [vmem:[%s3956 + $0x18] sm:$0xf]
      %v3964 = vld [vmem:[%s3956 + $0x1c] sm:$0xf]
      %v3965 = vld [vmem:[%s3956 + $0x20] sm:$0xf]
      %v3966 = vld [vmem:[%s3956 + $0x24] sm:$0xf]
      %v3967 = vld [vmem:[%s3956 + $0x28] sm:$0xf]
      %v3968 = vld [vmem:[%s3956 + $0x2c] sm:$0xf]
      %v3969 = vld [vmem:[%s3956 + $0x30] sm:$0xf]
      %v3970 = vld [vmem:[%s3956 + $0x34] sm:$0xf]
      %v3971 = vld [vmem:[%s3956 + $0x38] sm:$0xf]
      %v3972 = vld [vmem:[%s3956 + $0x3c] sm:$0xf]
      %v3974 = vunpack.c.l.b16 %v3955
      %v3975 = vpack.c.b16 %v3759, %v3974
      %v3976 = vrot.slane %v3975, 1
      %v3977 = vrot.slane %v3762, 1
      %v3978 = vsel %vm1015, %v3976, %v3977
      %v3996 = vunpack.c.l.b16 %v3957
      %v3997 = vunpack.c.l.b16 %v3958
      %v3998 = vunpack.c.l.b16 %v3959
      %v3999 = vunpack.c.l.b16 %v3960
      %v4000 = vunpack.c.l.b16 %v3961
      %v4001 = vunpack.c.l.b16 %v3962
      %v4002 = vunpack.c.l.b16 %v3963
      %v4003 = vunpack.c.l.b16 %v3964
      %v4004 = vunpack.c.l.b16 %v3965
      %v4005 = vunpack.c.l.b16 %v3966
      %v4006 = vunpack.c.l.b16 %v3967
      %v4007 = vunpack.c.l.b16 %v3968
      %v4008 = vunpack.c.l.b16 %v3969
      %v4009 = vunpack.c.l.b16 %v3970
      %v4010 = vunpack.c.l.b16 %v3971
      %v4011 = vunpack.c.l.b16 %v3972
      %v4012 = vpack.c.b16 %v3997, %v3996
      %v4013 = vpack.c.b16 %v3999, %v3998
      %v4014 = vpack.c.b16 %v4001, %v4000
      %v4015 = vpack.c.b16 %v4003, %v4002
      %v4016 = vpack.c.b16 %v4005, %v4004
      %v4017 = vpack.c.b16 %v4007, %v4006
      %v4018 = vpack.c.b16 %v4009, %v4008
      %v4019 = vpack.c.b16 %v4011, %v4010
      %4028 = vmatprep.subr.bf16.mxu0 0
      %4029 = vmatpush1.bf16.msra.mxu0 %v4012
      %4030 = vmatprep.subr.bf16.mxu0 0
      %4031 = vmatpush1.bf16.msra.mxu0 %v4013
      %4032 = vmatprep.subr.bf16.mxu0 0
      %4033 = vmatpush1.bf16.msra.mxu0 %v4014
      %4034 = vmatprep.subr.bf16.mxu0 0
      %4035 = vmatpush1.bf16.msra.mxu0 %v4015
      %4036 = vmatprep.subr.bf16.mxu0 0
      %4037 = vmatpush1.bf16.msra.mxu0 %v4016
      %4038 = vmatprep.subr.bf16.mxu0 0
      %4039 = vmatpush1.bf16.msra.mxu0 %v4017
      %4040 = vmatprep.subr.bf16.mxu0 0
      %4041 = vmatpush1.bf16.msra.mxu0 %v4018
      %4042 = vmatprep.subr.bf16.mxu0 0
      %4043 = vmatpush1.bf16.msra.mxu0 %v4019
      %4044 = vmatprep.subr.bf16.mxu0 0
      %4045 = vmatpush1.bf16.msra.mxu0 0
      %4046 = vmatprep.subr.bf16.mxu0 0
      %4047 = vmatpush1.bf16.msra.mxu0 0
      %4048 = vmatprep.subr.bf16.mxu0 0
      %4049 = vmatpush1.bf16.msra.mxu0 0
      %4050 = vmatprep.subr.bf16.mxu0 0
      %4051 = vmatpush1.bf16.msra.mxu0 0
      %4052 = vmatprep.subr.bf16.mxu0 0
      %4053 = vmatpush1.bf16.msra.mxu0 0
      %4054 = vmatprep.subr.bf16.mxu0 0
      %4055 = vmatpush1.bf16.msra.mxu0 0
      %4056 = vmatprep.subr.bf16.mxu0 0
      %4057 = vmatpush1.bf16.msra.mxu0 0
      %4058 = vmatprep.subr.bf16.mxu0 0
      %4059 = vmatpush1.bf16.msra.mxu0 0
      %4060 = vmatprep.mubr.bf16.mxu0 0
      %4061 = vmatmul.mubr.bf16.gmra.mrb[0].mxu0 %v3978
      %v4062 = vpop.f32.mrb[0].mxu0
      %v4063 = vadd.f32 0.0, %v4062
      %v4064 = vpop.f32.mrb[0].mxu0
      %v4065 = vpop.f32.mrb[0].mxu0
      %v4066 = vadd.f32 0.0, %v4065
      %v4067 = vpop.f32.mrb[0].mxu0
      %4068 = vdwg.mxu0
      %v4069 = vadd.f32 %v3949, %v4063
      %v4070 = vadd.f32 %v3952, %v4066
      %v4071 = vld [vmem:[%s12] sm:$0x1]
      %v4073 = vlaneseq
      %v4074 = vshrl.u32 %v4073, 7
      %v4075 = vsub.s32 0, %v4074
      %v4076 = vrot.slane %v4071, %v4075
      %v4078 = vadd.f32 %v4069, %v4076
      %v4079 = vadd.f32 %v4070, %v4076
      %v4080 = vmax.f32 %v4078, 0.0
      %v4081 = vmax.f32 %v4079, 0.0
      %v4082 = vpack.c.bf16 %v4081, %v4080
      %v4084 = vunpack.c.l.b16 %v4082
      %v4085 = vunpack.c.h.b16 %v4082
      %v4086 = vpack.c.b16 %v4084, %v4084
      %v4087 = vpack.c.b16 %v4085, %v4085
      %v4089 = vshrl.u32 %v4086, 16
      %v4091 = vrot.slane %v4089, 7
      %v4092 = vshll.u32 %v4086, 16
      %v4094 = vor.u32 %v4091, %v4092
      %v4095 = vrot.slane %v4091, 4
      %v4097 = vshrl.u32 %v4087, 16
      %v4099 = vrot.slane %v4097, 7
      %v4100 = vshll.u32 %v4087, 16
      %v4102 = vor.u32 %v4099, %v4100
      %v4103 = vsel %vm727, %v4095, %v4102
      %v4104 = vrot.slane %v4099, 4
      %v4108 = vld [vmem:[#allocation6] sm:$0xf]
      %v4109 = vsel %vm749, %v4094, %v4108
      %4110 = vst [vmem:[#allocation6] sm:$0xf] %v4109
      %4111 = vst [vmem:[#allocation6 + $0x4] sm:$0xf] %v4103
      %v4112 = vld [vmem:[#allocation6 + $0x8] sm:$0x1]
      %v4113 = vsel %vm663, %v4104, %v4112
      %4114 = vst [vmem:[#allocation6 + $0x8] sm:$0x1] %v4113
      %v4115 = vld [vmem:[#allocation6] sm:$0xf]
      %v4116 = vld [vmem:[#allocation6 + $0x4] sm:$0xf]
      %v4117 = vld [vmem:[%s13] sm:$0xf]
      %v4118 = vld [vmem:[%s13 + $0x4] sm:$0xf]
      %v4119 = vld [vmem:[%s13 + $0x8] sm:$0xf]
      %v4120 = vld [vmem:[%s13 + $0xc] sm:$0xf]
      %v4121 = vld [vmem:[%s13 + $0x10] sm:$0xf]
      %v4122 = vld [vmem:[%s13 + $0x14] sm:$0xf]
      %v4123 = vld [vmem:[%s13 + $0x18] sm:$0xf]
      %v4124 = vld [vmem:[%s13 + $0x1c] sm:$0xf]
      %v4125 = vld [vmem:[%s13 + $0x20] sm:$0xf]
      %v4126 = vld [vmem:[%s13 + $0x24] sm:$0xf]
      %v4127 = vld [vmem:[%s13 + $0x28] sm:$0xf]
      %v4128 = vld [vmem:[%s13 + $0x2c] sm:$0xf]
      %v4129 = vld [vmem:[%s13 + $0x30] sm:$0xf]
      %v4130 = vld [vmem:[%s13 + $0x34] sm:$0xf]
      %v4131 = vld [vmem:[%s13 + $0x38] sm:$0xf]
      %v4132 = vld [vmem:[%s13 + $0x3c] sm:$0xf]
      %v4133 = vld [vmem:[#allocation6 + $0x8] sm:$0x1]
      %s4134 = scalar_lea.vmem %s13, 64
      %v4135 = vld [vmem:[%s4134] sm:$0xf]
      %v4136 = vld [vmem:[%s4134 + $0x4] sm:$0xf]
      %v4137 = vld [vmem:[%s4134 + $0x8] sm:$0xf]
      %v4138 = vld [vmem:[%s4134 + $0xc] sm:$0xf]
      %v4139 = vld [vmem:[%s4134 + $0x10] sm:$0xf]
      %v4140 = vld [vmem:[%s4134 + $0x14] sm:$0xf]
      %v4141 = vld [vmem:[%s4134 + $0x18] sm:$0xf]
      %v4142 = vld [vmem:[%s4134 + $0x1c] sm:$0xf]
      %v4143 = vld [vmem:[%s4134 + $0x20] sm:$0xf]
      %v4144 = vld [vmem:[%s4134 + $0x24] sm:$0xf]
      %v4145 = vld [vmem:[%s4134 + $0x28] sm:$0xf]
      %v4146 = vld [vmem:[%s4134 + $0x2c] sm:$0xf]
      %v4147 = vld [vmem:[%s4134 + $0x30] sm:$0xf]
      %v4148 = vld [vmem:[%s4134 + $0x34] sm:$0xf]
      %v4149 = vld [vmem:[%s4134 + $0x38] sm:$0xf]
      %v4150 = vld [vmem:[%s4134 + $0x3c] sm:$0xf]
      %v4154 = vunpack.c.l.b16 %v4115
      %v4155 = vunpack.c.l.b16 %v4116
      %v4156 = vunpack.c.l.b16 %v4133
      %v4157 = vpack.c.b16 %v4155, %v4154
      %v4158 = vpack.c.b16 %v4156, %v4156
      %v4160 = vshrl.u32 %v4157, 16
      %v4162 = vshll.u32 %v4157, 16
      %v4164 = vrot.slane %v4162, 1
      %v4165 = vor.u32 %v4160, %v4164
      %v4167 = vshll.u32 %v4158, 16
      %v4169 = vrot.slane %v4167, 1
      %v4170 = vsel %vm801, %v4165, %v4169
      %v4188 = vunpack.c.l.b16 %v4135
      %v4189 = vunpack.c.l.b16 %v4136
      %v4190 = vunpack.c.l.b16 %v4137
      %v4191 = vunpack.c.l.b16 %v4138
      %v4192 = vunpack.c.l.b16 %v4139
      %v4193 = vunpack.c.l.b16 %v4140
      %v4194 = vunpack.c.l.b16 %v4141
      %v4195 = vunpack.c.l.b16 %v4142
      %v4196 = vunpack.c.l.b16 %v4143
      %v4197 = vunpack.c.l.b16 %v4144
      %v4198 = vunpack.c.l.b16 %v4145
      %v4199 = vunpack.c.l.b16 %v4146
      %v4200 = vunpack.c.l.b16 %v4147
      %v4201 = vunpack.c.l.b16 %v4148
      %v4202 = vunpack.c.l.b16 %v4149
      %v4203 = vunpack.c.l.b16 %v4150
      %v4204 = vpack.c.b16 %v4189, %v4188
      %v4205 = vpack.c.b16 %v4191, %v4190
      %v4206 = vpack.c.b16 %v4193, %v4192
      %v4207 = vpack.c.b16 %v4195, %v4194
      %v4208 = vpack.c.b16 %v4197, %v4196
      %v4209 = vpack.c.b16 %v4199, %v4198
      %v4210 = vpack.c.b16 %v4201, %v4200
      %v4211 = vpack.c.b16 %v4203, %v4202
      %4220 = vmatprep.subr.bf16.mxu0 0
      %4221 = vmatpush1.bf16.msra.mxu0 %v4204
      %4222 = vmatprep.subr.bf16.mxu0 0
      %4223 = vmatpush1.bf16.msra.mxu0 %v4205
      %4224 = vmatprep.subr.bf16.mxu0 0
      %4225 = vmatpush1.bf16.msra.mxu0 %v4206
      %4226 = vmatprep.subr.bf16.mxu0 0
      %4227 = vmatpush1.bf16.msra.mxu0 %v4207
      %4228 = vmatprep.subr.bf16.mxu0 0
      %4229 = vmatpush1.bf16.msra.mxu0 %v4208
      %4230 = vmatprep.subr.bf16.mxu0 0
      %4231 = vmatpush1.bf16.msra.mxu0 %v4209
      %4232 = vmatprep.subr.bf16.mxu0 0
      %4233 = vmatpush1.bf16.msra.mxu0 %v4210
      %4234 = vmatprep.subr.bf16.mxu0 0
      %4235 = vmatpush1.bf16.msra.mxu0 %v4211
      %4236 = vmatprep.subr.bf16.mxu0 0
      %4237 = vmatpush1.bf16.msra.mxu0 0
      %4238 = vmatprep.subr.bf16.mxu0 0
      %4239 = vmatpush1.bf16.msra.mxu0 0
      %4240 = vmatprep.subr.bf16.mxu0 0
      %4241 = vmatpush1.bf16.msra.mxu0 0
      %4242 = vmatprep.subr.bf16.mxu0 0
      %4243 = vmatpush1.bf16.msra.mxu0 0
      %4244 = vmatprep.subr.bf16.mxu0 0
      %4245 = vmatpush1.bf16.msra.mxu0 0
      %4246 = vmatprep.subr.bf16.mxu0 0
      %4247 = vmatpush1.bf16.msra.mxu0 0
      %4248 = vmatprep.subr.bf16.mxu0 0
      %4249 = vmatpush1.bf16.msra.mxu0 0
      %4250 = vmatprep.subr.bf16.mxu0 0
      %4251 = vmatpush1.bf16.msra.mxu0 0
      %4252 = vmatprep.mubr.bf16.mxu0 0
      %4253 = vmatmul.mubr.bf16.gmra.mrb[0].mxu0 %v4170
      %v4254 = vpop.f32.mrb[0].mxu0
      %v4255 = vadd.f32 0.0, %v4254
      %v4256 = vpop.f32.mrb[0].mxu0
      %v4257 = vpop.f32.mrb[0].mxu0
      %v4258 = vadd.f32 0.0, %v4257
      %v4259 = vpop.f32.mrb[0].mxu0
      %4260 = vdwg.mxu0
      %v4278 = vunpack.c.l.b16 %v4117
      %v4279 = vunpack.c.l.b16 %v4118
      %v4280 = vunpack.c.l.b16 %v4119
      %v4281 = vunpack.c.l.b16 %v4120
      %v4282 = vunpack.c.l.b16 %v4121
      %v4283 = vunpack.c.l.b16 %v4122
      %v4284 = vunpack.c.l.b16 %v4123
      %v4285 = vunpack.c.l.b16 %v4124
      %v4286 = vunpack.c.l.b16 %v4125
      %v4287 = vunpack.c.l.b16 %v4126
      %v4288 = vunpack.c.l.b16 %v4127
      %v4289 = vunpack.c.l.b16 %v4128
      %v4290 = vunpack.c.l.b16 %v4129
      %v4291 = vunpack.c.l.b16 %v4130
      %v4292 = vunpack.c.l.b16 %v4131
      %v4293 = vunpack.c.l.b16 %v4132
      %v4294 = vpack.c.b16 %v4279, %v4278
      %v4295 = vpack.c.b16 %v4281, %v4280
      %v4296 = vpack.c.b16 %v4283, %v4282
      %v4297 = vpack.c.b16 %v4285, %v4284
      %v4298 = vpack.c.b16 %v4287, %v4286
      %v4299 = vpack.c.b16 %v4289, %v4288
      %v4300 = vpack.c.b16 %v4291, %v4290
      %v4301 = vpack.c.b16 %v4293, %v4292
      %4310 = vmatprep.subr.bf16.mxu0 0
      %4311 = vmatpush1.bf16.msra.mxu0 %v4294
      %4312 = vmatprep.subr.bf16.mxu0 0
      %4313 = vmatpush1.bf16.msra.mxu0 %v4295
      %4314 = vmatprep.subr.bf16.mxu0 0
      %4315 = vmatpush1.bf16.msra.mxu0 %v4296
      %4316 = vmatprep.subr.bf16.mxu0 0
      %4317 = vmatpush1.bf16.msra.mxu0 %v4297
      %4318 = vmatprep.subr.bf16.mxu0 0
      %4319 = vmatpush1.bf16.msra.mxu0 %v4298
      %4320 = vmatprep.subr.bf16.mxu0 0
      %4321 = vmatpush1.bf16.msra.mxu0 %v4299
      %4322 = vmatprep.subr.bf16.mxu0 0
      %4323 = vmatpush1.bf16.msra.mxu0 %v4300
      %4324 = vmatprep.subr.bf16.mxu0 0
      %4325 = vmatpush1.bf16.msra.mxu0 %v4301
      %4326 = vmatprep.subr.bf16.mxu0 0
      %4327 = vmatpush1.bf16.msra.mxu0 0
      %4328 = vmatprep.subr.bf16.mxu0 0
      %4329 = vmatpush1.bf16.msra.mxu0 0
      %4330 = vmatprep.subr.bf16.mxu0 0
      %4331 = vmatpush1.bf16.msra.mxu0 0
      %4332 = vmatprep.subr.bf16.mxu0 0
      %4333 = vmatpush1.bf16.msra.mxu0 0
      %4334 = vmatprep.subr.bf16.mxu0 0
      %4335 = vmatpush1.bf16.msra.mxu0 0
      %4336 = vmatprep.subr.bf16.mxu0 0
      %4337 = vmatpush1.bf16.msra.mxu0 0
      %4338 = vmatprep.subr.bf16.mxu0 0
      %4339 = vmatpush1.bf16.msra.mxu0 0
      %4340 = vmatprep.subr.bf16.mxu0 0
      %4341 = vmatpush1.bf16.msra.mxu0 0
      %4342 = vmatprep.mubr.bf16.mxu0 0
      %4343 = vmatmul.mubr.bf16.gmra.mrb[0].mxu0 %v4157
      %v4344 = vpop.f32.mrb[0].mxu0
      %v4345 = vadd.f32 %v4255, %v4344
      %v4346 = vpop.f32.mrb[0].mxu0
      %v4347 = vpop.f32.mrb[0].mxu0
      %v4348 = vadd.f32 %v4258, %v4347
      %v4349 = vpop.f32.mrb[0].mxu0
      %4350 = vdwg.mxu0
      %v4351 = vld [vmem:[#allocation6] sm:$0xe]
      %s4352 = scalar_lea.vmem %s13, 128
      %v4353 = vld [vmem:[%s4352] sm:$0xf]
      %v4354 = vld [vmem:[%s4352 + $0x4] sm:$0xf]
      %v4355 = vld [vmem:[%s4352 + $0x8] sm:$0xf]
      %v4356 = vld [vmem:[%s4352 + $0xc] sm:$0xf]
      %v4357 = vld [vmem:[%s4352 + $0x10] sm:$0xf]
      %v4358 = vld [vmem:[%s4352 + $0x14] sm:$0xf]
      %v4359 = vld [vmem:[%s4352 + $0x18] sm:$0xf]
      %v4360 = vld [vmem:[%s4352 + $0x1c] sm:$0xf]
      %v4361 = vld [vmem:[%s4352 + $0x20] sm:$0xf]
      %v4362 = vld [vmem:[%s4352 + $0x24] sm:$0xf]
      %v4363 = vld [vmem:[%s4352 + $0x28] sm:$0xf]
      %v4364 = vld [vmem:[%s4352 + $0x2c] sm:$0xf]
      %v4365 = vld [vmem:[%s4352 + $0x30] sm:$0xf]
      %v4366 = vld [vmem:[%s4352 + $0x34] sm:$0xf]
      %v4367 = vld [vmem:[%s4352 + $0x38] sm:$0xf]
      %v4368 = vld [vmem:[%s4352 + $0x3c] sm:$0xf]
      %v4370 = vunpack.c.l.b16 %v4351
      %v4371 = vpack.c.b16 %v4155, %v4370
      %v4372 = vrot.slane %v4371, 1
      %v4373 = vrot.slane %v4158, 1
      %v4374 = vsel %vm1015, %v4372, %v4373
      %v4392 = vunpack.c.l.b16 %v4353
      %v4393 = vunpack.c.l.b16 %v4354
      %v4394 = vunpack.c.l.b16 %v4355
      %v4395 = vunpack.c.l.b16 %v4356
      %v4396 = vunpack.c.l.b16 %v4357
      %v4397 = vunpack.c.l.b16 %v4358
      %v4398 = vunpack.c.l.b16 %v4359
      %v4399 = vunpack.c.l.b16 %v4360
      %v4400 = vunpack.c.l.b16 %v4361
      %v4401 = vunpack.c.l.b16 %v4362
      %v4402 = vunpack.c.l.b16 %v4363
      %v4403 = vunpack.c.l.b16 %v4364
      %v4404 = vunpack.c.l.b16 %v4365
      %v4405 = vunpack.c.l.b16 %v4366
      %v4406 = vunpack.c.l.b16 %v4367
      %v4407 = vunpack.c.l.b16 %v4368
      %v4408 = vpack.c.b16 %v4393, %v4392
      %v4409 = vpack.c.b16 %v4395, %v4394
      %v4410 = vpack.c.b16 %v4397, %v4396
      %v4411 = vpack.c.b16 %v4399, %v4398
      %v4412 = vpack.c.b16 %v4401, %v4400
      %v4413 = vpack.c.b16 %v4403, %v4402
      %v4414 = vpack.c.b16 %v4405, %v4404
      %v4415 = vpack.c.b16 %v4407, %v4406
      %4424 = vmatprep.subr.bf16.mxu0 0
      %4425 = vmatpush1.bf16.msra.mxu0 %v4408
      %4426 = vmatprep.subr.bf16.mxu0 0
      %4427 = vmatpush1.bf16.msra.mxu0 %v4409
      %4428 = vmatprep.subr.bf16.mxu0 0
      %4429 = vmatpush1.bf16.msra.mxu0 %v4410
      %4430 = vmatprep.subr.bf16.mxu0 0
      %4431 = vmatpush1.bf16.msra.mxu0 %v4411
      %4432 = vmatprep.subr.bf16.mxu0 0
      %4433 = vmatpush1.bf16.msra.mxu0 %v4412
      %4434 = vmatprep.subr.bf16.mxu0 0
      %4435 = vmatpush1.bf16.msra.mxu0 %v4413
      %4436 = vmatprep.subr.bf16.mxu0 0
      %4437 = vmatpush1.bf16.msra.mxu0 %v4414
      %4438 = vmatprep.subr.bf16.mxu0 0
      %4439 = vmatpush1.bf16.msra.mxu0 %v4415
      %4440 = vmatprep.subr.bf16.mxu0 0
      %4441 = vmatpush1.bf16.msra.mxu0 0
      %4442 = vmatprep.subr.bf16.mxu0 0
      %4443 = vmatpush1.bf16.msra.mxu0 0
      %4444 = vmatprep.subr.bf16.mxu0 0
      %4445 = vmatpush1.bf16.msra.mxu0 0
      %4446 = vmatprep.subr.bf16.mxu0 0
      %4447 = vmatpush1.bf16.msra.mxu0 0
      %4448 = vmatprep.subr.bf16.mxu0 0
      %4449 = vmatpush1.bf16.msra.mxu0 0
      %4450 = vmatprep.subr.bf16.mxu0 0
      %4451 = vmatpush1.bf16.msra.mxu0 0
      %4452 = vmatprep.subr.bf16.mxu0 0
      %4453 = vmatpush1.bf16.msra.mxu0 0
      %4454 = vmatprep.subr.bf16.mxu0 0
      %4455 = vmatpush1.bf16.msra.mxu0 0
      %4456 = vmatprep.mubr.bf16.mxu0 0
      %4457 = vmatmul.mubr.bf16.gmra.mrb[0].mxu0 %v4374
      %v4458 = vpop.f32.mrb[0].mxu0
      %v4459 = vadd.f32 0.0, %v4458
      %v4460 = vpop.f32.mrb[0].mxu0
      %v4461 = vpop.f32.mrb[0].mxu0
      %v4462 = vadd.f32 0.0, %v4461
      %v4463 = vpop.f32.mrb[0].mxu0
      %4464 = vdwg.mxu0
      %v4465 = vadd.f32 %v4345, %v4459
      %v4466 = vadd.f32 %v4348, %v4462
      %v4467 = vld [vmem:[%s14] sm:$0x1]
      %v4469 = vlaneseq
      %v4470 = vshrl.u32 %v4469, 7
      %v4471 = vsub.s32 0, %v4470
      %v4472 = vrot.slane %v4467, %v4471
      %v4474 = vadd.f32 %v4465, %v4472
      %v4475 = vadd.f32 %v4466, %v4472
      %v4476 = vtanh.pop %v4474
      %v4477 = vtanh.pop %v4475
      %4478 = vst [vmem:[%s658] sm:$0xff] %v4476
      %4479 = vst [vmem:[%s658 + $0x8] sm:$0xff] %v4477
      %s4480 = smul.u32 2, %s32
      %p4481 = scmp.lt.s32.totalorder %s4480, 3
      %s4482 = scalar_select %p4481, %s4480, 3
      %s4483 = smul.addr %s4482, 8
      %s4484 = scalar_lea.vmem %s21, %s4483
      // Predicated region
      $region105: #{srunet_forward.1} parent=103 // pred_check
        %p4485 = pneg %p496
      $region106: #{srunet_forward.1} parent=103 // pred_check_branch
        %4487 = sbr.rel (%p4485) target = $region108
      $region107: #{srunet_forward.1} parent=103 // pred_region
        %s4488 = smul.u32 2, %s32
      $region108: #{srunet_forward.1} parent=103 // pred_fallthru
        _
    $region104: #{srunet_forward.1} parent=5 // pred_fallthru
      _
    %p4489 = scmp.le.s32.totalorder 2, %s27
    // Predicated region
    $region109: #{srunet_forward.1} parent=5 // pred_check
      %p4490 = pneg %p4489
    $region110: #{srunet_forward.1} parent=5 // pred_check_branch
      %4492 = sbr.rel (%p4490) target = $region112
    $region111: #{srunet_forward.1} parent=5 // pred_region
      %s4493 = ssub.s32 %s27, 2
      // Predicated region
      $region113: #{srunet_forward.1} parent=111 // pred_check
        %p4494 = pneg %p502
      $region114: #{srunet_forward.1} parent=111 // pred_check_branch
        %4496 = sbr.rel (%p4494) target = $region116
      $region115: #{srunet_forward.1} parent=111 // pred_region
        %s4497 = smul.u32 2, %s33
        %p4498 = scmp.lt.s32.totalorder %s4497, 3
        %s4499 = scalar_select %p4498, %s4497, 3
        %s4500 = smul.addr %s4499, 8
        %s4501 = scalar_lea.vmem %s21, %s4500
      $region116: #{srunet_forward.1} parent=111 // pred_fallthru
        _
    $region112: #{srunet_forward.1} parent=5 // pred_fallthru
      _
  $region6: #{srunet_forward.1} parent=0 // loop_footer
    %s31 = sadd.s32 1, %s27
  $region7: #{srunet_forward.1} parent=0 // loop_footer_branch
    %26 = sbr.rel target = $region3
  $region8: #{srunet_forward.1} parent=0 // loop_exit
    _

</llo_original>
